<compile_context>
chip_gen: v6e
topology: v6e:2x2x1
jax: 0.10.0
libtpu: 0.0.40
codegen_flags: <defaults>
</compile_context>

<pallas_src>
import numpy as np
import jax
import jax.numpy as jnp
from jax.experimental import pallas as pl
from jax.experimental.pallas import tpu as pltpu


# ---------------------------------------------------------------------------
# Static geometry for the test configuration (x: (N, 3, 16, 16), c=1):
#   conv1: 3->16  s2 p2  16x16 -> 8x8      conv2: 16->32 s2 p2  8x8 -> 4x4
#   conv3: 32->32 s1 p2  4x4               conv4: 32->32 s1 p2  4x4
#   heads: 32->2 (mu) and 32->2 (logvar)   s1 p2  4x4
# In-kernel activation layout (per image): (H, W*C) with C minor.
# conv1 output rows are produced in parity-grouped order [0,2,4,6,1,3,5,7].
#
# Per vertical tap: (out_row_start, out_row_stop, in_row_start, in_row_stop)
_TAPS_CONV2 = ((1, 4, 0, 3), (1, 4, 4, 7), (0, 4, 0, 4), (0, 4, 4, 8), (0, 3, 1, 4))
_TAPS_S1 = ((2, 4, 0, 2), (1, 4, 0, 3), (0, 4, 0, 4), (0, 3, 1, 4), (0, 2, 2, 4))
_GROUPED_HO1 = np.array([0, 2, 4, 6, 1, 3, 5, 7], np.int32)


# ---------------------------------------------------------------------------
# Fused encoder kernel
# ---------------------------------------------------------------------------
def _encoder_kernel(alpha_ref, xt_ref, w1_ref, b1_ref, w2_ref, b2_ref,
                    w3_ref, b3_ref, w4_ref, b4_ref, wh_ref, bh_ref, eps_ref,
                    z_ref, mu_ref, lv_ref,
                    y1_ref, y_ref, acc_ref, hacc_ref):
    f32 = jnp.float32

    def prelu(v, a):
        return jnp.where(v >= 0.0, v, a * v)

    # ---- conv1: 5x5 s2 p2, 3->16 (vertical taps pre-gathered on host) ----
    acc1 = jnp.zeros((8, 128), f32)
    for i in range(5):
        acc1 = acc1 + jnp.dot(xt_ref[0, i, :, :], w1_ref[i, :, :],
                              preferred_element_type=f32)
    y1_ref[...] = prelu(acc1 + b1_ref[...], alpha_ref[0])   # (8,128), grouped rows

    # ---- conv2: 5x5 s2 p2, 16->32 ----------------------------------------
    acc_ref[...] = jnp.zeros_like(acc_ref)
    for i, (o0, o1, r0, r1) in enumerate(_TAPS_CONV2):
        acc_ref[o0:o1, :] += jnp.dot(y1_ref[r0:r1, :], w2_ref[i, :, :],
                                     preferred_element_type=f32)
    y_ref[...] = prelu(acc_ref[...] + b2_ref[...], alpha_ref[1])   # (4,128)

    # ---- conv3 / conv4: 5x5 s1 p2, 32->32 --------------------------------
    for w_ref, b_ref, a_idx in ((w3_ref, b3_ref, 2), (w4_ref, b4_ref, 3)):
        acc_ref[...] = jnp.zeros_like(acc_ref)
        for i, (o0, o1, r0, r1) in enumerate(_TAPS_S1):
            acc_ref[o0:o1, :] += jnp.dot(y_ref[r0:r1, :], w_ref[i, :, :],
                                         preferred_element_type=f32)
        y_ref[...] = prelu(acc_ref[...] + b_ref[...], alpha_ref[a_idx])

    # ---- fused fc_mu|fc_logvar head (no activation) + reparameterize -----
    hacc_ref[...] = jnp.zeros_like(hacc_ref)
    for i, (o0, o1, r0, r1) in enumerate(_TAPS_S1):
        hacc_ref[o0:o1, :] += jnp.dot(y_ref[r0:r1, :], wh_ref[i, :, :],
                                      preferred_element_type=f32)
    head = hacc_ref[...] + bh_ref[...]          # (4,16): [:, :8]=mu, [:, 8:]=logvar
    mu = head[:, 0:8]
    logvar = head[:, 8:16]
    z = mu + eps_ref[0, :, :] * jnp.exp(0.5 * logvar)   # exp -> EUP slot

    z_ref[0, :, :] = z
    mu_ref[0, :, :] = mu
    lv_ref[0, :, :] = logvar


# ---------------------------------------------------------------------------
# One-time parameter packing (hoisted out of the forward pass)
# ---------------------------------------------------------------------------
def _banded_row_weight(weight, stride, pad, w_in, w_out):
    """(Cout, Cin, k, k) conv weight -> (k, w_in*Cin, w_out*Cout) matrices.

    Matrix i maps an input image row laid out as [w*Cin + ci] to an output row
    laid out as [wo*Cout + co]; horizontal taps, stride and zero-padding are
    folded into the band structure."""
    w_np = np.asarray(weight, dtype=np.float32)
    cout, cin, k, _ = w_np.shape
    out = np.zeros((k, w_in * cin, w_out * cout), np.float32)
    for i in range(k):
        for wo in range(w_out):
            for j in range(k):
                w = stride * wo + j - pad
                if 0 <= w < w_in:
                    out[i, w * cin:(w + 1) * cin,
                        wo * cout:(wo + 1) * cout] = w_np[:, :, i, j].T
    return jnp.asarray(out)


def _tiled_bias(bias, w_out):
    return jnp.asarray(np.tile(np.asarray(bias, np.float32), w_out)[None, :])


def prepare_params(params):
    """Pack PyTorch-layout conv params into kernel operands (called once)."""
    w1, b1 = params["conv1"]; w2, b2 = params["conv2"]
    w3, b3 = params["conv3"]; w4, b4 = params["conv4"]
    wm, bm = params["fc_mu"]; wl, bl = params["fc_logvar"]
    return {
        "alpha": jnp.asarray(params["alpha"], jnp.float32),          # (4,) SMEM
        "w1": _banded_row_weight(w1, 2, 2, 16, 8), "b1": _tiled_bias(b1, 8),
        "w2": _banded_row_weight(w2, 2, 2, 8, 4),  "b2": _tiled_bias(b2, 4),
        "w3": _banded_row_weight(w3, 1, 2, 4, 4),  "b3": _tiled_bias(b3, 4),
        "w4": _banded_row_weight(w4, 1, 2, 4, 4),  "b4": _tiled_bias(b4, 4),
        # fused head: output columns [mu (4*2) | logvar (4*2)]
        "wh": jnp.concatenate([_banded_row_weight(wm, 1, 2, 4, 4),
                               _banded_row_weight(wl, 1, 2, 4, 4)], axis=2),
        "bh": jnp.concatenate([_tiled_bias(bm, 4), _tiled_bias(bl, 4)], axis=1),
    }


# ---------------------------------------------------------------------------
# Parameter init (mimics kaiming_normal_(mode='fan_out') / conv defaults)
# ---------------------------------------------------------------------------
def _init_conv(key, cout, cin, k):
    kw, kb = jax.random.split(key)
    std = (2.0 / (cout * k * k)) ** 0.5           # kaiming_normal_, fan_out
    weight = std * jax.random.normal(kw, (cout, cin, k, k), jnp.float32)
    bound = 1.0 / (cin * k * k) ** 0.5            # PyTorch conv bias default
    bias = jax.random.uniform(kb, (cout,), jnp.float32, -bound, bound)
    return weight, bias


def init_encoder_params(key, c=1):
    assert c == 1, "kernel geometry is specialized for c=1"
    keys = jax.random.split(key, 6)
    return {
        "conv1": _init_conv(keys[0], 16, 3, 5),
        "conv2": _init_conv(keys[1], 32, 16, 5),
        "conv3": _init_conv(keys[2], 32, 32, 5),
        "conv4": _init_conv(keys[3], 32, 32, 5),
        "fc_mu": _init_conv(keys[4], 2 * c, 32, 5),
        "fc_logvar": _init_conv(keys[5], 2 * c, 32, 5),
        "alpha": jnp.full((4,), 0.25, jnp.float32),   # one nn.PReLU() per conv
    }


# ---------------------------------------------------------------------------
# Encoder forward (single pallas_call)
# ---------------------------------------------------------------------------
@jax.jit
def encoder_forward(prep, x, eps_key):
    """x: (N, 3, 16, 16) NCHW  ->  (z, mu, logvar), each (N, 2, 4, 4)."""
    n = x.shape[0]
    assert x.shape[1:] == (3, 16, 16)

    # conv1 vertical-tap gather of the (tiny) network input; output rows in
    # parity-grouped order so conv2's vertical stride-2 taps are contiguous.
    x_nhwc = jnp.transpose(x.astype(jnp.float32), (0, 2, 3, 1))   # (N,16,16,3)
    xp = jnp.pad(x_nhwc, ((0, 0), (2, 2), (0, 0), (0, 0)))        # (N,20,16,3)
    rows = 2 * _GROUPED_HO1[None, :] + np.arange(5, dtype=np.int32)[:, None]
    xt = xp[:, jnp.asarray(rows)].reshape(n, 5, 8, 48)            # (N,5,8,48)

    # eps ~ N(0,1) (torch.randn_like); kernel layout (n, ho, wo*2 + co)
    eps_nchw = jax.random.normal(eps_key, (n, 2, 4, 4), jnp.float32)
    eps = jnp.transpose(eps_nchw, (0, 2, 3, 1)).reshape(n, 4, 8)

    full = lambda shape: pl.BlockSpec(shape, lambda b: (0,) * len(shape))
    per_img = lambda shape: pl.BlockSpec(
        shape, lambda b: (b,) + (0,) * (len(shape) - 1))

    z, mu, logvar = pl.pallas_call(
        _encoder_kernel,
        out_shape=(jax.ShapeDtypeStruct((n, 4, 8), jnp.float32),) * 3,
        grid=(n,),
        in_specs=[
            pl.BlockSpec(memory_space=pltpu.MemorySpace.SMEM),    # alpha (4,)
            per_img((1, 5, 8, 48)),                               # conv1 taps
            full((5, 48, 128)), full((1, 128)),                   # conv1 W,b
            full((5, 128, 128)), full((1, 128)),                  # conv2 W,b
            full((5, 128, 128)), full((1, 128)),                  # conv3 W,b
            full((5, 128, 128)), full((1, 128)),                  # conv4 W,b
            full((5, 128, 16)), full((1, 16)),                    # fused heads
            per_img((1, 4, 8)),                                   # eps
        ],
        out_specs=(per_img((1, 4, 8)),) * 3,
        scratch_shapes=[
            pltpu.VMEM((8, 128), jnp.float32),   # y1 (conv1 output)
            pltpu.VMEM((4, 128), jnp.float32),   # y2/y3/y4
            pltpu.VMEM((4, 128), jnp.float32),   # conv accumulator
            pltpu.VMEM((4, 16), jnp.float32),    # head accumulator
        ],
        compiler_params=pltpu.CompilerParams(
            dimension_semantics=("parallel",)),
    )(prep["alpha"], xt, prep["w1"], prep["b1"], prep["w2"], prep["b2"],
      prep["w3"], prep["b3"], prep["w4"], prep["b4"], prep["wh"], prep["bh"],
      eps)

    def to_nchw(y):
        return jnp.transpose(y.reshape(n, 4, 4, 2), (0, 3, 1, 2))

    return to_nchw(z), to_nchw(mu), to_nchw(logvar)


# ---------------------------------------------------------------------------
# Pure-JAX reference (for a correctness smoke test)
# ---------------------------------------------------------------------------
def _reference_forward(params, x, eps_nchw):
    def conv(h, w, b, s):
        y = jax.lax.conv_general_dilated(
            h, w, window_strides=(s, s), padding=((2, 2), (2, 2)),
            dimension_numbers=("NCHW", "OIHW", "NCHW"))
        return y + b[None, :, None, None]

    def prelu(v, a):
        return jnp.where(v >= 0.0, v, a * v)

    a = params["alpha"]
    h = prelu(conv(x, *params["conv1"], 2), a[0])
    h = prelu(conv(h, *params["conv2"], 2), a[1])
    h = prelu(conv(h, *params["conv3"], 1), a[2])
    h = prelu(conv(h, *params["conv4"], 1), a[3])
    mu = conv(h, *params["fc_mu"], 1)
    logvar = conv(h, *params["fc_logvar"], 1)
    z = mu + eps_nchw * jnp.exp(0.5 * logvar)
    return z, mu, logvar


def _rel_err(a, b):
    return float(jnp.max(jnp.abs(a - b)) / (jnp.max(jnp.abs(b)) + 1e-6))


if __name__ == "__main__":
    key = jax.random.PRNGKey(0)
    k_param, k_input, k_eps = jax.random.split(key, 3)

    params = init_encoder_params(k_param, c=1)
    prep = prepare_params(params)                 # one-time weight packing
    x = jax.random.normal(k_input, (2, 3, 16, 16), jnp.float32)   # NCHW

    z, mu, logvar = encoder_forward(prep, x, k_eps)
    jax.block_until_ready((z, mu, logvar))

    assert z.shape == (2, 2, 4, 4) and mu.shape == (2, 2, 4, 4)
    assert logvar.shape == (2, 2, 4, 4)

    # correctness vs. pure-JAX reference (same eps draw used inside forward)
    eps_nchw = jax.random.normal(k_eps, (2, 2, 4, 4), jnp.float32)
    z_r, mu_r, lv_r = _reference_forward(params, x, eps_nchw)
    assert _rel_err(mu, mu_r) < 5e-2, "mu mismatch"
    assert _rel_err(logvar, lv_r) < 5e-2, "logvar mismatch"
    assert _rel_err(z, z_r) < 5e-2, "z mismatch"

    print("KERNEL_OK")
</pallas_src>

<mosaic_0001>
module attributes {stable_mosaic.version = 11 : i64} {
  func.func @_encoder_kernel(%arg0: i32, %arg1: memref<4xf32, #tpu.memory_space<smem>>, %arg2: memref<1x5x8x48xf32, #tpu.memory_space<vmem>>, %arg3: memref<5x48x128xf32, #tpu.memory_space<vmem>>, %arg4: memref<1x128xf32, #tpu.memory_space<vmem>>, %arg5: memref<5x128x128xf32, #tpu.memory_space<vmem>>, %arg6: memref<1x128xf32, #tpu.memory_space<vmem>>, %arg7: memref<5x128x128xf32, #tpu.memory_space<vmem>>, %arg8: memref<1x128xf32, #tpu.memory_space<vmem>>, %arg9: memref<5x128x128xf32, #tpu.memory_space<vmem>>, %arg10: memref<1x128xf32, #tpu.memory_space<vmem>>, %arg11: memref<5x128x16xf32, #tpu.memory_space<vmem>>, %arg12: memref<1x16xf32, #tpu.memory_space<vmem>>, %arg13: memref<1x4x8xf32, #tpu.memory_space<vmem>>, %arg14: memref<1x4x8xf32, #tpu.memory_space<vmem>>, %arg15: memref<1x4x8xf32, #tpu.memory_space<vmem>>, %arg16: memref<1x4x8xf32, #tpu.memory_space<vmem>>, %arg17: memref<8x128xf32, #tpu.memory_space<vmem>>, %arg18: memref<4x128xf32, #tpu.memory_space<vmem>>, %arg19: memref<4x128xf32, #tpu.memory_space<vmem>>, %arg20: memref<4x16xf32, #tpu.memory_space<vmem>>) attributes {dimension_semantics = [#tpu.dimension_semantics<parallel>], iteration_bounds = array<i64: 2>, scalar_prefetch = 0 : i64, scratch_operands = 4 : i64, tpu.core_type = #tpu.core_type<tc>, window_params = [{transform_indices = @transform_0, window_bounds = array<i64: 4>}, {transform_indices = @transform_1, window_bounds = array<i64: 1, 5, 8, 48>}, {pipeline_mode = #tpu.pipeline_mode<synchronous>, transform_indices = @transform_2, window_bounds = array<i64: 5, 48, 128>}, {pipeline_mode = #tpu.pipeline_mode<synchronous>, transform_indices = @transform_3, window_bounds = array<i64: 1, 128>}, {pipeline_mode = #tpu.pipeline_mode<synchronous>, transform_indices = @transform_4, window_bounds = array<i64: 5, 128, 128>}, {pipeline_mode = #tpu.pipeline_mode<synchronous>, transform_indices = @transform_5, window_bounds = array<i64: 1, 128>}, {pipeline_mode = #tpu.pipeline_mode<synchronous>, transform_indices = @transform_6, window_bounds = array<i64: 5, 128, 128>}, {pipeline_mode = #tpu.pipeline_mode<synchronous>, transform_indices = @transform_7, window_bounds = array<i64: 1, 128>}, {pipeline_mode = #tpu.pipeline_mode<synchronous>, transform_indices = @transform_8, window_bounds = array<i64: 5, 128, 128>}, {pipeline_mode = #tpu.pipeline_mode<synchronous>, transform_indices = @transform_9, window_bounds = array<i64: 1, 128>}, {pipeline_mode = #tpu.pipeline_mode<synchronous>, transform_indices = @transform_10, window_bounds = array<i64: 5, 128, 16>}, {pipeline_mode = #tpu.pipeline_mode<synchronous>, transform_indices = @transform_11, window_bounds = array<i64: 1, 16>}, {transform_indices = @transform_12, window_bounds = array<i64: 1, 4, 8>}, {transform_indices = @transform_13, window_bounds = array<i64: 1, 4, 8>}, {transform_indices = @transform_14, window_bounds = array<i64: 1, 4, 8>}, {transform_indices = @transform_15, window_bounds = array<i64: 1, 4, 8>}]} {
    %cst = arith.constant 0.000000e+00 : f32
    %0 = vector.broadcast %cst : f32 to vector<8x128xf32>
    %c0 = arith.constant 0 : index
    %c0_0 = arith.constant 0 : index
    %c0_1 = arith.constant 0 : index
    %c0_2 = arith.constant 0 : index
    %1 = vector.load %arg2[%c0, %c0_0, %c0_1, %c0_2] : memref<1x5x8x48xf32, #tpu.memory_space<vmem>>, vector<1x1x8x48xf32>
    %2 = vector.shape_cast %1 : vector<1x1x8x48xf32> to vector<8x48xf32>
    %c0_3 = arith.constant 0 : index
    %c0_4 = arith.constant 0 : index
    %c0_5 = arith.constant 0 : index
    %3 = vector.load %arg3[%c0_3, %c0_4, %c0_5] : memref<5x48x128xf32, #tpu.memory_space<vmem>>, vector<1x48x128xf32>
    %4 = vector.shape_cast %3 : vector<1x48x128xf32> to vector<48x128xf32>
    %cst_6 = arith.constant dense<0.000000e+00> : vector<8x128xf32>
    %5 = tpu.matmul %2, %4, %cst_6 {dimension_numbers = #tpu.dot_dimension_numbers<[1], [0], [0], [1], [0, 0, 1, 1], [], []>} : vector<8x48xf32>, vector<48x128xf32>, vector<8x128xf32> -> vector<8x128xf32>
    %6 = arith.addf %0, %5 : vector<8x128xf32>
    %c0_7 = arith.constant 0 : index
    %c1 = arith.constant 1 : index
    %c0_8 = arith.constant 0 : index
    %c0_9 = arith.constant 0 : index
    %7 = vector.load %arg2[%c0_7, %c1, %c0_8, %c0_9] : memref<1x5x8x48xf32, #tpu.memory_space<vmem>>, vector<1x1x8x48xf32>
    %8 = vector.shape_cast %7 : vector<1x1x8x48xf32> to vector<8x48xf32>
    %c1_10 = arith.constant 1 : index
    %c0_11 = arith.constant 0 : index
    %c0_12 = arith.constant 0 : index
    %9 = vector.load %arg3[%c1_10, %c0_11, %c0_12] : memref<5x48x128xf32, #tpu.memory_space<vmem>>, vector<1x48x128xf32>
    %10 = vector.shape_cast %9 : vector<1x48x128xf32> to vector<48x128xf32>
    %cst_13 = arith.constant dense<0.000000e+00> : vector<8x128xf32>
    %11 = tpu.matmul %8, %10, %cst_13 {dimension_numbers = #tpu.dot_dimension_numbers<[1], [0], [0], [1], [0, 0, 1, 1], [], []>} : vector<8x48xf32>, vector<48x128xf32>, vector<8x128xf32> -> vector<8x128xf32>
    %12 = arith.addf %6, %11 : vector<8x128xf32>
    %c0_14 = arith.constant 0 : index
    %c2 = arith.constant 2 : index
    %c0_15 = arith.constant 0 : index
    %c0_16 = arith.constant 0 : index
    %13 = vector.load %arg2[%c0_14, %c2, %c0_15, %c0_16] : memref<1x5x8x48xf32, #tpu.memory_space<vmem>>, vector<1x1x8x48xf32>
    %14 = vector.shape_cast %13 : vector<1x1x8x48xf32> to vector<8x48xf32>
    %c2_17 = arith.constant 2 : index
    %c0_18 = arith.constant 0 : index
    %c0_19 = arith.constant 0 : index
    %15 = vector.load %arg3[%c2_17, %c0_18, %c0_19] : memref<5x48x128xf32, #tpu.memory_space<vmem>>, vector<1x48x128xf32>
    %16 = vector.shape_cast %15 : vector<1x48x128xf32> to vector<48x128xf32>
    %cst_20 = arith.constant dense<0.000000e+00> : vector<8x128xf32>
    %17 = tpu.matmul %14, %16, %cst_20 {dimension_numbers = #tpu.dot_dimension_numbers<[1], [0], [0], [1], [0, 0, 1, 1], [], []>} : vector<8x48xf32>, vector<48x128xf32>, vector<8x128xf32> -> vector<8x128xf32>
    %18 = arith.addf %12, %17 : vector<8x128xf32>
    %c0_21 = arith.constant 0 : index
    %c3 = arith.constant 3 : index
    %c0_22 = arith.constant 0 : index
    %c0_23 = arith.constant 0 : index
    %19 = vector.load %arg2[%c0_21, %c3, %c0_22, %c0_23] : memref<1x5x8x48xf32, #tpu.memory_space<vmem>>, vector<1x1x8x48xf32>
    %20 = vector.shape_cast %19 : vector<1x1x8x48xf32> to vector<8x48xf32>
    %c3_24 = arith.constant 3 : index
    %c0_25 = arith.constant 0 : index
    %c0_26 = arith.constant 0 : index
    %21 = vector.load %arg3[%c3_24, %c0_25, %c0_26] : memref<5x48x128xf32, #tpu.memory_space<vmem>>, vector<1x48x128xf32>
    %22 = vector.shape_cast %21 : vector<1x48x128xf32> to vector<48x128xf32>
    %cst_27 = arith.constant dense<0.000000e+00> : vector<8x128xf32>
    %23 = tpu.matmul %20, %22, %cst_27 {dimension_numbers = #tpu.dot_dimension_numbers<[1], [0], [0], [1], [0, 0, 1, 1], [], []>} : vector<8x48xf32>, vector<48x128xf32>, vector<8x128xf32> -> vector<8x128xf32>
    %24 = arith.addf %18, %23 : vector<8x128xf32>
    %c0_28 = arith.constant 0 : index
    %c4 = arith.constant 4 : index
    %c0_29 = arith.constant 0 : index
    %c0_30 = arith.constant 0 : index
    %25 = vector.load %arg2[%c0_28, %c4, %c0_29, %c0_30] : memref<1x5x8x48xf32, #tpu.memory_space<vmem>>, vector<1x1x8x48xf32>
    %26 = vector.shape_cast %25 : vector<1x1x8x48xf32> to vector<8x48xf32>
    %c4_31 = arith.constant 4 : index
    %c0_32 = arith.constant 0 : index
    %c0_33 = arith.constant 0 : index
    %27 = vector.load %arg3[%c4_31, %c0_32, %c0_33] : memref<5x48x128xf32, #tpu.memory_space<vmem>>, vector<1x48x128xf32>
    %28 = vector.shape_cast %27 : vector<1x48x128xf32> to vector<48x128xf32>
    %cst_34 = arith.constant dense<0.000000e+00> : vector<8x128xf32>
    %29 = tpu.matmul %26, %28, %cst_34 {dimension_numbers = #tpu.dot_dimension_numbers<[1], [0], [0], [1], [0, 0, 1, 1], [], []>} : vector<8x48xf32>, vector<48x128xf32>, vector<8x128xf32> -> vector<8x128xf32>
    %30 = arith.addf %24, %29 : vector<8x128xf32>
    %c0_35 = arith.constant 0 : index
    %c0_36 = arith.constant 0 : index
    %31 = vector.load %arg4[%c0_35, %c0_36] : memref<1x128xf32, #tpu.memory_space<vmem>>, vector<1x128xf32>
    %32 = vector.broadcast %31 : vector<1x128xf32> to vector<8x128xf32>
    %33 = arith.addf %30, %32 : vector<8x128xf32>
    %c0_37 = arith.constant 0 : index
    %34 = memref.load %arg1[%c0_37] : memref<4xf32, #tpu.memory_space<smem>>
    %cst_38 = arith.constant 0.000000e+00 : f32
    %35 = vector.broadcast %cst_38 : f32 to vector<8x128xf32>
    %36 = arith.cmpf oge, %33, %35 : vector<8x128xf32>
    %37 = vector.broadcast %34 : f32 to vector<8x128xf32>
    %38 = arith.mulf %37, %33 : vector<8x128xf32>
    %39 = arith.select %36, %33, %38 : vector<8x128xi1>, vector<8x128xf32>
    %c0_39 = arith.constant 0 : index
    %c0_40 = arith.constant 0 : index
    %40 = vector.load %arg17[%c0_39, %c0_40] : memref<8x128xf32, #tpu.memory_space<vmem>>, vector<8x128xf32>
    tpu.vector_store %arg17[%c0_39, %c0_40], %39 {strides = array<i32>} : memref<8x128xf32, #tpu.memory_space<vmem>>, vector<8x128xf32>,
    %cst_41 = arith.constant 0.000000e+00 : f32
    %41 = vector.broadcast %cst_41 : f32 to vector<4x128xf32>
    %c0_42 = arith.constant 0 : index
    %c0_43 = arith.constant 0 : index
    %42 = vector.load %arg19[%c0_42, %c0_43] : memref<4x128xf32, #tpu.memory_space<vmem>>, vector<4x128xf32>
    tpu.vector_store %arg19[%c0_42, %c0_43], %41 {strides = array<i32>} : memref<4x128xf32, #tpu.memory_space<vmem>>, vector<4x128xf32>,
    %c1_44 = arith.constant 1 : index
    %c0_45 = arith.constant 0 : index
    %43 = vector.load %arg19[%c1_44, %c0_45] : memref<4x128xf32, #tpu.memory_space<vmem>>, vector<3x128xf32>
    %c0_46 = arith.constant 0 : index
    %c0_47 = arith.constant 0 : index
    %44 = vector.load %arg17[%c0_46, %c0_47] : memref<8x128xf32, #tpu.memory_space<vmem>>, vector<3x128xf32>
    %c0_48 = arith.constant 0 : index
    %c0_49 = arith.constant 0 : index
    %c0_50 = arith.constant 0 : index
    %45 = vector.load %arg5[%c0_48, %c0_49, %c0_50] : memref<5x128x128xf32, #tpu.memory_space<vmem>>, vector<1x128x128xf32>
    %46 = vector.shape_cast %45 : vector<1x128x128xf32> to vector<128x128xf32>
    %cst_51 = arith.constant dense<0.000000e+00> : vector<3x128xf32>
    %47 = tpu.matmul %44, %46, %cst_51 {dimension_numbers = #tpu.dot_dimension_numbers<[1], [0], [0], [1], [0, 0, 1, 1], [], []>} : vector<3x128xf32>, vector<128x128xf32>, vector<3x128xf32> -> vector<3x128xf32>
    %48 = arith.addf %43, %47 : vector<3x128xf32>
    %c1_52 = arith.constant 1 : index
    %c0_53 = arith.constant 0 : index
    %49 = vector.load %arg19[%c1_52, %c0_53] : memref<4x128xf32, #tpu.memory_space<vmem>>, vector<3x128xf32>
    tpu.vector_store %arg19[%c1_52, %c0_53], %48 {strides = array<i32>} : memref<4x128xf32, #tpu.memory_space<vmem>>, vector<3x128xf32>,
    %c1_54 = arith.constant 1 : index
    %c0_55 = arith.constant 0 : index
    %50 = vector.load %arg19[%c1_54, %c0_55] : memref<4x128xf32, #tpu.memory_space<vmem>>, vector<3x128xf32>
    %c4_56 = arith.constant 4 : index
    %c0_57 = arith.constant 0 : index
    %51 = vector.load %arg17[%c4_56, %c0_57] : memref<8x128xf32, #tpu.memory_space<vmem>>, vector<3x128xf32>
    %c1_58 = arith.constant 1 : index
    %c0_59 = arith.constant 0 : index
    %c0_60 = arith.constant 0 : index
    %52 = vector.load %arg5[%c1_58, %c0_59, %c0_60] : memref<5x128x128xf32, #tpu.memory_space<vmem>>, vector<1x128x128xf32>
    %53 = vector.shape_cast %52 : vector<1x128x128xf32> to vector<128x128xf32>
    %cst_61 = arith.constant dense<0.000000e+00> : vector<3x128xf32>
    %54 = tpu.matmul %51, %53, %cst_61 {dimension_numbers = #tpu.dot_dimension_numbers<[1], [0], [0], [1], [0, 0, 1, 1], [], []>} : vector<3x128xf32>, vector<128x128xf32>, vector<3x128xf32> -> vector<3x128xf32>
    %55 = arith.addf %50, %54 : vector<3x128xf32>
    %c1_62 = arith.constant 1 : index
    %c0_63 = arith.constant 0 : index
    %56 = vector.load %arg19[%c1_62, %c0_63] : memref<4x128xf32, #tpu.memory_space<vmem>>, vector<3x128xf32>
    tpu.vector_store %arg19[%c1_62, %c0_63], %55 {strides = array<i32>} : memref<4x128xf32, #tpu.memory_space<vmem>>, vector<3x128xf32>,
    %c0_64 = arith.constant 0 : index
    %c0_65 = arith.constant 0 : index
    %57 = vector.load %arg19[%c0_64, %c0_65] : memref<4x128xf32, #tpu.memory_space<vmem>>, vector<4x128xf32>
    %c0_66 = arith.constant 0 : index
    %c0_67 = arith.constant 0 : index
    %58 = vector.load %arg17[%c0_66, %c0_67] : memref<8x128xf32, #tpu.memory_space<vmem>>, vector<4x128xf32>
    %c2_68 = arith.constant 2 : index
    %c0_69 = arith.constant 0 : index
    %c0_70 = arith.constant 0 : index
    %59 = vector.load %arg5[%c2_68, %c0_69, %c0_70] : memref<5x128x128xf32, #tpu.memory_space<vmem>>, vector<1x128x128xf32>
    %60 = vector.shape_cast %59 : vector<1x128x128xf32> to vector<128x128xf32>
    %cst_71 = arith.constant dense<0.000000e+00> : vector<4x128xf32>
    %61 = tpu.matmul %58, %60, %cst_71 {dimension_numbers = #tpu.dot_dimension_numbers<[1], [0], [0], [1], [0, 0, 1, 1], [], []>} : vector<4x128xf32>, vector<128x128xf32>, vector<4x128xf32> -> vector<4x128xf32>
    %62 = arith.addf %57, %61 : vector<4x128xf32>
    %c0_72 = arith.constant 0 : index
    %c0_73 = arith.constant 0 : index
    %63 = vector.load %arg19[%c0_72, %c0_73] : memref<4x128xf32, #tpu.memory_space<vmem>>, vector<4x128xf32>
    tpu.vector_store %arg19[%c0_72, %c0_73], %62 {strides = array<i32>} : memref<4x128xf32, #tpu.memory_space<vmem>>, vector<4x128xf32>,
    %c0_74 = arith.constant 0 : index
    %c0_75 = arith.constant 0 : index
    %64 = vector.load %arg19[%c0_74, %c0_75] : memref<4x128xf32, #tpu.memory_space<vmem>>, vector<4x128xf32>
    %c4_76 = arith.constant 4 : index
    %c0_77 = arith.constant 0 : index
    %65 = vector.load %arg17[%c4_76, %c0_77] : memref<8x128xf32, #tpu.memory_space<vmem>>, vector<4x128xf32>
    %c3_78 = arith.constant 3 : index
    %c0_79 = arith.constant 0 : index
    %c0_80 = arith.constant 0 : index
    %66 = vector.load %arg5[%c3_78, %c0_79, %c0_80] : memref<5x128x128xf32, #tpu.memory_space<vmem>>, vector<1x128x128xf32>
    %67 = vector.shape_cast %66 : vector<1x128x128xf32> to vector<128x128xf32>
    %cst_81 = arith.constant dense<0.000000e+00> : vector<4x128xf32>
    %68 = tpu.matmul %65, %67, %cst_81 {dimension_numbers = #tpu.dot_dimension_numbers<[1], [0], [0], [1], [0, 0, 1, 1], [], []>} : vector<4x128xf32>, vector<128x128xf32>, vector<4x128xf32> -> vector<4x128xf32>
    %69 = arith.addf %64, %68 : vector<4x128xf32>
    %c0_82 = arith.constant 0 : index
    %c0_83 = arith.constant 0 : index
    %70 = vector.load %arg19[%c0_82, %c0_83] : memref<4x128xf32, #tpu.memory_space<vmem>>, vector<4x128xf32>
    tpu.vector_store %arg19[%c0_82, %c0_83], %69 {strides = array<i32>} : memref<4x128xf32, #tpu.memory_space<vmem>>, vector<4x128xf32>,
    %c0_84 = arith.constant 0 : index
    %c0_85 = arith.constant 0 : index
    %71 = vector.load %arg19[%c0_84, %c0_85] : memref<4x128xf32, #tpu.memory_space<vmem>>, vector<3x128xf32>
    %c1_86 = arith.constant 1 : index
    %c0_87 = arith.constant 0 : index
    %72 = vector.load %arg17[%c1_86, %c0_87] : memref<8x128xf32, #tpu.memory_space<vmem>>, vector<3x128xf32>
    %c4_88 = arith.constant 4 : index
    %c0_89 = arith.constant 0 : index
    %c0_90 = arith.constant 0 : index
    %73 = vector.load %arg5[%c4_88, %c0_89, %c0_90] : memref<5x128x128xf32, #tpu.memory_space<vmem>>, vector<1x128x128xf32>
    %74 = vector.shape_cast %73 : vector<1x128x128xf32> to vector<128x128xf32>
    %cst_91 = arith.constant dense<0.000000e+00> : vector<3x128xf32>
    %75 = tpu.matmul %72, %74, %cst_91 {dimension_numbers = #tpu.dot_dimension_numbers<[1], [0], [0], [1], [0, 0, 1, 1], [], []>} : vector<3x128xf32>, vector<128x128xf32>, vector<3x128xf32> -> vector<3x128xf32>
    %76 = arith.addf %71, %75 : vector<3x128xf32>
    %c0_92 = arith.constant 0 : index
    %c0_93 = arith.constant 0 : index
    %77 = vector.load %arg19[%c0_92, %c0_93] : memref<4x128xf32, #tpu.memory_space<vmem>>, vector<3x128xf32>
    tpu.vector_store %arg19[%c0_92, %c0_93], %76 {strides = array<i32>} : memref<4x128xf32, #tpu.memory_space<vmem>>, vector<3x128xf32>,
    %c0_94 = arith.constant 0 : index
    %c0_95 = arith.constant 0 : index
    %78 = vector.load %arg19[%c0_94, %c0_95] : memref<4x128xf32, #tpu.memory_space<vmem>>, vector<4x128xf32>
    %c0_96 = arith.constant 0 : index
    %c0_97 = arith.constant 0 : index
    %79 = vector.load %arg6[%c0_96, %c0_97] : memref<1x128xf32, #tpu.memory_space<vmem>>, vector<1x128xf32>
    %80 = vector.broadcast %79 : vector<1x128xf32> to vector<4x128xf32>
    %81 = arith.addf %78, %80 : vector<4x128xf32>
    %c1_98 = arith.constant 1 : index
    %82 = memref.load %arg1[%c1_98] : memref<4xf32, #tpu.memory_space<smem>>
    %cst_99 = arith.constant 0.000000e+00 : f32
    %83 = vector.broadcast %cst_99 : f32 to vector<4x128xf32>
    %84 = arith.cmpf oge, %81, %83 : vector<4x128xf32>
    %85 = vector.broadcast %82 : f32 to vector<4x128xf32>
    %86 = arith.mulf %85, %81 : vector<4x128xf32>
    %87 = arith.select %84, %81, %86 : vector<4x128xi1>, vector<4x128xf32>
    %c0_100 = arith.constant 0 : index
    %c0_101 = arith.constant 0 : index
    %88 = vector.load %arg18[%c0_100, %c0_101] : memref<4x128xf32, #tpu.memory_space<vmem>>, vector<4x128xf32>
    tpu.vector_store %arg18[%c0_100, %c0_101], %87 {strides = array<i32>} : memref<4x128xf32, #tpu.memory_space<vmem>>, vector<4x128xf32>,
    %cst_102 = arith.constant 0.000000e+00 : f32
    %89 = vector.broadcast %cst_102 : f32 to vector<4x128xf32>
    %c0_103 = arith.constant 0 : index
    %c0_104 = arith.constant 0 : index
    %90 = vector.load %arg19[%c0_103, %c0_104] : memref<4x128xf32, #tpu.memory_space<vmem>>, vector<4x128xf32>
    tpu.vector_store %arg19[%c0_103, %c0_104], %89 {strides = array<i32>} : memref<4x128xf32, #tpu.memory_space<vmem>>, vector<4x128xf32>,
    %c2_105 = arith.constant 2 : index
    %c0_106 = arith.constant 0 : index
    %91 = vector.load %arg19[%c2_105, %c0_106] : memref<4x128xf32, #tpu.memory_space<vmem>>, vector<2x128xf32>
    %c0_107 = arith.constant 0 : index
    %c0_108 = arith.constant 0 : index
    %92 = vector.load %arg18[%c0_107, %c0_108] : memref<4x128xf32, #tpu.memory_space<vmem>>, vector<2x128xf32>
    %c0_109 = arith.constant 0 : index
    %c0_110 = arith.constant 0 : index
    %c0_111 = arith.constant 0 : index
    %93 = vector.load %arg7[%c0_109, %c0_110, %c0_111] : memref<5x128x128xf32, #tpu.memory_space<vmem>>, vector<1x128x128xf32>
    %94 = vector.shape_cast %93 : vector<1x128x128xf32> to vector<128x128xf32>
    %cst_112 = arith.constant dense<0.000000e+00> : vector<2x128xf32>
    %95 = tpu.matmul %92, %94, %cst_112 {dimension_numbers = #tpu.dot_dimension_numbers<[1], [0], [0], [1], [0, 0, 1, 1], [], []>} : vector<2x128xf32>, vector<128x128xf32>, vector<2x128xf32> -> vector<2x128xf32>
    %96 = arith.addf %91, %95 : vector<2x128xf32>
    %c2_113 = arith.constant 2 : index
    %c0_114 = arith.constant 0 : index
    %97 = vector.load %arg19[%c2_113, %c0_114] : memref<4x128xf32, #tpu.memory_space<vmem>>, vector<2x128xf32>
    tpu.vector_store %arg19[%c2_113, %c0_114], %96 {strides = array<i32>} : memref<4x128xf32, #tpu.memory_space<vmem>>, vector<2x128xf32>,
    %c1_115 = arith.constant 1 : index
    %c0_116 = arith.constant 0 : index
    %98 = vector.load %arg19[%c1_115, %c0_116] : memref<4x128xf32, #tpu.memory_space<vmem>>, vector<3x128xf32>
    %c0_117 = arith.constant 0 : index
    %c0_118 = arith.constant 0 : index
    %99 = vector.load %arg18[%c0_117, %c0_118] : memref<4x128xf32, #tpu.memory_space<vmem>>, vector<3x128xf32>
    %c1_119 = arith.constant 1 : index
    %c0_120 = arith.constant 0 : index
    %c0_121 = arith.constant 0 : index
    %100 = vector.load %arg7[%c1_119, %c0_120, %c0_121] : memref<5x128x128xf32, #tpu.memory_space<vmem>>, vector<1x128x128xf32>
    %101 = vector.shape_cast %100 : vector<1x128x128xf32> to vector<128x128xf32>
    %cst_122 = arith.constant dense<0.000000e+00> : vector<3x128xf32>
    %102 = tpu.matmul %99, %101, %cst_122 {dimension_numbers = #tpu.dot_dimension_numbers<[1], [0], [0], [1], [0, 0, 1, 1], [], []>} : vector<3x128xf32>, vector<128x128xf32>, vector<3x128xf32> -> vector<3x128xf32>
    %103 = arith.addf %98, %102 : vector<3x128xf32>
    %c1_123 = arith.constant 1 : index
    %c0_124 = arith.constant 0 : index
    %104 = vector.load %arg19[%c1_123, %c0_124] : memref<4x128xf32, #tpu.memory_space<vmem>>, vector<3x128xf32>
    tpu.vector_store %arg19[%c1_123, %c0_124], %103 {strides = array<i32>} : memref<4x128xf32, #tpu.memory_space<vmem>>, vector<3x128xf32>,
    %c0_125 = arith.constant 0 : index
    %c0_126 = arith.constant 0 : index
    %105 = vector.load %arg19[%c0_125, %c0_126] : memref<4x128xf32, #tpu.memory_space<vmem>>, vector<4x128xf32>
    %c0_127 = arith.constant 0 : index
    %c0_128 = arith.constant 0 : index
    %106 = vector.load %arg18[%c0_127, %c0_128] : memref<4x128xf32, #tpu.memory_space<vmem>>, vector<4x128xf32>
    %c2_129 = arith.constant 2 : index
    %c0_130 = arith.constant 0 : index
    %c0_131 = arith.constant 0 : index
    %107 = vector.load %arg7[%c2_129, %c0_130, %c0_131] : memref<5x128x128xf32, #tpu.memory_space<vmem>>, vector<1x128x128xf32>
    %108 = vector.shape_cast %107 : vector<1x128x128xf32> to vector<128x128xf32>
    %cst_132 = arith.constant dense<0.000000e+00> : vector<4x128xf32>
    %109 = tpu.matmul %106, %108, %cst_132 {dimension_numbers = #tpu.dot_dimension_numbers<[1], [0], [0], [1], [0, 0, 1, 1], [], []>} : vector<4x128xf32>, vector<128x128xf32>, vector<4x128xf32> -> vector<4x128xf32>
    %110 = arith.addf %105, %109 : vector<4x128xf32>
    %c0_133 = arith.constant 0 : index
    %c0_134 = arith.constant 0 : index
    %111 = vector.load %arg19[%c0_133, %c0_134] : memref<4x128xf32, #tpu.memory_space<vmem>>, vector<4x128xf32>
    tpu.vector_store %arg19[%c0_133, %c0_134], %110 {strides = array<i32>} : memref<4x128xf32, #tpu.memory_space<vmem>>, vector<4x128xf32>,
    %c0_135 = arith.constant 0 : index
    %c0_136 = arith.constant 0 : index
    %112 = vector.load %arg19[%c0_135, %c0_136] : memref<4x128xf32, #tpu.memory_space<vmem>>, vector<3x128xf32>
    %c1_137 = arith.constant 1 : index
    %c0_138 = arith.constant 0 : index
    %113 = vector.load %arg18[%c1_137, %c0_138] : memref<4x128xf32, #tpu.memory_space<vmem>>, vector<3x128xf32>
    %c3_139 = arith.constant 3 : index
    %c0_140 = arith.constant 0 : index
    %c0_141 = arith.constant 0 : index
    %114 = vector.load %arg7[%c3_139, %c0_140, %c0_141] : memref<5x128x128xf32, #tpu.memory_space<vmem>>, vector<1x128x128xf32>
    %115 = vector.shape_cast %114 : vector<1x128x128xf32> to vector<128x128xf32>
    %cst_142 = arith.constant dense<0.000000e+00> : vector<3x128xf32>
    %116 = tpu.matmul %113, %115, %cst_142 {dimension_numbers = #tpu.dot_dimension_numbers<[1], [0], [0], [1], [0, 0, 1, 1], [], []>} : vector<3x128xf32>, vector<128x128xf32>, vector<3x128xf32> -> vector<3x128xf32>
    %117 = arith.addf %112, %116 : vector<3x128xf32>
    %c0_143 = arith.constant 0 : index
    %c0_144 = arith.constant 0 : index
    %118 = vector.load %arg19[%c0_143, %c0_144] : memref<4x128xf32, #tpu.memory_space<vmem>>, vector<3x128xf32>
    tpu.vector_store %arg19[%c0_143, %c0_144], %117 {strides = array<i32>} : memref<4x128xf32, #tpu.memory_space<vmem>>, vector<3x128xf32>,
    %c0_145 = arith.constant 0 : index
    %c0_146 = arith.constant 0 : index
    %119 = vector.load %arg19[%c0_145, %c0_146] : memref<4x128xf32, #tpu.memory_space<vmem>>, vector<2x128xf32>
    %c2_147 = arith.constant 2 : index
    %c0_148 = arith.constant 0 : index
    %120 = vector.load %arg18[%c2_147, %c0_148] : memref<4x128xf32, #tpu.memory_space<vmem>>, vector<2x128xf32>
    %c4_149 = arith.constant 4 : index
    %c0_150 = arith.constant 0 : index
    %c0_151 = arith.constant 0 : index
    %121 = vector.load %arg7[%c4_149, %c0_150, %c0_151] : memref<5x128x128xf32, #tpu.memory_space<vmem>>, vector<1x128x128xf32>
    %122 = vector.shape_cast %121 : vector<1x128x128xf32> to vector<128x128xf32>
    %cst_152 = arith.constant dense<0.000000e+00> : vector<2x128xf32>
    %123 = tpu.matmul %120, %122, %cst_152 {dimension_numbers = #tpu.dot_dimension_numbers<[1], [0], [0], [1], [0, 0, 1, 1], [], []>} : vector<2x128xf32>, vector<128x128xf32>, vector<2x128xf32> -> vector<2x128xf32>
    %124 = arith.addf %119, %123 : vector<2x128xf32>
    %c0_153 = arith.constant 0 : index
    %c0_154 = arith.constant 0 : index
    %125 = vector.load %arg19[%c0_153, %c0_154] : memref<4x128xf32, #tpu.memory_space<vmem>>, vector<2x128xf32>
    tpu.vector_store %arg19[%c0_153, %c0_154], %124 {strides = array<i32>} : memref<4x128xf32, #tpu.memory_space<vmem>>, vector<2x128xf32>,
    %c0_155 = arith.constant 0 : index
    %c0_156 = arith.constant 0 : index
    %126 = vector.load %arg19[%c0_155, %c0_156] : memref<4x128xf32, #tpu.memory_space<vmem>>, vector<4x128xf32>
    %c0_157 = arith.constant 0 : index
    %c0_158 = arith.constant 0 : index
    %127 = vector.load %arg8[%c0_157, %c0_158] : memref<1x128xf32, #tpu.memory_space<vmem>>, vector<1x128xf32>
    %128 = vector.broadcast %127 : vector<1x128xf32> to vector<4x128xf32>
    %129 = arith.addf %126, %128 : vector<4x128xf32>
    %c2_159 = arith.constant 2 : index
    %130 = memref.load %arg1[%c2_159] : memref<4xf32, #tpu.memory_space<smem>>
    %cst_160 = arith.constant 0.000000e+00 : f32
    %131 = vector.broadcast %cst_160 : f32 to vector<4x128xf32>
    %132 = arith.cmpf oge, %129, %131 : vector<4x128xf32>
    %133 = vector.broadcast %130 : f32 to vector<4x128xf32>
    %134 = arith.mulf %133, %129 : vector<4x128xf32>
    %135 = arith.select %132, %129, %134 : vector<4x128xi1>, vector<4x128xf32>
    %c0_161 = arith.constant 0 : index
    %c0_162 = arith.constant 0 : index
    %136 = vector.load %arg18[%c0_161, %c0_162] : memref<4x128xf32, #tpu.memory_space<vmem>>, vector<4x128xf32>
    tpu.vector_store %arg18[%c0_161, %c0_162], %135 {strides = array<i32>} : memref<4x128xf32, #tpu.memory_space<vmem>>, vector<4x128xf32>,
    %cst_163 = arith.constant 0.000000e+00 : f32
    %137 = vector.broadcast %cst_163 : f32 to vector<4x128xf32>
    %c0_164 = arith.constant 0 : index
    %c0_165 = arith.constant 0 : index
    %138 = vector.load %arg19[%c0_164, %c0_165] : memref<4x128xf32, #tpu.memory_space<vmem>>, vector<4x128xf32>
    tpu.vector_store %arg19[%c0_164, %c0_165], %137 {strides = array<i32>} : memref<4x128xf32, #tpu.memory_space<vmem>>, vector<4x128xf32>,
    %c2_166 = arith.constant 2 : index
    %c0_167 = arith.constant 0 : index
    %139 = vector.load %arg19[%c2_166, %c0_167] : memref<4x128xf32, #tpu.memory_space<vmem>>, vector<2x128xf32>
    %c0_168 = arith.constant 0 : index
    %c0_169 = arith.constant 0 : index
    %140 = vector.load %arg18[%c0_168, %c0_169] : memref<4x128xf32, #tpu.memory_space<vmem>>, vector<2x128xf32>
    %c0_170 = arith.constant 0 : index
    %c0_171 = arith.constant 0 : index
    %c0_172 = arith.constant 0 : index
    %141 = vector.load %arg9[%c0_170, %c0_171, %c0_172] : memref<5x128x128xf32, #tpu.memory_space<vmem>>, vector<1x128x128xf32>
    %142 = vector.shape_cast %141 : vector<1x128x128xf32> to vector<128x128xf32>
    %cst_173 = arith.constant dense<0.000000e+00> : vector<2x128xf32>
    %143 = tpu.matmul %140, %142, %cst_173 {dimension_numbers = #tpu.dot_dimension_numbers<[1], [0], [0], [1], [0, 0, 1, 1], [], []>} : vector<2x128xf32>, vector<128x128xf32>, vector<2x128xf32> -> vector<2x128xf32>
    %144 = arith.addf %139, %143 : vector<2x128xf32>
    %c2_174 = arith.constant 2 : index
    %c0_175 = arith.constant 0 : index
    %145 = vector.load %arg19[%c2_174, %c0_175] : memref<4x128xf32, #tpu.memory_space<vmem>>, vector<2x128xf32>
    tpu.vector_store %arg19[%c2_174, %c0_175], %144 {strides = array<i32>} : memref<4x128xf32, #tpu.memory_space<vmem>>, vector<2x128xf32>,
    %c1_176 = arith.constant 1 : index
    %c0_177 = arith.constant 0 : index
    %146 = vector.load %arg19[%c1_176, %c0_177] : memref<4x128xf32, #tpu.memory_space<vmem>>, vector<3x128xf32>
    %c0_178 = arith.constant 0 : index
    %c0_179 = arith.constant 0 : index
    %147 = vector.load %arg18[%c0_178, %c0_179] : memref<4x128xf32, #tpu.memory_space<vmem>>, vector<3x128xf32>
    %c1_180 = arith.constant 1 : index
    %c0_181 = arith.constant 0 : index
    %c0_182 = arith.constant 0 : index
    %148 = vector.load %arg9[%c1_180, %c0_181, %c0_182] : memref<5x128x128xf32, #tpu.memory_space<vmem>>, vector<1x128x128xf32>
    %149 = vector.shape_cast %148 : vector<1x128x128xf32> to vector<128x128xf32>
    %cst_183 = arith.constant dense<0.000000e+00> : vector<3x128xf32>
    %150 = tpu.matmul %147, %149, %cst_183 {dimension_numbers = #tpu.dot_dimension_numbers<[1], [0], [0], [1], [0, 0, 1, 1], [], []>} : vector<3x128xf32>, vector<128x128xf32>, vector<3x128xf32> -> vector<3x128xf32>
    %151 = arith.addf %146, %150 : vector<3x128xf32>
    %c1_184 = arith.constant 1 : index
    %c0_185 = arith.constant 0 : index
    %152 = vector.load %arg19[%c1_184, %c0_185] : memref<4x128xf32, #tpu.memory_space<vmem>>, vector<3x128xf32>
    tpu.vector_store %arg19[%c1_184, %c0_185], %151 {strides = array<i32>} : memref<4x128xf32, #tpu.memory_space<vmem>>, vector<3x128xf32>,
    %c0_186 = arith.constant 0 : index
    %c0_187 = arith.constant 0 : index
    %153 = vector.load %arg19[%c0_186, %c0_187] : memref<4x128xf32, #tpu.memory_space<vmem>>, vector<4x128xf32>
    %c0_188 = arith.constant 0 : index
    %c0_189 = arith.constant 0 : index
    %154 = vector.load %arg18[%c0_188, %c0_189] : memref<4x128xf32, #tpu.memory_space<vmem>>, vector<4x128xf32>
    %c2_190 = arith.constant 2 : index
    %c0_191 = arith.constant 0 : index
    %c0_192 = arith.constant 0 : index
    %155 = vector.load %arg9[%c2_190, %c0_191, %c0_192] : memref<5x128x128xf32, #tpu.memory_space<vmem>>, vector<1x128x128xf32>
    %156 = vector.shape_cast %155 : vector<1x128x128xf32> to vector<128x128xf32>
    %cst_193 = arith.constant dense<0.000000e+00> : vector<4x128xf32>
    %157 = tpu.matmul %154, %156, %cst_193 {dimension_numbers = #tpu.dot_dimension_numbers<[1], [0], [0], [1], [0, 0, 1, 1], [], []>} : vector<4x128xf32>, vector<128x128xf32>, vector<4x128xf32> -> vector<4x128xf32>
    %158 = arith.addf %153, %157 : vector<4x128xf32>
    %c0_194 = arith.constant 0 : index
    %c0_195 = arith.constant 0 : index
    %159 = vector.load %arg19[%c0_194, %c0_195] : memref<4x128xf32, #tpu.memory_space<vmem>>, vector<4x128xf32>
    tpu.vector_store %arg19[%c0_194, %c0_195], %158 {strides = array<i32>} : memref<4x128xf32, #tpu.memory_space<vmem>>, vector<4x128xf32>,
    %c0_196 = arith.constant 0 : index
    %c0_197 = arith.constant 0 : index
    %160 = vector.load %arg19[%c0_196, %c0_197] : memref<4x128xf32, #tpu.memory_space<vmem>>, vector<3x128xf32>
    %c1_198 = arith.constant 1 : index
    %c0_199 = arith.constant 0 : index
    %161 = vector.load %arg18[%c1_198, %c0_199] : memref<4x128xf32, #tpu.memory_space<vmem>>, vector<3x128xf32>
    %c3_200 = arith.constant 3 : index
    %c0_201 = arith.constant 0 : index
    %c0_202 = arith.constant 0 : index
    %162 = vector.load %arg9[%c3_200, %c0_201, %c0_202] : memref<5x128x128xf32, #tpu.memory_space<vmem>>, vector<1x128x128xf32>
    %163 = vector.shape_cast %162 : vector<1x128x128xf32> to vector<128x128xf32>
    %cst_203 = arith.constant dense<0.000000e+00> : vector<3x128xf32>
    %164 = tpu.matmul %161, %163, %cst_203 {dimension_numbers = #tpu.dot_dimension_numbers<[1], [0], [0], [1], [0, 0, 1, 1], [], []>} : vector<3x128xf32>, vector<128x128xf32>, vector<3x128xf32> -> vector<3x128xf32>
    %165 = arith.addf %160, %164 : vector<3x128xf32>
    %c0_204 = arith.constant 0 : index
    %c0_205 = arith.constant 0 : index
    %166 = vector.load %arg19[%c0_204, %c0_205] : memref<4x128xf32, #tpu.memory_space<vmem>>, vector<3x128xf32>
    tpu.vector_store %arg19[%c0_204, %c0_205], %165 {strides = array<i32>} : memref<4x128xf32, #tpu.memory_space<vmem>>, vector<3x128xf32>,
    %c0_206 = arith.constant 0 : index
    %c0_207 = arith.constant 0 : index
    %167 = vector.load %arg19[%c0_206, %c0_207] : memref<4x128xf32, #tpu.memory_space<vmem>>, vector<2x128xf32>
    %c2_208 = arith.constant 2 : index
    %c0_209 = arith.constant 0 : index
    %168 = vector.load %arg18[%c2_208, %c0_209] : memref<4x128xf32, #tpu.memory_space<vmem>>, vector<2x128xf32>
    %c4_210 = arith.constant 4 : index
    %c0_211 = arith.constant 0 : index
    %c0_212 = arith.constant 0 : index
    %169 = vector.load %arg9[%c4_210, %c0_211, %c0_212] : memref<5x128x128xf32, #tpu.memory_space<vmem>>, vector<1x128x128xf32>
    %170 = vector.shape_cast %169 : vector<1x128x128xf32> to vector<128x128xf32>
    %cst_213 = arith.constant dense<0.000000e+00> : vector<2x128xf32>
    %171 = tpu.matmul %168, %170, %cst_213 {dimension_numbers = #tpu.dot_dimension_numbers<[1], [0], [0], [1], [0, 0, 1, 1], [], []>} : vector<2x128xf32>, vector<128x128xf32>, vector<2x128xf32> -> vector<2x128xf32>
    %172 = arith.addf %167, %171 : vector<2x128xf32>
    %c0_214 = arith.constant 0 : index
    %c0_215 = arith.constant 0 : index
    %173 = vector.load %arg19[%c0_214, %c0_215] : memref<4x128xf32, #tpu.memory_space<vmem>>, vector<2x128xf32>
    tpu.vector_store %arg19[%c0_214, %c0_215], %172 {strides = array<i32>} : memref<4x128xf32, #tpu.memory_space<vmem>>, vector<2x128xf32>,
    %c0_216 = arith.constant 0 : index
    %c0_217 = arith.constant 0 : index
    %174 = vector.load %arg19[%c0_216, %c0_217] : memref<4x128xf32, #tpu.memory_space<vmem>>, vector<4x128xf32>
    %c0_218 = arith.constant 0 : index
    %c0_219 = arith.constant 0 : index
    %175 = vector.load %arg10[%c0_218, %c0_219] : memref<1x128xf32, #tpu.memory_space<vmem>>, vector<1x128xf32>
    %176 = vector.broadcast %175 : vector<1x128xf32> to vector<4x128xf32>
    %177 = arith.addf %174, %176 : vector<4x128xf32>
    %c3_220 = arith.constant 3 : index
    %178 = memref.load %arg1[%c3_220] : memref<4xf32, #tpu.memory_space<smem>>
    %cst_221 = arith.constant 0.000000e+00 : f32
    %179 = vector.broadcast %cst_221 : f32 to vector<4x128xf32>
    %180 = arith.cmpf oge, %177, %179 : vector<4x128xf32>
    %181 = vector.broadcast %178 : f32 to vector<4x128xf32>
    %182 = arith.mulf %181, %177 : vector<4x128xf32>
    %183 = arith.select %180, %177, %182 : vector<4x128xi1>, vector<4x128xf32>
    %c0_222 = arith.constant 0 : index
    %c0_223 = arith.constant 0 : index
    %184 = vector.load %arg18[%c0_222, %c0_223] : memref<4x128xf32, #tpu.memory_space<vmem>>, vector<4x128xf32>
    tpu.vector_store %arg18[%c0_222, %c0_223], %183 {strides = array<i32>} : memref<4x128xf32, #tpu.memory_space<vmem>>, vector<4x128xf32>,
    %cst_224 = arith.constant 0.000000e+00 : f32
    %185 = vector.broadcast %cst_224 : f32 to vector<4x16xf32>
    %c0_225 = arith.constant 0 : index
    %c0_226 = arith.constant 0 : index
    %186 = vector.load %arg20[%c0_225, %c0_226] : memref<4x16xf32, #tpu.memory_space<vmem>>, vector<4x16xf32>
    tpu.vector_store %arg20[%c0_225, %c0_226], %185 {strides = array<i32>} : memref<4x16xf32, #tpu.memory_space<vmem>>, vector<4x16xf32>,
    %c2_227 = arith.constant 2 : index
    %c0_228 = arith.constant 0 : index
    %187 = vector.load %arg20[%c2_227, %c0_228] : memref<4x16xf32, #tpu.memory_space<vmem>>, vector<2x16xf32>
    %c0_229 = arith.constant 0 : index
    %c0_230 = arith.constant 0 : index
    %188 = vector.load %arg18[%c0_229, %c0_230] : memref<4x128xf32, #tpu.memory_space<vmem>>, vector<2x128xf32>
    %c0_231 = arith.constant 0 : index
    %c0_232 = arith.constant 0 : index
    %c0_233 = arith.constant 0 : index
    %189 = vector.load %arg11[%c0_231, %c0_232, %c0_233] : memref<5x128x16xf32, #tpu.memory_space<vmem>>, vector<1x128x16xf32>
    %190 = vector.shape_cast %189 : vector<1x128x16xf32> to vector<128x16xf32>
    %cst_234 = arith.constant dense<0.000000e+00> : vector<2x16xf32>
    %191 = tpu.matmul %188, %190, %cst_234 {dimension_numbers = #tpu.dot_dimension_numbers<[1], [0], [0], [1], [0, 0, 1, 1], [], []>} : vector<2x128xf32>, vector<128x16xf32>, vector<2x16xf32> -> vector<2x16xf32>
    %192 = arith.addf %187, %191 : vector<2x16xf32>
    %c2_235 = arith.constant 2 : index
    %c0_236 = arith.constant 0 : index
    %193 = vector.load %arg20[%c2_235, %c0_236] : memref<4x16xf32, #tpu.memory_space<vmem>>, vector<2x16xf32>
    tpu.vector_store %arg20[%c2_235, %c0_236], %192 {strides = array<i32>} : memref<4x16xf32, #tpu.memory_space<vmem>>, vector<2x16xf32>,
    %c1_237 = arith.constant 1 : index
    %c0_238 = arith.constant 0 : index
    %194 = vector.load %arg20[%c1_237, %c0_238] : memref<4x16xf32, #tpu.memory_space<vmem>>, vector<3x16xf32>
    %c0_239 = arith.constant 0 : index
    %c0_240 = arith.constant 0 : index
    %195 = vector.load %arg18[%c0_239, %c0_240] : memref<4x128xf32, #tpu.memory_space<vmem>>, vector<3x128xf32>
    %c1_241 = arith.constant 1 : index
    %c0_242 = arith.constant 0 : index
    %c0_243 = arith.constant 0 : index
    %196 = vector.load %arg11[%c1_241, %c0_242, %c0_243] : memref<5x128x16xf32, #tpu.memory_space<vmem>>, vector<1x128x16xf32>
    %197 = vector.shape_cast %196 : vector<1x128x16xf32> to vector<128x16xf32>
    %cst_244 = arith.constant dense<0.000000e+00> : vector<3x16xf32>
    %198 = tpu.matmul %195, %197, %cst_244 {dimension_numbers = #tpu.dot_dimension_numbers<[1], [0], [0], [1], [0, 0, 1, 1], [], []>} : vector<3x128xf32>, vector<128x16xf32>, vector<3x16xf32> -> vector<3x16xf32>
    %199 = arith.addf %194, %198 : vector<3x16xf32>
    %c1_245 = arith.constant 1 : index
    %c0_246 = arith.constant 0 : index
    %200 = vector.load %arg20[%c1_245, %c0_246] : memref<4x16xf32, #tpu.memory_space<vmem>>, vector<3x16xf32>
    tpu.vector_store %arg20[%c1_245, %c0_246], %199 {strides = array<i32>} : memref<4x16xf32, #tpu.memory_space<vmem>>, vector<3x16xf32>,
    %c0_247 = arith.constant 0 : index
    %c0_248 = arith.constant 0 : index
    %201 = vector.load %arg20[%c0_247, %c0_248] : memref<4x16xf32, #tpu.memory_space<vmem>>, vector<4x16xf32>
    %c0_249 = arith.constant 0 : index
    %c0_250 = arith.constant 0 : index
    %202 = vector.load %arg18[%c0_249, %c0_250] : memref<4x128xf32, #tpu.memory_space<vmem>>, vector<4x128xf32>
    %c2_251 = arith.constant 2 : index
    %c0_252 = arith.constant 0 : index
    %c0_253 = arith.constant 0 : index
    %203 = vector.load %arg11[%c2_251, %c0_252, %c0_253] : memref<5x128x16xf32, #tpu.memory_space<vmem>>, vector<1x128x16xf32>
    %204 = vector.shape_cast %203 : vector<1x128x16xf32> to vector<128x16xf32>
    %cst_254 = arith.constant dense<0.000000e+00> : vector<4x16xf32>
    %205 = tpu.matmul %202, %204, %cst_254 {dimension_numbers = #tpu.dot_dimension_numbers<[1], [0], [0], [1], [0, 0, 1, 1], [], []>} : vector<4x128xf32>, vector<128x16xf32>, vector<4x16xf32> -> vector<4x16xf32>
    %206 = arith.addf %201, %205 : vector<4x16xf32>
    %c0_255 = arith.constant 0 : index
    %c0_256 = arith.constant 0 : index
    %207 = vector.load %arg20[%c0_255, %c0_256] : memref<4x16xf32, #tpu.memory_space<vmem>>, vector<4x16xf32>
    tpu.vector_store %arg20[%c0_255, %c0_256], %206 {strides = array<i32>} : memref<4x16xf32, #tpu.memory_space<vmem>>, vector<4x16xf32>,
    %c0_257 = arith.constant 0 : index
    %c0_258 = arith.constant 0 : index
    %208 = vector.load %arg20[%c0_257, %c0_258] : memref<4x16xf32, #tpu.memory_space<vmem>>, vector<3x16xf32>
    %c1_259 = arith.constant 1 : index
    %c0_260 = arith.constant 0 : index
    %209 = vector.load %arg18[%c1_259, %c0_260] : memref<4x128xf32, #tpu.memory_space<vmem>>, vector<3x128xf32>
    %c3_261 = arith.constant 3 : index
    %c0_262 = arith.constant 0 : index
    %c0_263 = arith.constant 0 : index
    %210 = vector.load %arg11[%c3_261, %c0_262, %c0_263] : memref<5x128x16xf32, #tpu.memory_space<vmem>>, vector<1x128x16xf32>
    %211 = vector.shape_cast %210 : vector<1x128x16xf32> to vector<128x16xf32>
    %cst_264 = arith.constant dense<0.000000e+00> : vector<3x16xf32>
    %212 = tpu.matmul %209, %211, %cst_264 {dimension_numbers = #tpu.dot_dimension_numbers<[1], [0], [0], [1], [0, 0, 1, 1], [], []>} : vector<3x128xf32>, vector<128x16xf32>, vector<3x16xf32> -> vector<3x16xf32>
    %213 = arith.addf %208, %212 : vector<3x16xf32>
    %c0_265 = arith.constant 0 : index
    %c0_266 = arith.constant 0 : index
    %214 = vector.load %arg20[%c0_265, %c0_266] : memref<4x16xf32, #tpu.memory_space<vmem>>, vector<3x16xf32>
    tpu.vector_store %arg20[%c0_265, %c0_266], %213 {strides = array<i32>} : memref<4x16xf32, #tpu.memory_space<vmem>>, vector<3x16xf32>,
    %c0_267 = arith.constant 0 : index
    %c0_268 = arith.constant 0 : index
    %215 = vector.load %arg20[%c0_267, %c0_268] : memref<4x16xf32, #tpu.memory_space<vmem>>, vector<2x16xf32>
    %c2_269 = arith.constant 2 : index
    %c0_270 = arith.constant 0 : index
    %216 = vector.load %arg18[%c2_269, %c0_270] : memref<4x128xf32, #tpu.memory_space<vmem>>, vector<2x128xf32>
    %c4_271 = arith.constant 4 : index
    %c0_272 = arith.constant 0 : index
    %c0_273 = arith.constant 0 : index
    %217 = vector.load %arg11[%c4_271, %c0_272, %c0_273] : memref<5x128x16xf32, #tpu.memory_space<vmem>>, vector<1x128x16xf32>
    %218 = vector.shape_cast %217 : vector<1x128x16xf32> to vector<128x16xf32>
    %cst_274 = arith.constant dense<0.000000e+00> : vector<2x16xf32>
    %219 = tpu.matmul %216, %218, %cst_274 {dimension_numbers = #tpu.dot_dimension_numbers<[1], [0], [0], [1], [0, 0, 1, 1], [], []>} : vector<2x128xf32>, vector<128x16xf32>, vector<2x16xf32> -> vector<2x16xf32>
    %220 = arith.addf %215, %219 : vector<2x16xf32>
    %c0_275 = arith.constant 0 : index
    %c0_276 = arith.constant 0 : index
    %221 = vector.load %arg20[%c0_275, %c0_276] : memref<4x16xf32, #tpu.memory_space<vmem>>, vector<2x16xf32>
    tpu.vector_store %arg20[%c0_275, %c0_276], %220 {strides = array<i32>} : memref<4x16xf32, #tpu.memory_space<vmem>>, vector<2x16xf32>,
    %c0_277 = arith.constant 0 : index
    %c0_278 = arith.constant 0 : index
    %222 = vector.load %arg20[%c0_277, %c0_278] : memref<4x16xf32, #tpu.memory_space<vmem>>, vector<4x16xf32>
    %c0_279 = arith.constant 0 : index
    %c0_280 = arith.constant 0 : index
    %223 = vector.load %arg12[%c0_279, %c0_280] : memref<1x16xf32, #tpu.memory_space<vmem>>, vector<1x16xf32>
    %224 = vector.broadcast %223 : vector<1x16xf32> to vector<4x16xf32>
    %225 = arith.addf %222, %224 : vector<4x16xf32>
    %226 = vector.extract_strided_slice %225 {offsets = [0, 0], sizes = [4, 8], strides = [1, 1]} : vector<4x16xf32> to vector<4x8xf32>
    %227 = vector.extract_strided_slice %225 {offsets = [0, 8], sizes = [4, 8], strides = [1, 1]} : vector<4x16xf32> to vector<4x8xf32>
    %c0_281 = arith.constant 0 : index
    %c0_282 = arith.constant 0 : index
    %c0_283 = arith.constant 0 : index
    %228 = vector.load %arg13[%c0_281, %c0_282, %c0_283] : memref<1x4x8xf32, #tpu.memory_space<vmem>>, vector<1x4x8xf32>
    %229 = vector.shape_cast %228 : vector<1x4x8xf32> to vector<4x8xf32>
    %cst_284 = arith.constant 5.000000e-01 : f32
    %230 = vector.broadcast %cst_284 : f32 to vector<4x8xf32>
    %231 = arith.mulf %230, %227 : vector<4x8xf32>
    %232 = math.exp %231 : vector<4x8xf32>
    %233 = arith.mulf %229, %232 : vector<4x8xf32>
    %234 = arith.addf %226, %233 : vector<4x8xf32>
    %c0_285 = arith.constant 0 : index
    %c0_286 = arith.constant 0 : index
    %c0_287 = arith.constant 0 : index
    %235 = vector.load %arg14[%c0_285, %c0_286, %c0_287] : memref<1x4x8xf32, #tpu.memory_space<vmem>>, vector<1x4x8xf32>
    %236 = vector.shape_cast %235 : vector<1x4x8xf32> to vector<4x8xf32>
    %237 = vector.shape_cast %234 : vector<4x8xf32> to vector<1x4x8xf32>
    tpu.vector_store %arg14[%c0_285, %c0_286, %c0_287], %237 {strides = array<i32>} : memref<1x4x8xf32, #tpu.memory_space<vmem>>, vector<1x4x8xf32>,
    %c0_288 = arith.constant 0 : index
    %c0_289 = arith.constant 0 : index
    %c0_290 = arith.constant 0 : index
    %238 = vector.load %arg15[%c0_288, %c0_289, %c0_290] : memref<1x4x8xf32, #tpu.memory_space<vmem>>, vector<1x4x8xf32>
    %239 = vector.shape_cast %238 : vector<1x4x8xf32> to vector<4x8xf32>
    %240 = vector.shape_cast %226 : vector<4x8xf32> to vector<1x4x8xf32>
    tpu.vector_store %arg15[%c0_288, %c0_289, %c0_290], %240 {strides = array<i32>} : memref<1x4x8xf32, #tpu.memory_space<vmem>>, vector<1x4x8xf32>,
    %c0_291 = arith.constant 0 : index
    %c0_292 = arith.constant 0 : index
    %c0_293 = arith.constant 0 : index
    %241 = vector.load %arg16[%c0_291, %c0_292, %c0_293] : memref<1x4x8xf32, #tpu.memory_space<vmem>>, vector<1x4x8xf32>
    %242 = vector.shape_cast %241 : vector<1x4x8xf32> to vector<4x8xf32>
    %243 = vector.shape_cast %227 : vector<4x8xf32> to vector<1x4x8xf32>
    tpu.vector_store %arg16[%c0_291, %c0_292, %c0_293], %243 {strides = array<i32>} : memref<1x4x8xf32, #tpu.memory_space<vmem>>, vector<1x4x8xf32>,
    return
  }
  func.func @transform_0(%arg0: i32) -> i32 {
    %c0_i32 = arith.constant 0 : i32
    %c0_i32_0 = arith.constant 0 : i32
    return %c0_i32 : i32
  }
  func.func @transform_1(%arg0: i32) -> (i32, i32, i32, i32) {
    %c0_i32 = arith.constant 0 : i32
    %c0_i32_0 = arith.constant 0 : i32
    %c0_i32_1 = arith.constant 0 : i32
    %c0_i32_2 = arith.constant 0 : i32
    return %arg0, %c0_i32, %c0_i32_0, %c0_i32_1 : i32, i32, i32, i32
  }
  func.func @transform_2(%arg0: i32) -> (i32, i32, i32) {
    %c0_i32 = arith.constant 0 : i32
    %c0_i32_0 = arith.constant 0 : i32
    %c0_i32_1 = arith.constant 0 : i32
    %c0_i32_2 = arith.constant 0 : i32
    return %c0_i32, %c0_i32_0, %c0_i32_1 : i32, i32, i32
  }
  func.func @transform_3(%arg0: i32) -> (i32, i32) {
    %c0_i32 = arith.constant 0 : i32
    %c0_i32_0 = arith.constant 0 : i32
    %c0_i32_1 = arith.constant 0 : i32
    return %c0_i32, %c0_i32_0 : i32, i32
  }
  func.func @transform_4(%arg0: i32) -> (i32, i32, i32) {
    %c0_i32 = arith.constant 0 : i32
    %c0_i32_0 = arith.constant 0 : i32
    %c0_i32_1 = arith.constant 0 : i32
    %c0_i32_2 = arith.constant 0 : i32
    return %c0_i32, %c0_i32_0, %c0_i32_1 : i32, i32, i32
  }
  func.func @transform_5(%arg0: i32) -> (i32, i32) {
    %c0_i32 = arith.constant 0 : i32
    %c0_i32_0 = arith.constant 0 : i32
    %c0_i32_1 = arith.constant 0 : i32
    return %c0_i32, %c0_i32_0 : i32, i32
  }
  func.func @transform_6(%arg0: i32) -> (i32, i32, i32) {
    %c0_i32 = arith.constant 0 : i32
    %c0_i32_0 = arith.constant 0 : i32
    %c0_i32_1 = arith.constant 0 : i32
    %c0_i32_2 = arith.constant 0 : i32
    return %c0_i32, %c0_i32_0, %c0_i32_1 : i32, i32, i32
  }
  func.func @transform_7(%arg0: i32) -> (i32, i32) {
    %c0_i32 = arith.constant 0 : i32
    %c0_i32_0 = arith.constant 0 : i32
    %c0_i32_1 = arith.constant 0 : i32
    return %c0_i32, %c0_i32_0 : i32, i32
  }
  func.func @transform_8(%arg0: i32) -> (i32, i32, i32) {
    %c0_i32 = arith.constant 0 : i32
    %c0_i32_0 = arith.constant 0 : i32
    %c0_i32_1 = arith.constant 0 : i32
    %c0_i32_2 = arith.constant 0 : i32
    return %c0_i32, %c0_i32_0, %c0_i32_1 : i32, i32, i32
  }
  func.func @transform_9(%arg0: i32) -> (i32, i32) {
    %c0_i32 = arith.constant 0 : i32
    %c0_i32_0 = arith.constant 0 : i32
    %c0_i32_1 = arith.constant 0 : i32
    return %c0_i32, %c0_i32_0 : i32, i32
  }
  func.func @transform_10(%arg0: i32) -> (i32, i32, i32) {
    %c0_i32 = arith.constant 0 : i32
    %c0_i32_0 = arith.constant 0 : i32
    %c0_i32_1 = arith.constant 0 : i32
    %c0_i32_2 = arith.constant 0 : i32
    return %c0_i32, %c0_i32_0, %c0_i32_1 : i32, i32, i32
  }
  func.func @transform_11(%arg0: i32) -> (i32, i32) {
    %c0_i32 = arith.constant 0 : i32
    %c0_i32_0 = arith.constant 0 : i32
    %c0_i32_1 = arith.constant 0 : i32
    return %c0_i32, %c0_i32_0 : i32, i32
  }
  func.func @transform_12(%arg0: i32) -> (i32, i32, i32) {
    %c0_i32 = arith.constant 0 : i32
    %c0_i32_0 = arith.constant 0 : i32
    %c0_i32_1 = arith.constant 0 : i32
    return %arg0, %c0_i32, %c0_i32_0 : i32, i32, i32
  }
  func.func @transform_13(%arg0: i32) -> (i32, i32, i32) {
    %c0_i32 = arith.constant 0 : i32
    %c0_i32_0 = arith.constant 0 : i32
    %c0_i32_1 = arith.constant 0 : i32
    return %arg0, %c0_i32, %c0_i32_0 : i32, i32, i32
  }
  func.func @transform_14(%arg0: i32) -> (i32, i32, i32) {
    %c0_i32 = arith.constant 0 : i32
    %c0_i32_0 = arith.constant 0 : i32
    %c0_i32_1 = arith.constant 0 : i32
    return %arg0, %c0_i32, %c0_i32_0 : i32, i32, i32
  }
  func.func @transform_15(%arg0: i32) -> (i32, i32, i32) {
    %c0_i32 = arith.constant 0 : i32
    %c0_i32_0 = arith.constant 0 : i32
    %c0_i32_1 = arith.constant 0 : i32
    return %arg0, %c0_i32, %c0_i32_0 : i32, i32, i32
  }
}

</mosaic_0001>

<llo_original>
// kernel: encoder_forward.1
$region0: #{encoder_forward.1}
  #allocation0 [shape = 'u32[]', space=smem, size = 0x4, offset = 0x4, fixed_abs, tag = 'smem constant byte address 0x4 - core index']
  #allocation1 [shape = 'u32[144,128]{1,0:T(1,128)}', space=vmem, size = 0x12000, scoped, tag = 'internal scratch']
  #allocation2 [shape = 'f32[8,128]{1,0:T(8,128)}', space=vmem, size = 0x1000, scoped, tag = 'scratch operand']
  #allocation3 [shape = 'f32[4,128]{1,0:T(4,128)}', space=vmem, size = 0x800, scoped, tag = 'scratch operand']
  #allocation4 [shape = 'f32[4,128]{1,0:T(4,128)}', space=vmem, size = 0x800, scoped, tag = 'scratch operand']
  #allocation5 [shape = 'f32[4,16]{1,0:T(4,128)}', space=vmem, size = 0x800, scoped, tag = 'scratch operand']
  %s0 = inlined_call_operand.vmem [shape: f32[4], index: 0, kind: input, shape index: {}]
  %s1 = inlined_call_operand.vmem [shape: f32[2,5,8,48], index: 1, kind: input, shape index: {}]
  %s2 = inlined_call_operand.vmem [shape: f32[5,48,128], index: 2, kind: input, shape index: {}]
  %s3 = inlined_call_operand.vmem [shape: f32[1,128], index: 3, kind: input, shape index: {}]
  %s4 = inlined_call_operand.vmem [shape: f32[5,128,128], index: 4, kind: input, shape index: {}]
  %s5 = inlined_call_operand.vmem [shape: f32[1,128], index: 5, kind: input, shape index: {}]
  %s6 = inlined_call_operand.vmem [shape: f32[5,128,128], index: 6, kind: input, shape index: {}]
  %s7 = inlined_call_operand.vmem [shape: f32[1,128], index: 7, kind: input, shape index: {}]
  %s8 = inlined_call_operand.vmem [shape: f32[5,128,128], index: 8, kind: input, shape index: {}]
  %s9 = inlined_call_operand.vmem [shape: f32[1,128], index: 9, kind: input, shape index: {}]
  %s10 = inlined_call_operand.vmem [shape: f32[5,128,16], index: 10, kind: input, shape index: {}]
  %s11 = inlined_call_operand.vmem [shape: f32[1,16], index: 11, kind: input, shape index: {}]
  %s12 = inlined_call_operand.vmem [shape: f32[2,4,8], index: 12, kind: input, shape index: {}]
  %s13 = inlined_call_operand.vmem [shape: f32[2,4,8], index: 13, kind: output, shape index: {0}]
  %s14 = inlined_call_operand.vmem [shape: f32[2,4,8], index: 14, kind: output, shape index: {1}]
  %s15 = inlined_call_operand.vmem [shape: f32[2,4,8], index: 15, kind: output, shape index: {2}]
  %16 = xla_tuple %s13, %s14, %s15
  %s17 = sld [smem:[#allocation0]]
  $region105: #{encoder_forward.1} parent=0
    _
  %s19 = ssub.s32 1, %s17
  %s20 = scalar_select 0, %s19, %s17
  $region1: #{encoder_forward.1} parent=0
    #allocation6 [shape = 'u8[512]{0}', space=smem, size = 0x200, scoped, tag = 'input window, operand 0, single buffered']
    #allocation7 [shape = 's32[2]{0}', space=sflag, size = 0x8, scoped, tag = 'scoped memory for encoder_forward.1']
    %21 = vsyncpa [#allocation7], 0
    loop: start=0, step=1, limit=4
    $region2: #{encoder_forward.1} parent=1 // loop_pre_header
      _
    $region3: #{encoder_forward.1} parent=1 // loop_header
      %s23 = sphi 0, %s27
      %p24 = scmp.ge.s32.totalorder %s23, 4
      %s31 = sphi 0, %s31
      %s33 = sphi 0, %s31
      %s34 = sphi 0, %s33
      %s48 = sphi 0, %s34
      %s54 = sphi 0, %s56
      %s57 = sphi 0, %s54
      %s58 = sphi 0, %s57
      %s74 = sphi 0, %s58
      %s78 = sphi 0, %s78
      %s80 = sphi 0, %s78
      %s81 = sphi 0, %s80
      %s95 = sphi 0, %s81
      %s99 = sphi 0, %s99
      %s101 = sphi 0, %s99
      %s102 = sphi 0, %s101
      %s116 = sphi 0, %s102
      %s120 = sphi 0, %s120
      %s122 = sphi 0, %s120
      %s123 = sphi 0, %s122
      %s137 = sphi 0, %s123
      %s141 = sphi 0, %s141
      %s143 = sphi 0, %s141
      %s144 = sphi 0, %s143
      %s158 = sphi 0, %s144
      %s162 = sphi 0, %s162
      %s164 = sphi 0, %s162
      %s165 = sphi 0, %s164
      %s179 = sphi 0, %s165
      %s183 = sphi 0, %s183
      %s185 = sphi 0, %s183
      %s186 = sphi 0, %s185
      %s200 = sphi 0, %s186
      %s204 = sphi 0, %s204
      %s206 = sphi 0, %s204
      %s207 = sphi 0, %s206
      %s221 = sphi 0, %s207
      %s225 = sphi 0, %s225
      %s227 = sphi 0, %s225
      %s228 = sphi 0, %s227
      %s242 = sphi 0, %s228
      %s246 = sphi 0, %s246
      %s248 = sphi 0, %s246
      %s249 = sphi 0, %s248
      %s263 = sphi 0, %s249
      %s267 = sphi 0, %s267
      %s269 = sphi 0, %s267
      %s270 = sphi 0, %s269
      %s284 = sphi 0, %s270
      %s290 = sphi 0, %s292
      %s293 = sphi 0, %s290
      %s294 = sphi 0, %s293
      %s310 = sphi 0, %s294
      %s316 = sphi 0, %s318
      %s319 = sphi 0, %s316
      %s320 = sphi 0, %s319
      %s336 = sphi 0, %s320
      %s342 = sphi 0, %s344
      %s345 = sphi 0, %s342
      %s346 = sphi 0, %s345
      %s362 = sphi 0, %s346
      %s368 = sphi 0, %s370
      %s371 = sphi 0, %s368
      %s372 = sphi 0, %s371
      %s388 = sphi 0, %s372
    $region4: #{encoder_forward.1} parent=1 // loop_header_branch
      %26 = sbr.rel (%p24) target = $region8
    $region5: #{encoder_forward.1} parent=1 // loop_body
      %s28 = ssub.s32 %s23, 1
      %s29 = ssub.s32 %s23, 2
      %s30 = sadd.s32 %s23, 1
      %s32 = sadd.s32 %s31, 1
      %p35 = scmp.eq.s32.totalorder %s23, 1
      %p36 = scmp.ne.s32.totalorder %s31, %s33
      %p37 = scmp.eq.s32.totalorder %s23, 0
      %p38 = por %p36, %p37
      %p39 = scmp.ne.s32.totalorder %s31, %s33
      %p40 = scmp.eq.s32.totalorder %s28, 1
      %p41 = por %p39, %p40
      %p42 = scmp.ne.s32.totalorder %s33, %s34
      %p43 = scmp.eq.s32.totalorder %s28, 0
      %p44 = por %p42, %p43
      %p45 = scmp.ne.s32.totalorder %s33, %s34
      %p46 = scmp.eq.s32.totalorder %s29, 1
      %p47 = por %p45, %p46
      %p49 = scmp.ne.s32.totalorder %s34, %s48
      %p50 = scmp.eq.s32.totalorder %s29, 0
      %p51 = por %p49, %p50
      %s52 = ssub.s32 %s23, %s30
      %p53 = scmp.eq.s32.totalorder %s52, 0
      %s55 = sadd.s32 %s54, 1
      %s56 = scalar_select %p53, %s54, %s55
      %p59 = pneg %p53
      %p60 = scmp.eq.s32.totalorder %s23, 1
      %p61 = por %p59, %p60
      %p62 = scmp.ne.s32.totalorder %s54, %s57
      %p63 = scmp.eq.s32.totalorder %s23, 0
      %p64 = por %p62, %p63
      %p65 = scmp.ne.s32.totalorder %s54, %s57
      %p66 = scmp.eq.s32.totalorder %s28, 1
      %p67 = por %p65, %p66
      %p68 = scmp.ne.s32.totalorder %s57, %s58
      %p69 = scmp.eq.s32.totalorder %s28, 0
      %p70 = por %p68, %p69
      %p71 = scmp.ne.s32.totalorder %s57, %s58
      %p72 = scmp.eq.s32.totalorder %s29, 1
      %p73 = por %p71, %p72
      %p75 = scmp.ne.s32.totalorder %s58, %s74
      %p76 = scmp.eq.s32.totalorder %s29, 0
      %p77 = por %p75, %p76
      %s79 = sadd.s32 %s78, 1
      %p82 = scmp.eq.s32.totalorder %s23, 1
      %p83 = scmp.ne.s32.totalorder %s78, %s80
      %p84 = scmp.eq.s32.totalorder %s23, 0
      %p85 = por %p83, %p84
      %p86 = scmp.ne.s32.totalorder %s78, %s80
      %p87 = scmp.eq.s32.totalorder %s28, 1
      %p88 = por %p86, %p87
      %p89 = scmp.ne.s32.totalorder %s80, %s81
      %p90 = scmp.eq.s32.totalorder %s28, 0
      %p91 = por %p89, %p90
      %p92 = scmp.ne.s32.totalorder %s80, %s81
      %p93 = scmp.eq.s32.totalorder %s29, 1
      %p94 = por %p92, %p93
      %p96 = scmp.ne.s32.totalorder %s81, %s95
      %p97 = scmp.eq.s32.totalorder %s29, 0
      %p98 = por %p96, %p97
      %s100 = sadd.s32 %s99, 1
      %p103 = scmp.eq.s32.totalorder %s23, 1
      %p104 = scmp.ne.s32.totalorder %s99, %s101
      %p105 = scmp.eq.s32.totalorder %s23, 0
      %p106 = por %p104, %p105
      %p107 = scmp.ne.s32.totalorder %s99, %s101
      %p108 = scmp.eq.s32.totalorder %s28, 1
      %p109 = por %p107, %p108
      %p110 = scmp.ne.s32.totalorder %s101, %s102
      %p111 = scmp.eq.s32.totalorder %s28, 0
      %p112 = por %p110, %p111
      %p113 = scmp.ne.s32.totalorder %s101, %s102
      %p114 = scmp.eq.s32.totalorder %s29, 1
      %p115 = por %p113, %p114
      %p117 = scmp.ne.s32.totalorder %s102, %s116
      %p118 = scmp.eq.s32.totalorder %s29, 0
      %p119 = por %p117, %p118
      %s121 = sadd.s32 %s120, 1
      %p124 = scmp.eq.s32.totalorder %s23, 1
      %p125 = scmp.ne.s32.totalorder %s120, %s122
      %p126 = scmp.eq.s32.totalorder %s23, 0
      %p127 = por %p125, %p126
      %p128 = scmp.ne.s32.totalorder %s120, %s122
      %p129 = scmp.eq.s32.totalorder %s28, 1
      %p130 = por %p128, %p129
      %p131 = scmp.ne.s32.totalorder %s122, %s123
      %p132 = scmp.eq.s32.totalorder %s28, 0
      %p133 = por %p131, %p132
      %p134 = scmp.ne.s32.totalorder %s122, %s123
      %p135 = scmp.eq.s32.totalorder %s29, 1
      %p136 = por %p134, %p135
      %p138 = scmp.ne.s32.totalorder %s123, %s137
      %p139 = scmp.eq.s32.totalorder %s29, 0
      %p140 = por %p138, %p139
      %s142 = sadd.s32 %s141, 1
      %p145 = scmp.eq.s32.totalorder %s23, 1
      %p146 = scmp.ne.s32.totalorder %s141, %s143
      %p147 = scmp.eq.s32.totalorder %s23, 0
      %p148 = por %p146, %p147
      %p149 = scmp.ne.s32.totalorder %s141, %s143
      %p150 = scmp.eq.s32.totalorder %s28, 1
      %p151 = por %p149, %p150
      %p152 = scmp.ne.s32.totalorder %s143, %s144
      %p153 = scmp.eq.s32.totalorder %s28, 0
      %p154 = por %p152, %p153
      %p155 = scmp.ne.s32.totalorder %s143, %s144
      %p156 = scmp.eq.s32.totalorder %s29, 1
      %p157 = por %p155, %p156
      %p159 = scmp.ne.s32.totalorder %s144, %s158
      %p160 = scmp.eq.s32.totalorder %s29, 0
      %p161 = por %p159, %p160
      %s163 = sadd.s32 %s162, 1
      %p166 = scmp.eq.s32.totalorder %s23, 1
      %p167 = scmp.ne.s32.totalorder %s162, %s164
      %p168 = scmp.eq.s32.totalorder %s23, 0
      %p169 = por %p167, %p168
      %p170 = scmp.ne.s32.totalorder %s162, %s164
      %p171 = scmp.eq.s32.totalorder %s28, 1
      %p172 = por %p170, %p171
      %p173 = scmp.ne.s32.totalorder %s164, %s165
      %p174 = scmp.eq.s32.totalorder %s28, 0
      %p175 = por %p173, %p174
      %p176 = scmp.ne.s32.totalorder %s164, %s165
      %p177 = scmp.eq.s32.totalorder %s29, 1
      %p178 = por %p176, %p177
      %p180 = scmp.ne.s32.totalorder %s165, %s179
      %p181 = scmp.eq.s32.totalorder %s29, 0
      %p182 = por %p180, %p181
      %s184 = sadd.s32 %s183, 1
      %p187 = scmp.eq.s32.totalorder %s23, 1
      %p188 = scmp.ne.s32.totalorder %s183, %s185
      %p189 = scmp.eq.s32.totalorder %s23, 0
      %p190 = por %p188, %p189
      %p191 = scmp.ne.s32.totalorder %s183, %s185
      %p192 = scmp.eq.s32.totalorder %s28, 1
      %p193 = por %p191, %p192
      %p194 = scmp.ne.s32.totalorder %s185, %s186
      %p195 = scmp.eq.s32.totalorder %s28, 0
      %p196 = por %p194, %p195
      %p197 = scmp.ne.s32.totalorder %s185, %s186
      %p198 = scmp.eq.s32.totalorder %s29, 1
      %p199 = por %p197, %p198
      %p201 = scmp.ne.s32.totalorder %s186, %s200
      %p202 = scmp.eq.s32.totalorder %s29, 0
      %p203 = por %p201, %p202
      %s205 = sadd.s32 %s204, 1
      %p208 = scmp.eq.s32.totalorder %s23, 1
      %p209 = scmp.ne.s32.totalorder %s204, %s206
      %p210 = scmp.eq.s32.totalorder %s23, 0
      %p211 = por %p209, %p210
      %p212 = scmp.ne.s32.totalorder %s204, %s206
      %p213 = scmp.eq.s32.totalorder %s28, 1
      %p214 = por %p212, %p213
      %p215 = scmp.ne.s32.totalorder %s206, %s207
      %p216 = scmp.eq.s32.totalorder %s28, 0
      %p217 = por %p215, %p216
      %p218 = scmp.ne.s32.totalorder %s206, %s207
      %p219 = scmp.eq.s32.totalorder %s29, 1
      %p220 = por %p218, %p219
      %p222 = scmp.ne.s32.totalorder %s207, %s221
      %p223 = scmp.eq.s32.totalorder %s29, 0
      %p224 = por %p222, %p223
      %s226 = sadd.s32 %s225, 1
      %p229 = scmp.eq.s32.totalorder %s23, 1
      %p230 = scmp.ne.s32.totalorder %s225, %s227
      %p231 = scmp.eq.s32.totalorder %s23, 0
      %p232 = por %p230, %p231
      %p233 = scmp.ne.s32.totalorder %s225, %s227
      %p234 = scmp.eq.s32.totalorder %s28, 1
      %p235 = por %p233, %p234
      %p236 = scmp.ne.s32.totalorder %s227, %s228
      %p237 = scmp.eq.s32.totalorder %s28, 0
      %p238 = por %p236, %p237
      %p239 = scmp.ne.s32.totalorder %s227, %s228
      %p240 = scmp.eq.s32.totalorder %s29, 1
      %p241 = por %p239, %p240
      %p243 = scmp.ne.s32.totalorder %s228, %s242
      %p244 = scmp.eq.s32.totalorder %s29, 0
      %p245 = por %p243, %p244
      %s247 = sadd.s32 %s246, 1
      %p250 = scmp.eq.s32.totalorder %s23, 1
      %p251 = scmp.ne.s32.totalorder %s246, %s248
      %p252 = scmp.eq.s32.totalorder %s23, 0
      %p253 = por %p251, %p252
      %p254 = scmp.ne.s32.totalorder %s246, %s248
      %p255 = scmp.eq.s32.totalorder %s28, 1
      %p256 = por %p254, %p255
      %p257 = scmp.ne.s32.totalorder %s248, %s249
      %p258 = scmp.eq.s32.totalorder %s28, 0
      %p259 = por %p257, %p258
      %p260 = scmp.ne.s32.totalorder %s248, %s249
      %p261 = scmp.eq.s32.totalorder %s29, 1
      %p262 = por %p260, %p261
      %p264 = scmp.ne.s32.totalorder %s249, %s263
      %p265 = scmp.eq.s32.totalorder %s29, 0
      %p266 = por %p264, %p265
      %s268 = sadd.s32 %s267, 1
      %p271 = scmp.eq.s32.totalorder %s23, 1
      %p272 = scmp.ne.s32.totalorder %s267, %s269
      %p273 = scmp.eq.s32.totalorder %s23, 0
      %p274 = por %p272, %p273
      %p275 = scmp.ne.s32.totalorder %s267, %s269
      %p276 = scmp.eq.s32.totalorder %s28, 1
      %p277 = por %p275, %p276
      %p278 = scmp.ne.s32.totalorder %s269, %s270
      %p279 = scmp.eq.s32.totalorder %s28, 0
      %p280 = por %p278, %p279
      %p281 = scmp.ne.s32.totalorder %s269, %s270
      %p282 = scmp.eq.s32.totalorder %s29, 1
      %p283 = por %p281, %p282
      %p285 = scmp.ne.s32.totalorder %s270, %s284
      %p286 = scmp.eq.s32.totalorder %s29, 0
      %p287 = por %p285, %p286
      %s288 = ssub.s32 %s23, %s30
      %p289 = scmp.eq.s32.totalorder %s288, 0
      %s291 = sadd.s32 %s290, 1
      %s292 = scalar_select %p289, %s290, %s291
      %p295 = pneg %p289
      %p296 = scmp.eq.s32.totalorder %s23, 1
      %p297 = por %p295, %p296
      %p298 = scmp.ne.s32.totalorder %s290, %s293
      %p299 = scmp.eq.s32.totalorder %s23, 0
      %p300 = por %p298, %p299
      %p301 = scmp.ne.s32.totalorder %s290, %s293
      %p302 = scmp.eq.s32.totalorder %s28, 1
      %p303 = por %p301, %p302
      %p304 = scmp.ne.s32.totalorder %s293, %s294
      %p305 = scmp.eq.s32.totalorder %s28, 0
      %p306 = por %p304, %p305
      %p307 = scmp.ne.s32.totalorder %s293, %s294
      %p308 = scmp.eq.s32.totalorder %s29, 1
      %p309 = por %p307, %p308
      %p311 = scmp.ne.s32.totalorder %s294, %s310
      %p312 = scmp.eq.s32.totalorder %s29, 0
      %p313 = por %p311, %p312
      %s314 = ssub.s32 %s23, %s30
      %p315 = scmp.eq.s32.totalorder %s314, 0
      %s317 = sadd.s32 %s316, 1
      %s318 = scalar_select %p315, %s316, %s317
      %p321 = pneg %p315
      %p322 = scmp.eq.s32.totalorder %s23, 1
      %p323 = por %p321, %p322
      %p324 = scmp.ne.s32.totalorder %s316, %s319
      %p325 = scmp.eq.s32.totalorder %s23, 0
      %p326 = por %p324, %p325
      %p327 = scmp.ne.s32.totalorder %s316, %s319
      %p328 = scmp.eq.s32.totalorder %s28, 1
      %p329 = por %p327, %p328
      %p330 = scmp.ne.s32.totalorder %s319, %s320
      %p331 = scmp.eq.s32.totalorder %s28, 0
      %p332 = por %p330, %p331
      %p333 = scmp.ne.s32.totalorder %s319, %s320
      %p334 = scmp.eq.s32.totalorder %s29, 1
      %p335 = por %p333, %p334
      %p337 = scmp.ne.s32.totalorder %s320, %s336
      %p338 = scmp.eq.s32.totalorder %s29, 0
      %p339 = por %p337, %p338
      %s340 = ssub.s32 %s23, %s30
      %p341 = scmp.eq.s32.totalorder %s340, 0
      %s343 = sadd.s32 %s342, 1
      %s344 = scalar_select %p341, %s342, %s343
      %p347 = pneg %p341
      %p348 = scmp.eq.s32.totalorder %s23, 1
      %p349 = por %p347, %p348
      %p350 = scmp.ne.s32.totalorder %s342, %s345
      %p351 = scmp.eq.s32.totalorder %s23, 0
      %p352 = por %p350, %p351
      %p353 = scmp.ne.s32.totalorder %s342, %s345
      %p354 = scmp.eq.s32.totalorder %s28, 1
      %p355 = por %p353, %p354
      %p356 = scmp.ne.s32.totalorder %s345, %s346
      %p357 = scmp.eq.s32.totalorder %s28, 0
      %p358 = por %p356, %p357
      %p359 = scmp.ne.s32.totalorder %s345, %s346
      %p360 = scmp.eq.s32.totalorder %s29, 1
      %p361 = por %p359, %p360
      %p363 = scmp.ne.s32.totalorder %s346, %s362
      %p364 = scmp.eq.s32.totalorder %s29, 0
      %p365 = por %p363, %p364
      %s366 = ssub.s32 %s23, %s30
      %p367 = scmp.eq.s32.totalorder %s366, 0
      %s369 = sadd.s32 %s368, 1
      %s370 = scalar_select %p367, %s368, %s369
      %p373 = pneg %p367
      %p374 = scmp.eq.s32.totalorder %s23, 1
      %p375 = por %p373, %p374
      %p376 = scmp.ne.s32.totalorder %s368, %s371
      %p377 = scmp.eq.s32.totalorder %s23, 0
      %p378 = por %p376, %p377
      %p379 = scmp.ne.s32.totalorder %s368, %s371
      %p380 = scmp.eq.s32.totalorder %s28, 1
      %p381 = por %p379, %p380
      %p382 = scmp.ne.s32.totalorder %s371, %s372
      %p383 = scmp.eq.s32.totalorder %s28, 0
      %p384 = por %p382, %p383
      %p385 = scmp.ne.s32.totalorder %s371, %s372
      %p386 = scmp.eq.s32.totalorder %s29, 1
      %p387 = por %p385, %p386
      %p389 = scmp.ne.s32.totalorder %s372, %s388
      %p390 = scmp.eq.s32.totalorder %s29, 0
      %p391 = por %p389, %p390
      %p392 = scmp.le.s32.totalorder 1, %s23
      %p393 = scmp.lt.s32.totalorder %s23, 3
      %p394 = pnand %p392, %p393
      %p395 = pneg %p394
      // Predicated region
      $region9: #{encoder_forward.1} parent=5 // pred_check
        _
      $region10: #{encoder_forward.1} parent=5 // pred_check_branch
        %397 = sbr.rel (%p394) target = $region12
      $region11: #{encoder_forward.1} parent=5 // pred_region
        %s398 = ssub.s32 %s23, 1
        // Predicated region
        $region13: #{encoder_forward.1} parent=11 // pred_check
          %p399 = pneg %p44
        $region14: #{encoder_forward.1} parent=11 // pred_check_branch
          %401 = sbr.rel (%p399) target = $region16
        $region15: #{encoder_forward.1} parent=11 // pred_region
          %s403 = ssub.s32 16, 16
          %404 = vsyncadd [#allocation7], %s403
          %s406 = sshll.u32 %s0, 4
          %s407 = int_to_ptr.vmem [resolvable:$true] %s406
          %409 = dma.vmem_to_smem %s407, 16, [#allocation6], [#allocation7]
        $region16: #{encoder_forward.1} parent=11 // pred_fallthru
          _
        // Predicated region
        $region17: #{encoder_forward.1} parent=11 // pred_check
          %p410 = pneg %p91
        $region18: #{encoder_forward.1} parent=11 // pred_check_branch
          %412 = sbr.rel (%p410) target = $region20
        $region19: #{encoder_forward.1} parent=11 // pred_region
          _
        $region20: #{encoder_forward.1} parent=11 // pred_fallthru
          _
        // Predicated region
        $region21: #{encoder_forward.1} parent=11 // pred_check
          %p413 = pneg %p112
        $region22: #{encoder_forward.1} parent=11 // pred_check_branch
          %415 = sbr.rel (%p413) target = $region24
        $region23: #{encoder_forward.1} parent=11 // pred_region
          _
        $region24: #{encoder_forward.1} parent=11 // pred_fallthru
          _
        // Predicated region
        $region25: #{encoder_forward.1} parent=11 // pred_check
          %p416 = pneg %p133
        $region26: #{encoder_forward.1} parent=11 // pred_check_branch
          %418 = sbr.rel (%p416) target = $region28
        $region27: #{encoder_forward.1} parent=11 // pred_region
          _
        $region28: #{encoder_forward.1} parent=11 // pred_fallthru
          _
        // Predicated region
        $region29: #{encoder_forward.1} parent=11 // pred_check
          %p419 = pneg %p154
        $region30: #{encoder_forward.1} parent=11 // pred_check_branch
          %421 = sbr.rel (%p419) target = $region32
        $region31: #{encoder_forward.1} parent=11 // pred_region
          _
        $region32: #{encoder_forward.1} parent=11 // pred_fallthru
          _
        // Predicated region
        $region33: #{encoder_forward.1} parent=11 // pred_check
          %p422 = pneg %p175
        $region34: #{encoder_forward.1} parent=11 // pred_check_branch
          %424 = sbr.rel (%p422) target = $region36
        $region35: #{encoder_forward.1} parent=11 // pred_region
          _
        $region36: #{encoder_forward.1} parent=11 // pred_fallthru
          _
        // Predicated region
        $region37: #{encoder_forward.1} parent=11 // pred_check
          %p425 = pneg %p196
        $region38: #{encoder_forward.1} parent=11 // pred_check_branch
          %427 = sbr.rel (%p425) target = $region40
        $region39: #{encoder_forward.1} parent=11 // pred_region
          _
        $region40: #{encoder_forward.1} parent=11 // pred_fallthru
          _
        // Predicated region
        $region41: #{encoder_forward.1} parent=11 // pred_check
          %p428 = pneg %p217
        $region42: #{encoder_forward.1} parent=11 // pred_check_branch
          %430 = sbr.rel (%p428) target = $region44
        $region43: #{encoder_forward.1} parent=11 // pred_region
          _
        $region44: #{encoder_forward.1} parent=11 // pred_fallthru
          _
        // Predicated region
        $region45: #{encoder_forward.1} parent=11 // pred_check
          %p431 = pneg %p238
        $region46: #{encoder_forward.1} parent=11 // pred_check_branch
          %433 = sbr.rel (%p431) target = $region48
        $region47: #{encoder_forward.1} parent=11 // pred_region
          _
        $region48: #{encoder_forward.1} parent=11 // pred_fallthru
          _
        // Predicated region
        $region49: #{encoder_forward.1} parent=11 // pred_check
          %p434 = pneg %p259
        $region50: #{encoder_forward.1} parent=11 // pred_check_branch
          %436 = sbr.rel (%p434) target = $region52
        $region51: #{encoder_forward.1} parent=11 // pred_region
          _
        $region52: #{encoder_forward.1} parent=11 // pred_fallthru
          _
        // Predicated region
        $region53: #{encoder_forward.1} parent=11 // pred_check
          %p437 = pneg %p280
        $region54: #{encoder_forward.1} parent=11 // pred_check_branch
          %439 = sbr.rel (%p437) target = $region56
        $region55: #{encoder_forward.1} parent=11 // pred_region
          _
        $region56: #{encoder_forward.1} parent=11 // pred_fallthru
          _
      $region12: #{encoder_forward.1} parent=5 // pred_fallthru
        _
      %p440 = scmp.lt.s32.totalorder %s23, 2
      // Predicated region
      $region57: #{encoder_forward.1} parent=5 // pred_check
        %p441 = pneg %p440
      $region58: #{encoder_forward.1} parent=5 // pred_check_branch
        %443 = sbr.rel (%p441) target = $region60
      $region59: #{encoder_forward.1} parent=5 // pred_region
        // Predicated region
        $region61: #{encoder_forward.1} parent=59 // pred_check
          %p444 = pneg %p64
        $region62: #{encoder_forward.1} parent=59 // pred_check_branch
          %446 = sbr.rel (%p444) target = $region64
        $region63: #{encoder_forward.1} parent=59 // pred_region
          %p447 = scmp.lt.s32.totalorder %s23, 1
          %s448 = scalar_select %p447, %s23, 1
          %s449 = smul.addr %s448, 5
          %s450 = smul.addr %s449, 8
          %s451 = scalar_lea.vmem %s1, %s450
        $region64: #{encoder_forward.1} parent=59 // pred_fallthru
          _
        // Predicated region
        $region65: #{encoder_forward.1} parent=59 // pred_check
          %p452 = pneg %p300
        $region66: #{encoder_forward.1} parent=59 // pred_check_branch
          %454 = sbr.rel (%p452) target = $region68
        $region67: #{encoder_forward.1} parent=59 // pred_region
          %p455 = scmp.lt.s32.totalorder %s23, 1
          %s456 = scalar_select %p455, %s23, 1
          %s457 = smul.addr %s456, 4
          %s458 = scalar_lea.vmem %s12, %s457
        $region68: #{encoder_forward.1} parent=59 // pred_fallthru
          _
      $region60: #{encoder_forward.1} parent=5 // pred_fallthru
        _
      %p459 = scmp.le.s32.totalorder 1, %s23
      %p460 = scmp.lt.s32.totalorder %s23, 3
      %p461 = pnand %p459, %p460
      %p462 = pneg %p461
      // Predicated region
      $region69: #{encoder_forward.1} parent=5 // pred_check
        _
      $region70: #{encoder_forward.1} parent=5 // pred_check_branch
        %464 = sbr.rel (%p461) target = $region72
      $region71: #{encoder_forward.1} parent=5 // pred_region
        %s465 = ssub.s32 %s23, 1
        // Predicated region
        $region73: #{encoder_forward.1} parent=71 // pred_check
          %p466 = pneg %p44
        $region74: #{encoder_forward.1} parent=71 // pred_check_branch
          %468 = sbr.rel (%p466) target = $region76
        $region75: #{encoder_forward.1} parent=71 // pred_region
          %469 = dma.done [#allocation7], 16
        $region76: #{encoder_forward.1} parent=71 // pred_fallthru
          _
        %470 = sfence
        %p471 = pneg %p44
        %p472 = pneg %p41
        %p473 = scmp.lt.s32.totalorder %s28, 1
        %s474 = scalar_select %p473, %s28, 1
        %s475 = smul.addr %s474, 5
        %s476 = smul.addr %s475, 8
        %s477 = scalar_lea.vmem %s1, %s476
        %p478 = pneg %p70
        %p479 = pneg %p67
        %p480 = pneg %p91
        %p481 = pneg %p88
        %p482 = pneg %p112
        %p483 = pneg %p109
        %p484 = pneg %p133
        %p485 = pneg %p130
        %p486 = pneg %p154
        %p487 = pneg %p151
        %p488 = pneg %p175
        %p489 = pneg %p172
        %p490 = pneg %p196
        %p491 = pneg %p193
        %p492 = pneg %p217
        %p493 = pneg %p214
        %p494 = pneg %p238
        %p495 = pneg %p235
        %p496 = pneg %p259
        %p497 = pneg %p256
        %p498 = pneg %p280
        %p499 = pneg %p277
        %p500 = scmp.lt.s32.totalorder %s28, 1
        %s501 = scalar_select %p500, %s28, 1
        %s502 = smul.addr %s501, 4
        %s503 = scalar_lea.vmem %s12, %s502
        %p504 = pneg %p306
        %p505 = pneg %p303
        %p506 = pneg %p332
        %p507 = pneg %p329
        %p508 = scmp.lt.s32.totalorder %s28, 1
        %s509 = scalar_select %p508, %s28, 1
        %s510 = smul.addr %s509, 4
        %s511 = scalar_lea.vmem %s13, %s510
        %p512 = pneg %p358
        %p513 = pneg %p355
        %p514 = scmp.lt.s32.totalorder %s28, 1
        %s515 = scalar_select %p514, %s28, 1
        %s516 = smul.addr %s515, 4
        %s517 = scalar_lea.vmem %s14, %s516
        %p518 = pneg %p384
        %p519 = pneg %p381
        %p520 = scmp.lt.s32.totalorder %s28, 1
        %s521 = scalar_select %p520, %s28, 1
        %s522 = smul.addr %s521, 4
        %s523 = scalar_lea.vmem %s15, %s522
        %p524 = scmp.lt.s32.totalorder %s28, 1
        %s525 = scalar_select %p524, %s28, 1
        %s526 = smul.addr %s525, 5
        %s527 = smul.addr %s526, 8
        %s528 = scalar_lea.vmem %s1, %s527
        %p529 = scmp.lt.s32.totalorder %s28, 1
        %s530 = scalar_select %p529, %s28, 1
        %s531 = smul.addr %s530, 4
        %s532 = scalar_lea.vmem %s12, %s531
        %p533 = scmp.lt.s32.totalorder %s28, 1
        %s534 = scalar_select %p533, %s28, 1
        %s535 = smul.addr %s534, 4
        %s536 = scalar_lea.vmem %s13, %s535
        %p537 = scmp.lt.s32.totalorder %s28, 1
        %s538 = scalar_select %p537, %s28, 1
        %s539 = smul.addr %s538, 4
        %s540 = scalar_lea.vmem %s14, %s539
        %p541 = scmp.lt.s32.totalorder %s28, 1
        %s542 = scalar_select %p541, %s28, 1
        %s543 = smul.addr %s542, 4
        %s544 = scalar_lea.vmem %s15, %s543
        %v545 = vld [vmem:[%s528] sm:$0xff]
        %v546 = vld [vmem:[%s2] sm:$0xff]
        %v547 = vld [vmem:[%s2 + $0x8] sm:$0xff]
        %v548 = vld [vmem:[%s2 + $0x10] sm:$0xff]
        %v549 = vld [vmem:[%s2 + $0x18] sm:$0xff]
        %v550 = vld [vmem:[%s2 + $0x20] sm:$0xff]
        %v551 = vld [vmem:[%s2 + $0x28] sm:$0xff]
        %s552 = scalar_lea.vmem %s528, 8
        %v553 = vld [vmem:[%s552] sm:$0xff]
        %s554 = scalar_lea.vmem %s2, 48
        %v555 = vld [vmem:[%s554] sm:$0xff]
        %v556 = vld [vmem:[%s554 + $0x8] sm:$0xff]
        %v557 = vld [vmem:[%s554 + $0x10] sm:$0xff]
        %v558 = vld [vmem:[%s554 + $0x18] sm:$0xff]
        %v559 = vld [vmem:[%s554 + $0x20] sm:$0xff]
        %v560 = vld [vmem:[%s554 + $0x28] sm:$0xff]
        %vm561 = vcmask 392192
        %v563 = vsel %vm561, %v553, 0
        %565 = vmatprep.subr.mxu0 0.0
        %566 = vmatpush1.msra.mxu0 0.0
        %567 = vmatprep.subr.mxu0 0.0
        %568 = vmatpush1.msra.mxu0 0.0
        %569 = vmatprep.subr.mxu0 0.0
        %570 = vmatpush1.msra.mxu0 0.0
        %571 = vmatprep.subr.mxu0 0.0
        %572 = vmatpush1.msra.mxu0 0.0
        %573 = vmatprep.subr.mxu0 0.0
        %574 = vmatpush1.msra.mxu0 0.0
        %575 = vmatprep.subr.mxu0 0.0
        %576 = vmatpush1.msra.mxu0 0.0
        %577 = vmatprep.subr.mxu0 0.0
        %578 = vmatpush1.msra.mxu0 0.0
        %579 = vmatprep.subr.mxu0 0.0
        %580 = vmatpush1.msra.mxu0 0.0
        %581 = vmatprep.subr.mxu0 0.0
        %582 = vmatpush1.msra.mxu0 0.0
        %583 = vmatprep.subr.mxu0 0.0
        %584 = vmatpush1.msra.mxu0 0.0
        %585 = vmatprep.subr.mxu0 0.0
        %586 = vmatpush1.msra.mxu0 %v560
        %587 = vmatprep.subr.mxu0 0.0
        %588 = vmatpush1.msra.mxu0 %v559
        %589 = vmatprep.subr.mxu0 0.0
        %590 = vmatpush1.msra.mxu0 %v558
        %591 = vmatprep.subr.mxu0 0.0
        %592 = vmatpush1.msra.mxu0 %v557
        %593 = vmatprep.subr.mxu0 0.0
        %594 = vmatpush1.msra.mxu0 %v556
        %595 = vmatprep.subr.mxu0 0.0
        %596 = vmatpush1.msra.mxu0 %v555
        %597 = vmatprep.subr.mxu0 0.0
        %598 = vmatpush2.msra.mxu0 0.0
        %599 = vmatprep.subr.mxu0 0.0
        %600 = vmatpush2.msra.mxu0 0.0
        %601 = vmatprep.subr.mxu0 0.0
        %602 = vmatpush2.msra.mxu0 0.0
        %603 = vmatprep.subr.mxu0 0.0
        %604 = vmatpush2.msra.mxu0 0.0
        %605 = vmatprep.subr.mxu0 0.0
        %606 = vmatpush2.msra.mxu0 0.0
        %607 = vmatprep.subr.mxu0 0.0
        %608 = vmatpush2.msra.mxu0 0.0
        %609 = vmatprep.subr.mxu0 0.0
        %610 = vmatpush2.msra.mxu0 0.0
        %611 = vmatprep.subr.mxu0 0.0
        %612 = vmatpush2.msra.mxu0 0.0
        %613 = vmatprep.subr.mxu0 0.0
        %614 = vmatpush2.msra.mxu0 0.0
        %615 = vmatprep.subr.mxu0 0.0
        %616 = vmatpush2.msra.mxu0 0.0
        %617 = vmatprep.subr.mxu0 0.0
        %618 = vmatpush2.msra.mxu0 0.0
        %619 = vmatprep.subr.mxu0 0.0
        %620 = vmatpush2.msra.mxu0 0.0
        %621 = vmatprep.subr.mxu0 0.0
        %622 = vmatpush2.msra.mxu0 0.0
        %623 = vmatprep.subr.mxu0 0.0
        %624 = vmatpush2.msra.mxu0 0.0
        %625 = vmatprep.subr.mxu0 0.0
        %626 = vmatpush2.msra.mxu0 0.0
        %627 = vmatprep.subr.mxu0 0.0
        %628 = vmatpush2.msra.mxu0 0.0
        %629 = vmatprep.mubr.f32.mxu0 0.0
        %630 = vmatmul.mubr.f32.gmra.mxu0 %v563
        %v631 = vpop.f32.mrf.mxu0
        %v632 = vadd.f32 0.0, %v631
        %v633 = vpop.f32.mrf.mxu0
        %634 = vdwg.mxu0
        %v636 = vsel %vm561, %v545, 0
        %638 = vmatprep.subr.mxu0 0.0
        %639 = vmatpush1.msra.mxu0 0.0
        %640 = vmatprep.subr.mxu0 0.0
        %641 = vmatpush1.msra.mxu0 0.0
        %642 = vmatprep.subr.mxu0 0.0
        %643 = vmatpush1.msra.mxu0 0.0
        %644 = vmatprep.subr.mxu0 0.0
        %645 = vmatpush1.msra.mxu0 0.0
        %646 = vmatprep.subr.mxu0 0.0
        %647 = vmatpush1.msra.mxu0 0.0
        %648 = vmatprep.subr.mxu0 0.0
        %649 = vmatpush1.msra.mxu0 0.0
        %650 = vmatprep.subr.mxu0 0.0
        %651 = vmatpush1.msra.mxu0 0.0
        %652 = vmatprep.subr.mxu0 0.0
        %653 = vmatpush1.msra.mxu0 0.0
        %654 = vmatprep.subr.mxu0 0.0
        %655 = vmatpush1.msra.mxu0 0.0
        %656 = vmatprep.subr.mxu0 0.0
        %657 = vmatpush1.msra.mxu0 0.0
        %658 = vmatprep.subr.mxu0 0.0
        %659 = vmatpush1.msra.mxu0 %v551
        %660 = vmatprep.subr.mxu0 0.0
        %661 = vmatpush1.msra.mxu0 %v550
        %662 = vmatprep.subr.mxu0 0.0
        %663 = vmatpush1.msra.mxu0 %v549
        %664 = vmatprep.subr.mxu0 0.0
        %665 = vmatpush1.msra.mxu0 %v548
        %666 = vmatprep.subr.mxu0 0.0
        %667 = vmatpush1.msra.mxu0 %v547
        %668 = vmatprep.subr.mxu0 0.0
        %669 = vmatpush1.msra.mxu0 %v546
        %670 = vmatprep.subr.mxu0 0.0
        %671 = vmatpush2.msra.mxu0 0.0
        %672 = vmatprep.subr.mxu0 0.0
        %673 = vmatpush2.msra.mxu0 0.0
        %674 = vmatprep.subr.mxu0 0.0
        %675 = vmatpush2.msra.mxu0 0.0
        %676 = vmatprep.subr.mxu0 0.0
        %677 = vmatpush2.msra.mxu0 0.0
        %678 = vmatprep.subr.mxu0 0.0
        %679 = vmatpush2.msra.mxu0 0.0
        %680 = vmatprep.subr.mxu0 0.0
        %681 = vmatpush2.msra.mxu0 0.0
        %682 = vmatprep.subr.mxu0 0.0
        %683 = vmatpush2.msra.mxu0 0.0
        %684 = vmatprep.subr.mxu0 0.0
        %685 = vmatpush2.msra.mxu0 0.0
        %686 = vmatprep.subr.mxu0 0.0
        %687 = vmatpush2.msra.mxu0 0.0
        %688 = vmatprep.subr.mxu0 0.0
        %689 = vmatpush2.msra.mxu0 0.0
        %690 = vmatprep.subr.mxu0 0.0
        %691 = vmatpush2.msra.mxu0 0.0
        %692 = vmatprep.subr.mxu0 0.0
        %693 = vmatpush2.msra.mxu0 0.0
        %694 = vmatprep.subr.mxu0 0.0
        %695 = vmatpush2.msra.mxu0 0.0
        %696 = vmatprep.subr.mxu0 0.0
        %697 = vmatpush2.msra.mxu0 0.0
        %698 = vmatprep.subr.mxu0 0.0
        %699 = vmatpush2.msra.mxu0 0.0
        %700 = vmatprep.subr.mxu0 0.0
        %701 = vmatpush2.msra.mxu0 0.0
        %702 = vmatprep.mubr.f32.mxu0 0.0
        %703 = vmatmul.mubr.f32.gmra.mxu0 %v636
        %v704 = vpop.f32.mrf.mxu0
        %v705 = vadd.f32 %v632, %v704
        %v706 = vpop.f32.mrf.mxu0
        %707 = vdwg.mxu0
        %s708 = scalar_lea.vmem %s528, 16
        %v709 = vld [vmem:[%s708] sm:$0xff]
        %s710 = scalar_lea.vmem %s2, 96
        %v711 = vld [vmem:[%s710] sm:$0xff]
        %v712 = vld [vmem:[%s710 + $0x8] sm:$0xff]
        %v713 = vld [vmem:[%s710 + $0x10] sm:$0xff]
        %v714 = vld [vmem:[%s710 + $0x18] sm:$0xff]
        %v715 = vld [vmem:[%s710 + $0x20] sm:$0xff]
        %v716 = vld [vmem:[%s710 + $0x28] sm:$0xff]
        %v718 = vsel %vm561, %v709, 0
        %720 = vmatprep.subr.mxu0 0.0
        %721 = vmatpush1.msra.mxu0 0.0
        %722 = vmatprep.subr.mxu0 0.0
        %723 = vmatpush1.msra.mxu0 0.0
        %724 = vmatprep.subr.mxu0 0.0
        %725 = vmatpush1.msra.mxu0 0.0
        %726 = vmatprep.subr.mxu0 0.0
        %727 = vmatpush1.msra.mxu0 0.0
        %728 = vmatprep.subr.mxu0 0.0
        %729 = vmatpush1.msra.mxu0 0.0
        %730 = vmatprep.subr.mxu0 0.0
        %731 = vmatpush1.msra.mxu0 0.0
        %732 = vmatprep.subr.mxu0 0.0
        %733 = vmatpush1.msra.mxu0 0.0
        %734 = vmatprep.subr.mxu0 0.0
        %735 = vmatpush1.msra.mxu0 0.0
        %736 = vmatprep.subr.mxu0 0.0
        %737 = vmatpush1.msra.mxu0 0.0
        %738 = vmatprep.subr.mxu0 0.0
        %739 = vmatpush1.msra.mxu0 0.0
        %740 = vmatprep.subr.mxu0 0.0
        %741 = vmatpush1.msra.mxu0 %v716
        %742 = vmatprep.subr.mxu0 0.0
        %743 = vmatpush1.msra.mxu0 %v715
        %744 = vmatprep.subr.mxu0 0.0
        %745 = vmatpush1.msra.mxu0 %v714
        %746 = vmatprep.subr.mxu0 0.0
        %747 = vmatpush1.msra.mxu0 %v713
        %748 = vmatprep.subr.mxu0 0.0
        %749 = vmatpush1.msra.mxu0 %v712
        %750 = vmatprep.subr.mxu0 0.0
        %751 = vmatpush1.msra.mxu0 %v711
        %752 = vmatprep.subr.mxu0 0.0
        %753 = vmatpush2.msra.mxu0 0.0
        %754 = vmatprep.subr.mxu0 0.0
        %755 = vmatpush2.msra.mxu0 0.0
        %756 = vmatprep.subr.mxu0 0.0
        %757 = vmatpush2.msra.mxu0 0.0
        %758 = vmatprep.subr.mxu0 0.0
        %759 = vmatpush2.msra.mxu0 0.0
        %760 = vmatprep.subr.mxu0 0.0
        %761 = vmatpush2.msra.mxu0 0.0
        %762 = vmatprep.subr.mxu0 0.0
        %763 = vmatpush2.msra.mxu0 0.0
        %764 = vmatprep.subr.mxu0 0.0
        %765 = vmatpush2.msra.mxu0 0.0
        %766 = vmatprep.subr.mxu0 0.0
        %767 = vmatpush2.msra.mxu0 0.0
        %768 = vmatprep.subr.mxu0 0.0
        %769 = vmatpush2.msra.mxu0 0.0
        %770 = vmatprep.subr.mxu0 0.0
        %771 = vmatpush2.msra.mxu0 0.0
        %772 = vmatprep.subr.mxu0 0.0
        %773 = vmatpush2.msra.mxu0 0.0
        %774 = vmatprep.subr.mxu0 0.0
        %775 = vmatpush2.msra.mxu0 0.0
        %776 = vmatprep.subr.mxu0 0.0
        %777 = vmatpush2.msra.mxu0 0.0
        %778 = vmatprep.subr.mxu0 0.0
        %779 = vmatpush2.msra.mxu0 0.0
        %780 = vmatprep.subr.mxu0 0.0
        %781 = vmatpush2.msra.mxu0 0.0
        %782 = vmatprep.subr.mxu0 0.0
        %783 = vmatpush2.msra.mxu0 0.0
        %784 = vmatprep.mubr.f32.mxu0 0.0
        %785 = vmatmul.mubr.f32.gmra.mxu0 %v718
        %v786 = vpop.f32.mrf.mxu0
        %v787 = vadd.f32 0.0, %v786
        %v788 = vpop.f32.mrf.mxu0
        %789 = vdwg.mxu0
        %v790 = vadd.f32 %v705, %v787
        %s791 = scalar_lea.vmem %s528, 24
        %v792 = vld [vmem:[%s791] sm:$0xff]
        %s793 = scalar_lea.vmem %s2, 144
        %v794 = vld [vmem:[%s793] sm:$0xff]
        %v795 = vld [vmem:[%s793 + $0x8] sm:$0xff]
        %v796 = vld [vmem:[%s793 + $0x10] sm:$0xff]
        %v797 = vld [vmem:[%s793 + $0x18] sm:$0xff]
        %v798 = vld [vmem:[%s793 + $0x20] sm:$0xff]
        %v799 = vld [vmem:[%s793 + $0x28] sm:$0xff]
        %v801 = vsel %vm561, %v792, 0
        %803 = vmatprep.subr.mxu0 0.0
        %804 = vmatpush1.msra.mxu0 0.0
        %805 = vmatprep.subr.mxu0 0.0
        %806 = vmatpush1.msra.mxu0 0.0
        %807 = vmatprep.subr.mxu0 0.0
        %808 = vmatpush1.msra.mxu0 0.0
        %809 = vmatprep.subr.mxu0 0.0
        %810 = vmatpush1.msra.mxu0 0.0
        %811 = vmatprep.subr.mxu0 0.0
        %812 = vmatpush1.msra.mxu0 0.0
        %813 = vmatprep.subr.mxu0 0.0
        %814 = vmatpush1.msra.mxu0 0.0
        %815 = vmatprep.subr.mxu0 0.0
        %816 = vmatpush1.msra.mxu0 0.0
        %817 = vmatprep.subr.mxu0 0.0
        %818 = vmatpush1.msra.mxu0 0.0
        %819 = vmatprep.subr.mxu0 0.0
        %820 = vmatpush1.msra.mxu0 0.0
        %821 = vmatprep.subr.mxu0 0.0
        %822 = vmatpush1.msra.mxu0 0.0
        %823 = vmatprep.subr.mxu0 0.0
        %824 = vmatpush1.msra.mxu0 %v799
        %825 = vmatprep.subr.mxu0 0.0
        %826 = vmatpush1.msra.mxu0 %v798
        %827 = vmatprep.subr.mxu0 0.0
        %828 = vmatpush1.msra.mxu0 %v797
        %829 = vmatprep.subr.mxu0 0.0
        %830 = vmatpush1.msra.mxu0 %v796
        %831 = vmatprep.subr.mxu0 0.0
        %832 = vmatpush1.msra.mxu0 %v795
        %833 = vmatprep.subr.mxu0 0.0
        %834 = vmatpush1.msra.mxu0 %v794
        %835 = vmatprep.subr.mxu0 0.0
        %836 = vmatpush2.msra.mxu0 0.0
        %837 = vmatprep.subr.mxu0 0.0
        %838 = vmatpush2.msra.mxu0 0.0
        %839 = vmatprep.subr.mxu0 0.0
        %840 = vmatpush2.msra.mxu0 0.0
        %841 = vmatprep.subr.mxu0 0.0
        %842 = vmatpush2.msra.mxu0 0.0
        %843 = vmatprep.subr.mxu0 0.0
        %844 = vmatpush2.msra.mxu0 0.0
        %845 = vmatprep.subr.mxu0 0.0
        %846 = vmatpush2.msra.mxu0 0.0
        %847 = vmatprep.subr.mxu0 0.0
        %848 = vmatpush2.msra.mxu0 0.0
        %849 = vmatprep.subr.mxu0 0.0
        %850 = vmatpush2.msra.mxu0 0.0
        %851 = vmatprep.subr.mxu0 0.0
        %852 = vmatpush2.msra.mxu0 0.0
        %853 = vmatprep.subr.mxu0 0.0
        %854 = vmatpush2.msra.mxu0 0.0
        %855 = vmatprep.subr.mxu0 0.0
        %856 = vmatpush2.msra.mxu0 0.0
        %857 = vmatprep.subr.mxu0 0.0
        %858 = vmatpush2.msra.mxu0 0.0
        %859 = vmatprep.subr.mxu0 0.0
        %860 = vmatpush2.msra.mxu0 0.0
        %861 = vmatprep.subr.mxu0 0.0
        %862 = vmatpush2.msra.mxu0 0.0
        %863 = vmatprep.subr.mxu0 0.0
        %864 = vmatpush2.msra.mxu0 0.0
        %865 = vmatprep.subr.mxu0 0.0
        %866 = vmatpush2.msra.mxu0 0.0
        %867 = vmatprep.mubr.f32.mxu0 0.0
        %868 = vmatmul.mubr.f32.gmra.mxu0 %v801
        %v869 = vpop.f32.mrf.mxu0
        %v870 = vadd.f32 0.0, %v869
        %v871 = vpop.f32.mrf.mxu0
        %872 = vdwg.mxu0
        %v873 = vadd.f32 %v790, %v870
        %s874 = scalar_lea.vmem %s528, 32
        %v875 = vld [vmem:[%s874] sm:$0xff]
        %s876 = scalar_lea.vmem %s2, 192
        %v877 = vld [vmem:[%s876] sm:$0xff]
        %v878 = vld [vmem:[%s876 + $0x8] sm:$0xff]
        %v879 = vld [vmem:[%s876 + $0x10] sm:$0xff]
        %v880 = vld [vmem:[%s876 + $0x18] sm:$0xff]
        %v881 = vld [vmem:[%s876 + $0x20] sm:$0xff]
        %v882 = vld [vmem:[%s876 + $0x28] sm:$0xff]
        %v884 = vsel %vm561, %v875, 0
        %886 = vmatprep.subr.mxu0 0.0
        %887 = vmatpush1.msra.mxu0 0.0
        %888 = vmatprep.subr.mxu0 0.0
        %889 = vmatpush1.msra.mxu0 0.0
        %890 = vmatprep.subr.mxu0 0.0
        %891 = vmatpush1.msra.mxu0 0.0
        %892 = vmatprep.subr.mxu0 0.0
        %893 = vmatpush1.msra.mxu0 0.0
        %894 = vmatprep.subr.mxu0 0.0
        %895 = vmatpush1.msra.mxu0 0.0
        %896 = vmatprep.subr.mxu0 0.0
        %897 = vmatpush1.msra.mxu0 0.0
        %898 = vmatprep.subr.mxu0 0.0
        %899 = vmatpush1.msra.mxu0 0.0
        %900 = vmatprep.subr.mxu0 0.0
        %901 = vmatpush1.msra.mxu0 0.0
        %902 = vmatprep.subr.mxu0 0.0
        %903 = vmatpush1.msra.mxu0 0.0
        %904 = vmatprep.subr.mxu0 0.0
        %905 = vmatpush1.msra.mxu0 0.0
        %906 = vmatprep.subr.mxu0 0.0
        %907 = vmatpush1.msra.mxu0 %v882
        %908 = vmatprep.subr.mxu0 0.0
        %909 = vmatpush1.msra.mxu0 %v881
        %910 = vmatprep.subr.mxu0 0.0
        %911 = vmatpush1.msra.mxu0 %v880
        %912 = vmatprep.subr.mxu0 0.0
        %913 = vmatpush1.msra.mxu0 %v879
        %914 = vmatprep.subr.mxu0 0.0
        %915 = vmatpush1.msra.mxu0 %v878
        %916 = vmatprep.subr.mxu0 0.0
        %917 = vmatpush1.msra.mxu0 %v877
        %918 = vmatprep.subr.mxu0 0.0
        %919 = vmatpush2.msra.mxu0 0.0
        %920 = vmatprep.subr.mxu0 0.0
        %921 = vmatpush2.msra.mxu0 0.0
        %922 = vmatprep.subr.mxu0 0.0
        %923 = vmatpush2.msra.mxu0 0.0
        %924 = vmatprep.subr.mxu0 0.0
        %925 = vmatpush2.msra.mxu0 0.0
        %926 = vmatprep.subr.mxu0 0.0
        %927 = vmatpush2.msra.mxu0 0.0
        %928 = vmatprep.subr.mxu0 0.0
        %929 = vmatpush2.msra.mxu0 0.0
        %930 = vmatprep.subr.mxu0 0.0
        %931 = vmatpush2.msra.mxu0 0.0
        %932 = vmatprep.subr.mxu0 0.0
        %933 = vmatpush2.msra.mxu0 0.0
        %934 = vmatprep.subr.mxu0 0.0
        %935 = vmatpush2.msra.mxu0 0.0
        %936 = vmatprep.subr.mxu0 0.0
        %937 = vmatpush2.msra.mxu0 0.0
        %938 = vmatprep.subr.mxu0 0.0
        %939 = vmatpush2.msra.mxu0 0.0
        %940 = vmatprep.subr.mxu0 0.0
        %941 = vmatpush2.msra.mxu0 0.0
        %942 = vmatprep.subr.mxu0 0.0
        %943 = vmatpush2.msra.mxu0 0.0
        %944 = vmatprep.subr.mxu0 0.0
        %945 = vmatpush2.msra.mxu0 0.0
        %946 = vmatprep.subr.mxu0 0.0
        %947 = vmatpush2.msra.mxu0 0.0
        %948 = vmatprep.subr.mxu0 0.0
        %949 = vmatpush2.msra.mxu0 0.0
        %950 = vmatprep.mubr.f32.mxu0 0.0
        %951 = vmatmul.mubr.f32.gmra.mxu0 %v884
        %v952 = vpop.f32.mrf.mxu0
        %v953 = vadd.f32 0.0, %v952
        %v954 = vpop.f32.mrf.mxu0
        %955 = vdwg.mxu0
        %v956 = vadd.f32 %v873, %v953
        %v957 = vld [vmem:[%s3] sm:$0x1]
        %v959 = vlaneseq
        %v960 = vshrl.u32 %v959, 7
        %v961 = vsub.s32 0, %v960
        %v962 = vrot.slane %v957, %v961
        %v964 = vadd.f32 %v956, %v962
        %s965 = sld [smem:[#allocation6]]
        %vm966 = vcmp.ge.f32.partialorder %v964, 0.0
        %v967 = vstv %s965
        %v968 = vmul.f32 %v967, %v964
        %v969 = vsel %vm966, %v964, %v968
        %970 = vst [vmem:[#allocation2] sm:$0xff] %v969
        %971 = vst [vmem:[#allocation4] sm:$0xf] 0.0
        %v972 = vld [vmem:[#allocation4 + $0x1] sm:$0x7]
        %v973 = vld [vmem:[#allocation2] sm:$0x7]
        %v974 = vld [vmem:[%s4] sm:$0xff]
        %v975 = vld [vmem:[%s4 + $0x8] sm:$0xff]
        %v976 = vld [vmem:[%s4 + $0x10] sm:$0xff]
        %v977 = vld [vmem:[%s4 + $0x18] sm:$0xff]
        %v978 = vld [vmem:[%s4 + $0x20] sm:$0xff]
        %v979 = vld [vmem:[%s4 + $0x28] sm:$0xff]
        %v980 = vld [vmem:[%s4 + $0x30] sm:$0xff]
        %v981 = vld [vmem:[%s4 + $0x38] sm:$0xff]
        %v982 = vld [vmem:[%s4 + $0x40] sm:$0xff]
        %v983 = vld [vmem:[%s4 + $0x48] sm:$0xff]
        %v984 = vld [vmem:[%s4 + $0x50] sm:$0xff]
        %v985 = vld [vmem:[%s4 + $0x58] sm:$0xff]
        %v986 = vld [vmem:[%s4 + $0x60] sm:$0xff]
        %v987 = vld [vmem:[%s4 + $0x68] sm:$0xff]
        %v988 = vld [vmem:[%s4 + $0x70] sm:$0xff]
        %v989 = vld [vmem:[%s4 + $0x78] sm:$0xff]
        %990 = vmatprep.subr.mxu0 0.0
        %991 = vmatpush1.msra.mxu0 %v989
        %992 = vmatprep.subr.mxu0 0.0
        %993 = vmatpush1.msra.mxu0 %v988
        %994 = vmatprep.subr.mxu0 0.0
        %995 = vmatpush1.msra.mxu0 %v987
        %996 = vmatprep.subr.mxu0 0.0
        %997 = vmatpush1.msra.mxu0 %v986
        %998 = vmatprep.subr.mxu0 0.0
        %999 = vmatpush1.msra.mxu0 %v985
        %1000 = vmatprep.subr.mxu0 0.0
        %1001 = vmatpush1.msra.mxu0 %v984
        %1002 = vmatprep.subr.mxu0 0.0
        %1003 = vmatpush1.msra.mxu0 %v983
        %1004 = vmatprep.subr.mxu0 0.0
        %1005 = vmatpush1.msra.mxu0 %v982
        %1006 = vmatprep.subr.mxu0 0.0
        %1007 = vmatpush1.msra.mxu0 %v981
        %1008 = vmatprep.subr.mxu0 0.0
        %1009 = vmatpush1.msra.mxu0 %v980
        %1010 = vmatprep.subr.mxu0 0.0
        %1011 = vmatpush1.msra.mxu0 %v979
        %1012 = vmatprep.subr.mxu0 0.0
        %1013 = vmatpush1.msra.mxu0 %v978
        %1014 = vmatprep.subr.mxu0 0.0
        %1015 = vmatpush1.msra.mxu0 %v977
        %1016 = vmatprep.subr.mxu0 0.0
        %1017 = vmatpush1.msra.mxu0 %v976
        %1018 = vmatprep.subr.mxu0 0.0
        %1019 = vmatpush1.msra.mxu0 %v975
        %1020 = vmatprep.subr.mxu0 0.0
        %1021 = vmatpush1.msra.mxu0 %v974
        %1022 = vmatprep.subr.mxu0 0.0
        %1023 = vmatpush2.msra.mxu0 0.0
        %1024 = vmatprep.subr.mxu0 0.0
        %1025 = vmatpush2.msra.mxu0 0.0
        %1026 = vmatprep.subr.mxu0 0.0
        %1027 = vmatpush2.msra.mxu0 0.0
        %1028 = vmatprep.subr.mxu0 0.0
        %1029 = vmatpush2.msra.mxu0 0.0
        %1030 = vmatprep.subr.mxu0 0.0
        %1031 = vmatpush2.msra.mxu0 0.0
        %1032 = vmatprep.subr.mxu0 0.0
        %1033 = vmatpush2.msra.mxu0 0.0
        %1034 = vmatprep.subr.mxu0 0.0
        %1035 = vmatpush2.msra.mxu0 0.0
        %1036 = vmatprep.subr.mxu0 0.0
        %1037 = vmatpush2.msra.mxu0 0.0
        %1038 = vmatprep.subr.mxu0 0.0
        %1039 = vmatpush2.msra.mxu0 0.0
        %1040 = vmatprep.subr.mxu0 0.0
        %1041 = vmatpush2.msra.mxu0 0.0
        %1042 = vmatprep.subr.mxu0 0.0
        %1043 = vmatpush2.msra.mxu0 0.0
        %1044 = vmatprep.subr.mxu0 0.0
        %1045 = vmatpush2.msra.mxu0 0.0
        %1046 = vmatprep.subr.mxu0 0.0
        %1047 = vmatpush2.msra.mxu0 0.0
        %1048 = vmatprep.subr.mxu0 0.0
        %1049 = vmatpush2.msra.mxu0 0.0
        %1050 = vmatprep.subr.mxu0 0.0
        %1051 = vmatpush2.msra.mxu0 0.0
        %1052 = vmatprep.subr.mxu0 0.0
        %1053 = vmatpush2.msra.mxu0 0.0
        %1054 = vmatprep.mubr.f32.mxu0 0.0
        %1055 = vmatmul.mubr.f32.gmra.mxu0 %v973
        %v1056 = vpop.f32.mrf.mxu0
        %v1057 = vadd.f32 0.0, %v1056
        %v1058 = vpop.f32.mrf.mxu0
        %1059 = vdwg.mxu0
        %v1060 = vadd.f32 %v972, %v1057
        %1061 = vst [vmem:[#allocation4 + $0x1] sm:$0x7] %v1060
        %v1062 = vld [vmem:[#allocation4 + $0x1] sm:$0x7]
        %v1063 = vld [vmem:[#allocation2 + $0x4] sm:$0x7]
        %s1064 = scalar_lea.vmem %s4, 128
        %v1065 = vld [vmem:[%s1064] sm:$0xff]
        %v1066 = vld [vmem:[%s1064 + $0x8] sm:$0xff]
        %v1067 = vld [vmem:[%s1064 + $0x10] sm:$0xff]
        %v1068 = vld [vmem:[%s1064 + $0x18] sm:$0xff]
        %v1069 = vld [vmem:[%s1064 + $0x20] sm:$0xff]
        %v1070 = vld [vmem:[%s1064 + $0x28] sm:$0xff]
        %v1071 = vld [vmem:[%s1064 + $0x30] sm:$0xff]
        %v1072 = vld [vmem:[%s1064 + $0x38] sm:$0xff]
        %v1073 = vld [vmem:[%s1064 + $0x40] sm:$0xff]
        %v1074 = vld [vmem:[%s1064 + $0x48] sm:$0xff]
        %v1075 = vld [vmem:[%s1064 + $0x50] sm:$0xff]
        %v1076 = vld [vmem:[%s1064 + $0x58] sm:$0xff]
        %v1077 = vld [vmem:[%s1064 + $0x60] sm:$0xff]
        %v1078 = vld [vmem:[%s1064 + $0x68] sm:$0xff]
        %v1079 = vld [vmem:[%s1064 + $0x70] sm:$0xff]
        %v1080 = vld [vmem:[%s1064 + $0x78] sm:$0xff]
        %1081 = vmatprep.subr.mxu0 0.0
        %1082 = vmatpush1.msra.mxu0 %v1080
        %1083 = vmatprep.subr.mxu0 0.0
        %1084 = vmatpush1.msra.mxu0 %v1079
        %1085 = vmatprep.subr.mxu0 0.0
        %1086 = vmatpush1.msra.mxu0 %v1078
        %1087 = vmatprep.subr.mxu0 0.0
        %1088 = vmatpush1.msra.mxu0 %v1077
        %1089 = vmatprep.subr.mxu0 0.0
        %1090 = vmatpush1.msra.mxu0 %v1076
        %1091 = vmatprep.subr.mxu0 0.0
        %1092 = vmatpush1.msra.mxu0 %v1075
        %1093 = vmatprep.subr.mxu0 0.0
        %1094 = vmatpush1.msra.mxu0 %v1074
        %1095 = vmatprep.subr.mxu0 0.0
        %1096 = vmatpush1.msra.mxu0 %v1073
        %1097 = vmatprep.subr.mxu0 0.0
        %1098 = vmatpush1.msra.mxu0 %v1072
        %1099 = vmatprep.subr.mxu0 0.0
        %1100 = vmatpush1.msra.mxu0 %v1071
        %1101 = vmatprep.subr.mxu0 0.0
        %1102 = vmatpush1.msra.mxu0 %v1070
        %1103 = vmatprep.subr.mxu0 0.0
        %1104 = vmatpush1.msra.mxu0 %v1069
        %1105 = vmatprep.subr.mxu0 0.0
        %1106 = vmatpush1.msra.mxu0 %v1068
        %1107 = vmatprep.subr.mxu0 0.0
        %1108 = vmatpush1.msra.mxu0 %v1067
        %1109 = vmatprep.subr.mxu0 0.0
        %1110 = vmatpush1.msra.mxu0 %v1066
        %1111 = vmatprep.subr.mxu0 0.0
        %1112 = vmatpush1.msra.mxu0 %v1065
        %1113 = vmatprep.subr.mxu0 0.0
        %1114 = vmatpush2.msra.mxu0 0.0
        %1115 = vmatprep.subr.mxu0 0.0
        %1116 = vmatpush2.msra.mxu0 0.0
        %1117 = vmatprep.subr.mxu0 0.0
        %1118 = vmatpush2.msra.mxu0 0.0
        %1119 = vmatprep.subr.mxu0 0.0
        %1120 = vmatpush2.msra.mxu0 0.0
        %1121 = vmatprep.subr.mxu0 0.0
        %1122 = vmatpush2.msra.mxu0 0.0
        %1123 = vmatprep.subr.mxu0 0.0
        %1124 = vmatpush2.msra.mxu0 0.0
        %1125 = vmatprep.subr.mxu0 0.0
        %1126 = vmatpush2.msra.mxu0 0.0
        %1127 = vmatprep.subr.mxu0 0.0
        %1128 = vmatpush2.msra.mxu0 0.0
        %1129 = vmatprep.subr.mxu0 0.0
        %1130 = vmatpush2.msra.mxu0 0.0
        %1131 = vmatprep.subr.mxu0 0.0
        %1132 = vmatpush2.msra.mxu0 0.0
        %1133 = vmatprep.subr.mxu0 0.0
        %1134 = vmatpush2.msra.mxu0 0.0
        %1135 = vmatprep.subr.mxu0 0.0
        %1136 = vmatpush2.msra.mxu0 0.0
        %1137 = vmatprep.subr.mxu0 0.0
        %1138 = vmatpush2.msra.mxu0 0.0
        %1139 = vmatprep.subr.mxu0 0.0
        %1140 = vmatpush2.msra.mxu0 0.0
        %1141 = vmatprep.subr.mxu0 0.0
        %1142 = vmatpush2.msra.mxu0 0.0
        %1143 = vmatprep.subr.mxu0 0.0
        %1144 = vmatpush2.msra.mxu0 0.0
        %1145 = vmatprep.mubr.f32.mxu0 0.0
        %1146 = vmatmul.mubr.f32.gmra.mxu0 %v1063
        %v1147 = vpop.f32.mrf.mxu0
        %v1148 = vadd.f32 0.0, %v1147
        %v1149 = vpop.f32.mrf.mxu0
        %1150 = vdwg.mxu0
        %v1151 = vadd.f32 %v1062, %v1148
        %1152 = vst [vmem:[#allocation4 + $0x1] sm:$0x7] %v1151
        %v1153 = vld [vmem:[#allocation4] sm:$0xf]
        %v1154 = vld [vmem:[#allocation2] sm:$0xf]
        %s1155 = scalar_lea.vmem %s4, 256
        %v1156 = vld [vmem:[%s1155] sm:$0xff]
        %v1157 = vld [vmem:[%s1155 + $0x8] sm:$0xff]
        %v1158 = vld [vmem:[%s1155 + $0x10] sm:$0xff]
        %v1159 = vld [vmem:[%s1155 + $0x18] sm:$0xff]
        %v1160 = vld [vmem:[%s1155 + $0x20] sm:$0xff]
        %v1161 = vld [vmem:[%s1155 + $0x28] sm:$0xff]
        %v1162 = vld [vmem:[%s1155 + $0x30] sm:$0xff]
        %v1163 = vld [vmem:[%s1155 + $0x38] sm:$0xff]
        %v1164 = vld [vmem:[%s1155 + $0x40] sm:$0xff]
        %v1165 = vld [vmem:[%s1155 + $0x48] sm:$0xff]
        %v1166 = vld [vmem:[%s1155 + $0x50] sm:$0xff]
        %v1167 = vld [vmem:[%s1155 + $0x58] sm:$0xff]
        %v1168 = vld [vmem:[%s1155 + $0x60] sm:$0xff]
        %v1169 = vld [vmem:[%s1155 + $0x68] sm:$0xff]
        %v1170 = vld [vmem:[%s1155 + $0x70] sm:$0xff]
        %v1171 = vld [vmem:[%s1155 + $0x78] sm:$0xff]
        %1172 = vmatprep.subr.mxu0 0.0
        %1173 = vmatpush1.msra.mxu0 %v1171
        %1174 = vmatprep.subr.mxu0 0.0
        %1175 = vmatpush1.msra.mxu0 %v1170
        %1176 = vmatprep.subr.mxu0 0.0
        %1177 = vmatpush1.msra.mxu0 %v1169
        %1178 = vmatprep.subr.mxu0 0.0
        %1179 = vmatpush1.msra.mxu0 %v1168
        %1180 = vmatprep.subr.mxu0 0.0
        %1181 = vmatpush1.msra.mxu0 %v1167
        %1182 = vmatprep.subr.mxu0 0.0
        %1183 = vmatpush1.msra.mxu0 %v1166
        %1184 = vmatprep.subr.mxu0 0.0
        %1185 = vmatpush1.msra.mxu0 %v1165
        %1186 = vmatprep.subr.mxu0 0.0
        %1187 = vmatpush1.msra.mxu0 %v1164
        %1188 = vmatprep.subr.mxu0 0.0
        %1189 = vmatpush1.msra.mxu0 %v1163
        %1190 = vmatprep.subr.mxu0 0.0
        %1191 = vmatpush1.msra.mxu0 %v1162
        %1192 = vmatprep.subr.mxu0 0.0
        %1193 = vmatpush1.msra.mxu0 %v1161
        %1194 = vmatprep.subr.mxu0 0.0
        %1195 = vmatpush1.msra.mxu0 %v1160
        %1196 = vmatprep.subr.mxu0 0.0
        %1197 = vmatpush1.msra.mxu0 %v1159
        %1198 = vmatprep.subr.mxu0 0.0
        %1199 = vmatpush1.msra.mxu0 %v1158
        %1200 = vmatprep.subr.mxu0 0.0
        %1201 = vmatpush1.msra.mxu0 %v1157
        %1202 = vmatprep.subr.mxu0 0.0
        %1203 = vmatpush1.msra.mxu0 %v1156
        %1204 = vmatprep.subr.mxu0 0.0
        %1205 = vmatpush2.msra.mxu0 0.0
        %1206 = vmatprep.subr.mxu0 0.0
        %1207 = vmatpush2.msra.mxu0 0.0
        %1208 = vmatprep.subr.mxu0 0.0
        %1209 = vmatpush2.msra.mxu0 0.0
        %1210 = vmatprep.subr.mxu0 0.0
        %1211 = vmatpush2.msra.mxu0 0.0
        %1212 = vmatprep.subr.mxu0 0.0
        %1213 = vmatpush2.msra.mxu0 0.0
        %1214 = vmatprep.subr.mxu0 0.0
        %1215 = vmatpush2.msra.mxu0 0.0
        %1216 = vmatprep.subr.mxu0 0.0
        %1217 = vmatpush2.msra.mxu0 0.0
        %1218 = vmatprep.subr.mxu0 0.0
        %1219 = vmatpush2.msra.mxu0 0.0
        %1220 = vmatprep.subr.mxu0 0.0
        %1221 = vmatpush2.msra.mxu0 0.0
        %1222 = vmatprep.subr.mxu0 0.0
        %1223 = vmatpush2.msra.mxu0 0.0
        %1224 = vmatprep.subr.mxu0 0.0
        %1225 = vmatpush2.msra.mxu0 0.0
        %1226 = vmatprep.subr.mxu0 0.0
        %1227 = vmatpush2.msra.mxu0 0.0
        %1228 = vmatprep.subr.mxu0 0.0
        %1229 = vmatpush2.msra.mxu0 0.0
        %1230 = vmatprep.subr.mxu0 0.0
        %1231 = vmatpush2.msra.mxu0 0.0
        %1232 = vmatprep.subr.mxu0 0.0
        %1233 = vmatpush2.msra.mxu0 0.0
        %1234 = vmatprep.subr.mxu0 0.0
        %1235 = vmatpush2.msra.mxu0 0.0
        %1236 = vmatprep.mubr.f32.mxu0 0.0
        %1237 = vmatmul.mubr.f32.gmra.mxu0 %v1154
        %v1238 = vpop.f32.mrf.mxu0
        %v1239 = vadd.f32 0.0, %v1238
        %v1240 = vpop.f32.mrf.mxu0
        %1241 = vdwg.mxu0
        %v1242 = vadd.f32 %v1153, %v1239
        %1243 = vst [vmem:[#allocation4] sm:$0xf] %v1242
        %v1244 = vld [vmem:[#allocation4] sm:$0xf]
        %v1245 = vld [vmem:[#allocation2 + $0x4] sm:$0xf]
        %s1246 = scalar_lea.vmem %s4, 384
        %v1247 = vld [vmem:[%s1246] sm:$0xff]
        %v1248 = vld [vmem:[%s1246 + $0x8] sm:$0xff]
        %v1249 = vld [vmem:[%s1246 + $0x10] sm:$0xff]
        %v1250 = vld [vmem:[%s1246 + $0x18] sm:$0xff]
        %v1251 = vld [vmem:[%s1246 + $0x20] sm:$0xff]
        %v1252 = vld [vmem:[%s1246 + $0x28] sm:$0xff]
        %v1253 = vld [vmem:[%s1246 + $0x30] sm:$0xff]
        %v1254 = vld [vmem:[%s1246 + $0x38] sm:$0xff]
        %v1255 = vld [vmem:[%s1246 + $0x40] sm:$0xff]
        %v1256 = vld [vmem:[%s1246 + $0x48] sm:$0xff]
        %v1257 = vld [vmem:[%s1246 + $0x50] sm:$0xff]
        %v1258 = vld [vmem:[%s1246 + $0x58] sm:$0xff]
        %v1259 = vld [vmem:[%s1246 + $0x60] sm:$0xff]
        %v1260 = vld [vmem:[%s1246 + $0x68] sm:$0xff]
        %v1261 = vld [vmem:[%s1246 + $0x70] sm:$0xff]
        %v1262 = vld [vmem:[%s1246 + $0x78] sm:$0xff]
        %1263 = vmatprep.subr.mxu0 0.0
        %1264 = vmatpush1.msra.mxu0 %v1262
        %1265 = vmatprep.subr.mxu0 0.0
        %1266 = vmatpush1.msra.mxu0 %v1261
        %1267 = vmatprep.subr.mxu0 0.0
        %1268 = vmatpush1.msra.mxu0 %v1260
        %1269 = vmatprep.subr.mxu0 0.0
        %1270 = vmatpush1.msra.mxu0 %v1259
        %1271 = vmatprep.subr.mxu0 0.0
        %1272 = vmatpush1.msra.mxu0 %v1258
        %1273 = vmatprep.subr.mxu0 0.0
        %1274 = vmatpush1.msra.mxu0 %v1257
        %1275 = vmatprep.subr.mxu0 0.0
        %1276 = vmatpush1.msra.mxu0 %v1256
        %1277 = vmatprep.subr.mxu0 0.0
        %1278 = vmatpush1.msra.mxu0 %v1255
        %1279 = vmatprep.subr.mxu0 0.0
        %1280 = vmatpush1.msra.mxu0 %v1254
        %1281 = vmatprep.subr.mxu0 0.0
        %1282 = vmatpush1.msra.mxu0 %v1253
        %1283 = vmatprep.subr.mxu0 0.0
        %1284 = vmatpush1.msra.mxu0 %v1252
        %1285 = vmatprep.subr.mxu0 0.0
        %1286 = vmatpush1.msra.mxu0 %v1251
        %1287 = vmatprep.subr.mxu0 0.0
        %1288 = vmatpush1.msra.mxu0 %v1250
        %1289 = vmatprep.subr.mxu0 0.0
        %1290 = vmatpush1.msra.mxu0 %v1249
        %1291 = vmatprep.subr.mxu0 0.0
        %1292 = vmatpush1.msra.mxu0 %v1248
        %1293 = vmatprep.subr.mxu0 0.0
        %1294 = vmatpush1.msra.mxu0 %v1247
        %1295 = vmatprep.subr.mxu0 0.0
        %1296 = vmatpush2.msra.mxu0 0.0
        %1297 = vmatprep.subr.mxu0 0.0
        %1298 = vmatpush2.msra.mxu0 0.0
        %1299 = vmatprep.subr.mxu0 0.0
        %1300 = vmatpush2.msra.mxu0 0.0
        %1301 = vmatprep.subr.mxu0 0.0
        %1302 = vmatpush2.msra.mxu0 0.0
        %1303 = vmatprep.subr.mxu0 0.0
        %1304 = vmatpush2.msra.mxu0 0.0
        %1305 = vmatprep.subr.mxu0 0.0
        %1306 = vmatpush2.msra.mxu0 0.0
        %1307 = vmatprep.subr.mxu0 0.0
        %1308 = vmatpush2.msra.mxu0 0.0
        %1309 = vmatprep.subr.mxu0 0.0
        %1310 = vmatpush2.msra.mxu0 0.0
        %1311 = vmatprep.subr.mxu0 0.0
        %1312 = vmatpush2.msra.mxu0 0.0
        %1313 = vmatprep.subr.mxu0 0.0
        %1314 = vmatpush2.msra.mxu0 0.0
        %1315 = vmatprep.subr.mxu0 0.0
        %1316 = vmatpush2.msra.mxu0 0.0
        %1317 = vmatprep.subr.mxu0 0.0
        %1318 = vmatpush2.msra.mxu0 0.0
        %1319 = vmatprep.subr.mxu0 0.0
        %1320 = vmatpush2.msra.mxu0 0.0
        %1321 = vmatprep.subr.mxu0 0.0
        %1322 = vmatpush2.msra.mxu0 0.0
        %1323 = vmatprep.subr.mxu0 0.0
        %1324 = vmatpush2.msra.mxu0 0.0
        %1325 = vmatprep.subr.mxu0 0.0
        %1326 = vmatpush2.msra.mxu0 0.0
        %1327 = vmatprep.mubr.f32.mxu0 0.0
        %1328 = vmatmul.mubr.f32.gmra.mxu0 %v1245
        %v1329 = vpop.f32.mrf.mxu0
        %v1330 = vadd.f32 0.0, %v1329
        %v1331 = vpop.f32.mrf.mxu0
        %1332 = vdwg.mxu0
        %v1333 = vadd.f32 %v1244, %v1330
        %1334 = vst [vmem:[#allocation4] sm:$0xf] %v1333
        %v1335 = vld [vmem:[#allocation4] sm:$0x7]
        %v1336 = vld [vmem:[#allocation2 + $0x1] sm:$0x7]
        %s1337 = scalar_lea.vmem %s4, 512
        %v1338 = vld [vmem:[%s1337] sm:$0xff]
        %v1339 = vld [vmem:[%s1337 + $0x8] sm:$0xff]
        %v1340 = vld [vmem:[%s1337 + $0x10] sm:$0xff]
        %v1341 = vld [vmem:[%s1337 + $0x18] sm:$0xff]
        %v1342 = vld [vmem:[%s1337 + $0x20] sm:$0xff]
        %v1343 = vld [vmem:[%s1337 + $0x28] sm:$0xff]
        %v1344 = vld [vmem:[%s1337 + $0x30] sm:$0xff]
        %v1345 = vld [vmem:[%s1337 + $0x38] sm:$0xff]
        %v1346 = vld [vmem:[%s1337 + $0x40] sm:$0xff]
        %v1347 = vld [vmem:[%s1337 + $0x48] sm:$0xff]
        %v1348 = vld [vmem:[%s1337 + $0x50] sm:$0xff]
        %v1349 = vld [vmem:[%s1337 + $0x58] sm:$0xff]
        %v1350 = vld [vmem:[%s1337 + $0x60] sm:$0xff]
        %v1351 = vld [vmem:[%s1337 + $0x68] sm:$0xff]
        %v1352 = vld [vmem:[%s1337 + $0x70] sm:$0xff]
        %v1353 = vld [vmem:[%s1337 + $0x78] sm:$0xff]
        %1354 = vmatprep.subr.mxu0 0.0
        %1355 = vmatpush1.msra.mxu0 %v1353
        %1356 = vmatprep.subr.mxu0 0.0
        %1357 = vmatpush1.msra.mxu0 %v1352
        %1358 = vmatprep.subr.mxu0 0.0
        %1359 = vmatpush1.msra.mxu0 %v1351
        %1360 = vmatprep.subr.mxu0 0.0
        %1361 = vmatpush1.msra.mxu0 %v1350
        %1362 = vmatprep.subr.mxu0 0.0
        %1363 = vmatpush1.msra.mxu0 %v1349
        %1364 = vmatprep.subr.mxu0 0.0
        %1365 = vmatpush1.msra.mxu0 %v1348
        %1366 = vmatprep.subr.mxu0 0.0
        %1367 = vmatpush1.msra.mxu0 %v1347
        %1368 = vmatprep.subr.mxu0 0.0
        %1369 = vmatpush1.msra.mxu0 %v1346
        %1370 = vmatprep.subr.mxu0 0.0
        %1371 = vmatpush1.msra.mxu0 %v1345
        %1372 = vmatprep.subr.mxu0 0.0
        %1373 = vmatpush1.msra.mxu0 %v1344
        %1374 = vmatprep.subr.mxu0 0.0
        %1375 = vmatpush1.msra.mxu0 %v1343
        %1376 = vmatprep.subr.mxu0 0.0
        %1377 = vmatpush1.msra.mxu0 %v1342
        %1378 = vmatprep.subr.mxu0 0.0
        %1379 = vmatpush1.msra.mxu0 %v1341
        %1380 = vmatprep.subr.mxu0 0.0
        %1381 = vmatpush1.msra.mxu0 %v1340
        %1382 = vmatprep.subr.mxu0 0.0
        %1383 = vmatpush1.msra.mxu0 %v1339
        %1384 = vmatprep.subr.mxu0 0.0
        %1385 = vmatpush1.msra.mxu0 %v1338
        %1386 = vmatprep.subr.mxu0 0.0
        %1387 = vmatpush2.msra.mxu0 0.0
        %1388 = vmatprep.subr.mxu0 0.0
        %1389 = vmatpush2.msra.mxu0 0.0
        %1390 = vmatprep.subr.mxu0 0.0
        %1391 = vmatpush2.msra.mxu0 0.0
        %1392 = vmatprep.subr.mxu0 0.0
        %1393 = vmatpush2.msra.mxu0 0.0
        %1394 = vmatprep.subr.mxu0 0.0
        %1395 = vmatpush2.msra.mxu0 0.0
        %1396 = vmatprep.subr.mxu0 0.0
        %1397 = vmatpush2.msra.mxu0 0.0
        %1398 = vmatprep.subr.mxu0 0.0
        %1399 = vmatpush2.msra.mxu0 0.0
        %1400 = vmatprep.subr.mxu0 0.0
        %1401 = vmatpush2.msra.mxu0 0.0
        %1402 = vmatprep.subr.mxu0 0.0
        %1403 = vmatpush2.msra.mxu0 0.0
        %1404 = vmatprep.subr.mxu0 0.0
        %1405 = vmatpush2.msra.mxu0 0.0
        %1406 = vmatprep.subr.mxu0 0.0
        %1407 = vmatpush2.msra.mxu0 0.0
        %1408 = vmatprep.subr.mxu0 0.0
        %1409 = vmatpush2.msra.mxu0 0.0
        %1410 = vmatprep.subr.mxu0 0.0
        %1411 = vmatpush2.msra.mxu0 0.0
        %1412 = vmatprep.subr.mxu0 0.0
        %1413 = vmatpush2.msra.mxu0 0.0
        %1414 = vmatprep.subr.mxu0 0.0
        %1415 = vmatpush2.msra.mxu0 0.0
        %1416 = vmatprep.subr.mxu0 0.0
        %1417 = vmatpush2.msra.mxu0 0.0
        %1418 = vmatprep.mubr.f32.mxu0 0.0
        %1419 = vmatmul.mubr.f32.gmra.mxu0 %v1336
        %v1420 = vpop.f32.mrf.mxu0
        %v1421 = vadd.f32 0.0, %v1420
        %v1422 = vpop.f32.mrf.mxu0
        %1423 = vdwg.mxu0
        %v1424 = vadd.f32 %v1335, %v1421
        %1425 = vst [vmem:[#allocation4] sm:$0x7] %v1424
        %v1426 = vld [vmem:[#allocation4] sm:$0xf]
        %v1427 = vld [vmem:[%s5] sm:$0x1]
        %v1429 = vlaneseq
        %v1430 = vshrl.u32 %v1429, 7
        %v1431 = vsub.s32 0, %v1430
        %v1432 = vrot.slane %v1427, %v1431
        %v1434 = vadd.f32 %v1426, %v1432
        %s1435 = sld [smem:[#allocation6 + $0x1]]
        %vm1436 = vcmp.ge.f32.partialorder %v1434, 0.0
        %v1437 = vstv %s1435
        %v1438 = vmul.f32 %v1437, %v1434
        %v1439 = vsel %vm1436, %v1434, %v1438
        %1440 = vst [vmem:[#allocation3] sm:$0xf] %v1439
        %1441 = vst [vmem:[#allocation4] sm:$0xf] 0.0
        %v1442 = vld [vmem:[#allocation4 + $0x2] sm:$0x3]
        %v1443 = vld [vmem:[#allocation3] sm:$0x3]
        %v1444 = vld [vmem:[%s6] sm:$0xff]
        %v1445 = vld [vmem:[%s6 + $0x8] sm:$0xff]
        %v1446 = vld [vmem:[%s6 + $0x10] sm:$0xff]
        %v1447 = vld [vmem:[%s6 + $0x18] sm:$0xff]
        %v1448 = vld [vmem:[%s6 + $0x20] sm:$0xff]
        %v1449 = vld [vmem:[%s6 + $0x28] sm:$0xff]
        %v1450 = vld [vmem:[%s6 + $0x30] sm:$0xff]
        %v1451 = vld [vmem:[%s6 + $0x38] sm:$0xff]
        %v1452 = vld [vmem:[%s6 + $0x40] sm:$0xff]
        %v1453 = vld [vmem:[%s6 + $0x48] sm:$0xff]
        %v1454 = vld [vmem:[%s6 + $0x50] sm:$0xff]
        %v1455 = vld [vmem:[%s6 + $0x58] sm:$0xff]
        %v1456 = vld [vmem:[%s6 + $0x60] sm:$0xff]
        %v1457 = vld [vmem:[%s6 + $0x68] sm:$0xff]
        %v1458 = vld [vmem:[%s6 + $0x70] sm:$0xff]
        %v1459 = vld [vmem:[%s6 + $0x78] sm:$0xff]
        %1460 = vmatprep.subr.mxu0 0.0
        %1461 = vmatpush1.msra.mxu0 %v1459
        %1462 = vmatprep.subr.mxu0 0.0
        %1463 = vmatpush1.msra.mxu0 %v1458
        %1464 = vmatprep.subr.mxu0 0.0
        %1465 = vmatpush1.msra.mxu0 %v1457
        %1466 = vmatprep.subr.mxu0 0.0
        %1467 = vmatpush1.msra.mxu0 %v1456
        %1468 = vmatprep.subr.mxu0 0.0
        %1469 = vmatpush1.msra.mxu0 %v1455
        %1470 = vmatprep.subr.mxu0 0.0
        %1471 = vmatpush1.msra.mxu0 %v1454
        %1472 = vmatprep.subr.mxu0 0.0
        %1473 = vmatpush1.msra.mxu0 %v1453
        %1474 = vmatprep.subr.mxu0 0.0
        %1475 = vmatpush1.msra.mxu0 %v1452
        %1476 = vmatprep.subr.mxu0 0.0
        %1477 = vmatpush1.msra.mxu0 %v1451
        %1478 = vmatprep.subr.mxu0 0.0
        %1479 = vmatpush1.msra.mxu0 %v1450
        %1480 = vmatprep.subr.mxu0 0.0
        %1481 = vmatpush1.msra.mxu0 %v1449
        %1482 = vmatprep.subr.mxu0 0.0
        %1483 = vmatpush1.msra.mxu0 %v1448
        %1484 = vmatprep.subr.mxu0 0.0
        %1485 = vmatpush1.msra.mxu0 %v1447
        %1486 = vmatprep.subr.mxu0 0.0
        %1487 = vmatpush1.msra.mxu0 %v1446
        %1488 = vmatprep.subr.mxu0 0.0
        %1489 = vmatpush1.msra.mxu0 %v1445
        %1490 = vmatprep.subr.mxu0 0.0
        %1491 = vmatpush1.msra.mxu0 %v1444
        %1492 = vmatprep.subr.mxu0 0.0
        %1493 = vmatpush2.msra.mxu0 0.0
        %1494 = vmatprep.subr.mxu0 0.0
        %1495 = vmatpush2.msra.mxu0 0.0
        %1496 = vmatprep.subr.mxu0 0.0
        %1497 = vmatpush2.msra.mxu0 0.0
        %1498 = vmatprep.subr.mxu0 0.0
        %1499 = vmatpush2.msra.mxu0 0.0
        %1500 = vmatprep.subr.mxu0 0.0
        %1501 = vmatpush2.msra.mxu0 0.0
        %1502 = vmatprep.subr.mxu0 0.0
        %1503 = vmatpush2.msra.mxu0 0.0
        %1504 = vmatprep.subr.mxu0 0.0
        %1505 = vmatpush2.msra.mxu0 0.0
        %1506 = vmatprep.subr.mxu0 0.0
        %1507 = vmatpush2.msra.mxu0 0.0
        %1508 = vmatprep.subr.mxu0 0.0
        %1509 = vmatpush2.msra.mxu0 0.0
        %1510 = vmatprep.subr.mxu0 0.0
        %1511 = vmatpush2.msra.mxu0 0.0
        %1512 = vmatprep.subr.mxu0 0.0
        %1513 = vmatpush2.msra.mxu0 0.0
        %1514 = vmatprep.subr.mxu0 0.0
        %1515 = vmatpush2.msra.mxu0 0.0
        %1516 = vmatprep.subr.mxu0 0.0
        %1517 = vmatpush2.msra.mxu0 0.0
        %1518 = vmatprep.subr.mxu0 0.0
        %1519 = vmatpush2.msra.mxu0 0.0
        %1520 = vmatprep.subr.mxu0 0.0
        %1521 = vmatpush2.msra.mxu0 0.0
        %1522 = vmatprep.subr.mxu0 0.0
        %1523 = vmatpush2.msra.mxu0 0.0
        %1524 = vmatprep.mubr.f32.mxu0 0.0
        %1525 = vmatmul.mubr.f32.gmra.mxu0 %v1443
        %v1526 = vpop.f32.mrf.mxu0
        %v1527 = vadd.f32 0.0, %v1526
        %v1528 = vpop.f32.mrf.mxu0
        %1529 = vdwg.mxu0
        %v1530 = vadd.f32 %v1442, %v1527
        %1531 = vst [vmem:[#allocation4 + $0x2] sm:$0x3] %v1530
        %v1532 = vld [vmem:[#allocation4 + $0x1] sm:$0x7]
        %v1533 = vld [vmem:[#allocation3] sm:$0x7]
        %s1534 = scalar_lea.vmem %s6, 128
        %v1535 = vld [vmem:[%s1534] sm:$0xff]
        %v1536 = vld [vmem:[%s1534 + $0x8] sm:$0xff]
        %v1537 = vld [vmem:[%s1534 + $0x10] sm:$0xff]
        %v1538 = vld [vmem:[%s1534 + $0x18] sm:$0xff]
        %v1539 = vld [vmem:[%s1534 + $0x20] sm:$0xff]
        %v1540 = vld [vmem:[%s1534 + $0x28] sm:$0xff]
        %v1541 = vld [vmem:[%s1534 + $0x30] sm:$0xff]
        %v1542 = vld [vmem:[%s1534 + $0x38] sm:$0xff]
        %v1543 = vld [vmem:[%s1534 + $0x40] sm:$0xff]
        %v1544 = vld [vmem:[%s1534 + $0x48] sm:$0xff]
        %v1545 = vld [vmem:[%s1534 + $0x50] sm:$0xff]
        %v1546 = vld [vmem:[%s1534 + $0x58] sm:$0xff]
        %v1547 = vld [vmem:[%s1534 + $0x60] sm:$0xff]
        %v1548 = vld [vmem:[%s1534 + $0x68] sm:$0xff]
        %v1549 = vld [vmem:[%s1534 + $0x70] sm:$0xff]
        %v1550 = vld [vmem:[%s1534 + $0x78] sm:$0xff]
        %1551 = vmatprep.subr.mxu0 0.0
        %1552 = vmatpush1.msra.mxu0 %v1550
        %1553 = vmatprep.subr.mxu0 0.0
        %1554 = vmatpush1.msra.mxu0 %v1549
        %1555 = vmatprep.subr.mxu0 0.0
        %1556 = vmatpush1.msra.mxu0 %v1548
        %1557 = vmatprep.subr.mxu0 0.0
        %1558 = vmatpush1.msra.mxu0 %v1547
        %1559 = vmatprep.subr.mxu0 0.0
        %1560 = vmatpush1.msra.mxu0 %v1546
        %1561 = vmatprep.subr.mxu0 0.0
        %1562 = vmatpush1.msra.mxu0 %v1545
        %1563 = vmatprep.subr.mxu0 0.0
        %1564 = vmatpush1.msra.mxu0 %v1544
        %1565 = vmatprep.subr.mxu0 0.0
        %1566 = vmatpush1.msra.mxu0 %v1543
        %1567 = vmatprep.subr.mxu0 0.0
        %1568 = vmatpush1.msra.mxu0 %v1542
        %1569 = vmatprep.subr.mxu0 0.0
        %1570 = vmatpush1.msra.mxu0 %v1541
        %1571 = vmatprep.subr.mxu0 0.0
        %1572 = vmatpush1.msra.mxu0 %v1540
        %1573 = vmatprep.subr.mxu0 0.0
        %1574 = vmatpush1.msra.mxu0 %v1539
        %1575 = vmatprep.subr.mxu0 0.0
        %1576 = vmatpush1.msra.mxu0 %v1538
        %1577 = vmatprep.subr.mxu0 0.0
        %1578 = vmatpush1.msra.mxu0 %v1537
        %1579 = vmatprep.subr.mxu0 0.0
        %1580 = vmatpush1.msra.mxu0 %v1536
        %1581 = vmatprep.subr.mxu0 0.0
        %1582 = vmatpush1.msra.mxu0 %v1535
        %1583 = vmatprep.subr.mxu0 0.0
        %1584 = vmatpush2.msra.mxu0 0.0
        %1585 = vmatprep.subr.mxu0 0.0
        %1586 = vmatpush2.msra.mxu0 0.0
        %1587 = vmatprep.subr.mxu0 0.0
        %1588 = vmatpush2.msra.mxu0 0.0
        %1589 = vmatprep.subr.mxu0 0.0
        %1590 = vmatpush2.msra.mxu0 0.0
        %1591 = vmatprep.subr.mxu0 0.0
        %1592 = vmatpush2.msra.mxu0 0.0
        %1593 = vmatprep.subr.mxu0 0.0
        %1594 = vmatpush2.msra.mxu0 0.0
        %1595 = vmatprep.subr.mxu0 0.0
        %1596 = vmatpush2.msra.mxu0 0.0
        %1597 = vmatprep.subr.mxu0 0.0
        %1598 = vmatpush2.msra.mxu0 0.0
        %1599 = vmatprep.subr.mxu0 0.0
        %1600 = vmatpush2.msra.mxu0 0.0
        %1601 = vmatprep.subr.mxu0 0.0
        %1602 = vmatpush2.msra.mxu0 0.0
        %1603 = vmatprep.subr.mxu0 0.0
        %1604 = vmatpush2.msra.mxu0 0.0
        %1605 = vmatprep.subr.mxu0 0.0
        %1606 = vmatpush2.msra.mxu0 0.0
        %1607 = vmatprep.subr.mxu0 0.0
        %1608 = vmatpush2.msra.mxu0 0.0
        %1609 = vmatprep.subr.mxu0 0.0
        %1610 = vmatpush2.msra.mxu0 0.0
        %1611 = vmatprep.subr.mxu0 0.0
        %1612 = vmatpush2.msra.mxu0 0.0
        %1613 = vmatprep.subr.mxu0 0.0
        %1614 = vmatpush2.msra.mxu0 0.0
        %1615 = vmatprep.mubr.f32.mxu0 0.0
        %1616 = vmatmul.mubr.f32.gmra.mxu0 %v1533
        %v1617 = vpop.f32.mrf.mxu0
        %v1618 = vadd.f32 0.0, %v1617
        %v1619 = vpop.f32.mrf.mxu0
        %1620 = vdwg.mxu0
        %v1621 = vadd.f32 %v1532, %v1618
        %1622 = vst [vmem:[#allocation4 + $0x1] sm:$0x7] %v1621
        %v1623 = vld [vmem:[#allocation4] sm:$0xf]
        %v1624 = vld [vmem:[#allocation3] sm:$0xf]
        %s1625 = scalar_lea.vmem %s6, 256
        %v1626 = vld [vmem:[%s1625] sm:$0xff]
        %v1627 = vld [vmem:[%s1625 + $0x8] sm:$0xff]
        %v1628 = vld [vmem:[%s1625 + $0x10] sm:$0xff]
        %v1629 = vld [vmem:[%s1625 + $0x18] sm:$0xff]
        %v1630 = vld [vmem:[%s1625 + $0x20] sm:$0xff]
        %v1631 = vld [vmem:[%s1625 + $0x28] sm:$0xff]
        %v1632 = vld [vmem:[%s1625 + $0x30] sm:$0xff]
        %v1633 = vld [vmem:[%s1625 + $0x38] sm:$0xff]
        %v1634 = vld [vmem:[%s1625 + $0x40] sm:$0xff]
        %v1635 = vld [vmem:[%s1625 + $0x48] sm:$0xff]
        %v1636 = vld [vmem:[%s1625 + $0x50] sm:$0xff]
        %v1637 = vld [vmem:[%s1625 + $0x58] sm:$0xff]
        %v1638 = vld [vmem:[%s1625 + $0x60] sm:$0xff]
        %v1639 = vld [vmem:[%s1625 + $0x68] sm:$0xff]
        %v1640 = vld [vmem:[%s1625 + $0x70] sm:$0xff]
        %v1641 = vld [vmem:[%s1625 + $0x78] sm:$0xff]
        %1642 = vmatprep.subr.mxu0 0.0
        %1643 = vmatpush1.msra.mxu0 %v1641
        %1644 = vmatprep.subr.mxu0 0.0
        %1645 = vmatpush1.msra.mxu0 %v1640
        %1646 = vmatprep.subr.mxu0 0.0
        %1647 = vmatpush1.msra.mxu0 %v1639
        %1648 = vmatprep.subr.mxu0 0.0
        %1649 = vmatpush1.msra.mxu0 %v1638
        %1650 = vmatprep.subr.mxu0 0.0
        %1651 = vmatpush1.msra.mxu0 %v1637
        %1652 = vmatprep.subr.mxu0 0.0
        %1653 = vmatpush1.msra.mxu0 %v1636
        %1654 = vmatprep.subr.mxu0 0.0
        %1655 = vmatpush1.msra.mxu0 %v1635
        %1656 = vmatprep.subr.mxu0 0.0
        %1657 = vmatpush1.msra.mxu0 %v1634
        %1658 = vmatprep.subr.mxu0 0.0
        %1659 = vmatpush1.msra.mxu0 %v1633
        %1660 = vmatprep.subr.mxu0 0.0
        %1661 = vmatpush1.msra.mxu0 %v1632
        %1662 = vmatprep.subr.mxu0 0.0
        %1663 = vmatpush1.msra.mxu0 %v1631
        %1664 = vmatprep.subr.mxu0 0.0
        %1665 = vmatpush1.msra.mxu0 %v1630
        %1666 = vmatprep.subr.mxu0 0.0
        %1667 = vmatpush1.msra.mxu0 %v1629
        %1668 = vmatprep.subr.mxu0 0.0
        %1669 = vmatpush1.msra.mxu0 %v1628
        %1670 = vmatprep.subr.mxu0 0.0
        %1671 = vmatpush1.msra.mxu0 %v1627
        %1672 = vmatprep.subr.mxu0 0.0
        %1673 = vmatpush1.msra.mxu0 %v1626
        %1674 = vmatprep.subr.mxu0 0.0
        %1675 = vmatpush2.msra.mxu0 0.0
        %1676 = vmatprep.subr.mxu0 0.0
        %1677 = vmatpush2.msra.mxu0 0.0
        %1678 = vmatprep.subr.mxu0 0.0
        %1679 = vmatpush2.msra.mxu0 0.0
        %1680 = vmatprep.subr.mxu0 0.0
        %1681 = vmatpush2.msra.mxu0 0.0
        %1682 = vmatprep.subr.mxu0 0.0
        %1683 = vmatpush2.msra.mxu0 0.0
        %1684 = vmatprep.subr.mxu0 0.0
        %1685 = vmatpush2.msra.mxu0 0.0
        %1686 = vmatprep.subr.mxu0 0.0
        %1687 = vmatpush2.msra.mxu0 0.0
        %1688 = vmatprep.subr.mxu0 0.0
        %1689 = vmatpush2.msra.mxu0 0.0
        %1690 = vmatprep.subr.mxu0 0.0
        %1691 = vmatpush2.msra.mxu0 0.0
        %1692 = vmatprep.subr.mxu0 0.0
        %1693 = vmatpush2.msra.mxu0 0.0
        %1694 = vmatprep.subr.mxu0 0.0
        %1695 = vmatpush2.msra.mxu0 0.0
        %1696 = vmatprep.subr.mxu0 0.0
        %1697 = vmatpush2.msra.mxu0 0.0
        %1698 = vmatprep.subr.mxu0 0.0
        %1699 = vmatpush2.msra.mxu0 0.0
        %1700 = vmatprep.subr.mxu0 0.0
        %1701 = vmatpush2.msra.mxu0 0.0
        %1702 = vmatprep.subr.mxu0 0.0
        %1703 = vmatpush2.msra.mxu0 0.0
        %1704 = vmatprep.subr.mxu0 0.0
        %1705 = vmatpush2.msra.mxu0 0.0
        %1706 = vmatprep.mubr.f32.mxu0 0.0
        %1707 = vmatmul.mubr.f32.gmra.mxu0 %v1624
        %v1708 = vpop.f32.mrf.mxu0
        %v1709 = vadd.f32 0.0, %v1708
        %v1710 = vpop.f32.mrf.mxu0
        %1711 = vdwg.mxu0
        %v1712 = vadd.f32 %v1623, %v1709
        %1713 = vst [vmem:[#allocation4] sm:$0xf] %v1712
        %v1714 = vld [vmem:[#allocation4] sm:$0x7]
        %v1715 = vld [vmem:[#allocation3 + $0x1] sm:$0x7]
        %s1716 = scalar_lea.vmem %s6, 384
        %v1717 = vld [vmem:[%s1716] sm:$0xff]
        %v1718 = vld [vmem:[%s1716 + $0x8] sm:$0xff]
        %v1719 = vld [vmem:[%s1716 + $0x10] sm:$0xff]
        %v1720 = vld [vmem:[%s1716 + $0x18] sm:$0xff]
        %v1721 = vld [vmem:[%s1716 + $0x20] sm:$0xff]
        %v1722 = vld [vmem:[%s1716 + $0x28] sm:$0xff]
        %v1723 = vld [vmem:[%s1716 + $0x30] sm:$0xff]
        %v1724 = vld [vmem:[%s1716 + $0x38] sm:$0xff]
        %v1725 = vld [vmem:[%s1716 + $0x40] sm:$0xff]
        %v1726 = vld [vmem:[%s1716 + $0x48] sm:$0xff]
        %v1727 = vld [vmem:[%s1716 + $0x50] sm:$0xff]
        %v1728 = vld [vmem:[%s1716 + $0x58] sm:$0xff]
        %v1729 = vld [vmem:[%s1716 + $0x60] sm:$0xff]
        %v1730 = vld [vmem:[%s1716 + $0x68] sm:$0xff]
        %v1731 = vld [vmem:[%s1716 + $0x70] sm:$0xff]
        %v1732 = vld [vmem:[%s1716 + $0x78] sm:$0xff]
        %1733 = vmatprep.subr.mxu0 0.0
        %1734 = vmatpush1.msra.mxu0 %v1732
        %1735 = vmatprep.subr.mxu0 0.0
        %1736 = vmatpush1.msra.mxu0 %v1731
        %1737 = vmatprep.subr.mxu0 0.0
        %1738 = vmatpush1.msra.mxu0 %v1730
        %1739 = vmatprep.subr.mxu0 0.0
        %1740 = vmatpush1.msra.mxu0 %v1729
        %1741 = vmatprep.subr.mxu0 0.0
        %1742 = vmatpush1.msra.mxu0 %v1728
        %1743 = vmatprep.subr.mxu0 0.0
        %1744 = vmatpush1.msra.mxu0 %v1727
        %1745 = vmatprep.subr.mxu0 0.0
        %1746 = vmatpush1.msra.mxu0 %v1726
        %1747 = vmatprep.subr.mxu0 0.0
        %1748 = vmatpush1.msra.mxu0 %v1725
        %1749 = vmatprep.subr.mxu0 0.0
        %1750 = vmatpush1.msra.mxu0 %v1724
        %1751 = vmatprep.subr.mxu0 0.0
        %1752 = vmatpush1.msra.mxu0 %v1723
        %1753 = vmatprep.subr.mxu0 0.0
        %1754 = vmatpush1.msra.mxu0 %v1722
        %1755 = vmatprep.subr.mxu0 0.0
        %1756 = vmatpush1.msra.mxu0 %v1721
        %1757 = vmatprep.subr.mxu0 0.0
        %1758 = vmatpush1.msra.mxu0 %v1720
        %1759 = vmatprep.subr.mxu0 0.0
        %1760 = vmatpush1.msra.mxu0 %v1719
        %1761 = vmatprep.subr.mxu0 0.0
        %1762 = vmatpush1.msra.mxu0 %v1718
        %1763 = vmatprep.subr.mxu0 0.0
        %1764 = vmatpush1.msra.mxu0 %v1717
        %1765 = vmatprep.subr.mxu0 0.0
        %1766 = vmatpush2.msra.mxu0 0.0
        %1767 = vmatprep.subr.mxu0 0.0
        %1768 = vmatpush2.msra.mxu0 0.0
        %1769 = vmatprep.subr.mxu0 0.0
        %1770 = vmatpush2.msra.mxu0 0.0
        %1771 = vmatprep.subr.mxu0 0.0
        %1772 = vmatpush2.msra.mxu0 0.0
        %1773 = vmatprep.subr.mxu0 0.0
        %1774 = vmatpush2.msra.mxu0 0.0
        %1775 = vmatprep.subr.mxu0 0.0
        %1776 = vmatpush2.msra.mxu0 0.0
        %1777 = vmatprep.subr.mxu0 0.0
        %1778 = vmatpush2.msra.mxu0 0.0
        %1779 = vmatprep.subr.mxu0 0.0
        %1780 = vmatpush2.msra.mxu0 0.0
        %1781 = vmatprep.subr.mxu0 0.0
        %1782 = vmatpush2.msra.mxu0 0.0
        %1783 = vmatprep.subr.mxu0 0.0
        %1784 = vmatpush2.msra.mxu0 0.0
        %1785 = vmatprep.subr.mxu0 0.0
        %1786 = vmatpush2.msra.mxu0 0.0
        %1787 = vmatprep.subr.mxu0 0.0
        %1788 = vmatpush2.msra.mxu0 0.0
        %1789 = vmatprep.subr.mxu0 0.0
        %1790 = vmatpush2.msra.mxu0 0.0
        %1791 = vmatprep.subr.mxu0 0.0
        %1792 = vmatpush2.msra.mxu0 0.0
        %1793 = vmatprep.subr.mxu0 0.0
        %1794 = vmatpush2.msra.mxu0 0.0
        %1795 = vmatprep.subr.mxu0 0.0
        %1796 = vmatpush2.msra.mxu0 0.0
        %1797 = vmatprep.mubr.f32.mxu0 0.0
        %1798 = vmatmul.mubr.f32.gmra.mxu0 %v1715
        %v1799 = vpop.f32.mrf.mxu0
        %v1800 = vadd.f32 0.0, %v1799
        %v1801 = vpop.f32.mrf.mxu0
        %1802 = vdwg.mxu0
        %v1803 = vadd.f32 %v1714, %v1800
        %1804 = vst [vmem:[#allocation4] sm:$0x7] %v1803
        %v1805 = vld [vmem:[#allocation4] sm:$0x3]
        %v1806 = vld [vmem:[#allocation3 + $0x2] sm:$0x3]
        %s1807 = scalar_lea.vmem %s6, 512
        %v1808 = vld [vmem:[%s1807] sm:$0xff]
        %v1809 = vld [vmem:[%s1807 + $0x8] sm:$0xff]
        %v1810 = vld [vmem:[%s1807 + $0x10] sm:$0xff]
        %v1811 = vld [vmem:[%s1807 + $0x18] sm:$0xff]
        %v1812 = vld [vmem:[%s1807 + $0x20] sm:$0xff]
        %v1813 = vld [vmem:[%s1807 + $0x28] sm:$0xff]
        %v1814 = vld [vmem:[%s1807 + $0x30] sm:$0xff]
        %v1815 = vld [vmem:[%s1807 + $0x38] sm:$0xff]
        %v1816 = vld [vmem:[%s1807 + $0x40] sm:$0xff]
        %v1817 = vld [vmem:[%s1807 + $0x48] sm:$0xff]
        %v1818 = vld [vmem:[%s1807 + $0x50] sm:$0xff]
        %v1819 = vld [vmem:[%s1807 + $0x58] sm:$0xff]
        %v1820 = vld [vmem:[%s1807 + $0x60] sm:$0xff]
        %v1821 = vld [vmem:[%s1807 + $0x68] sm:$0xff]
        %v1822 = vld [vmem:[%s1807 + $0x70] sm:$0xff]
        %v1823 = vld [vmem:[%s1807 + $0x78] sm:$0xff]
        %1824 = vmatprep.subr.mxu0 0.0
        %1825 = vmatpush1.msra.mxu0 %v1823
        %1826 = vmatprep.subr.mxu0 0.0
        %1827 = vmatpush1.msra.mxu0 %v1822
        %1828 = vmatprep.subr.mxu0 0.0
        %1829 = vmatpush1.msra.mxu0 %v1821
        %1830 = vmatprep.subr.mxu0 0.0
        %1831 = vmatpush1.msra.mxu0 %v1820
        %1832 = vmatprep.subr.mxu0 0.0
        %1833 = vmatpush1.msra.mxu0 %v1819
        %1834 = vmatprep.subr.mxu0 0.0
        %1835 = vmatpush1.msra.mxu0 %v1818
        %1836 = vmatprep.subr.mxu0 0.0
        %1837 = vmatpush1.msra.mxu0 %v1817
        %1838 = vmatprep.subr.mxu0 0.0
        %1839 = vmatpush1.msra.mxu0 %v1816
        %1840 = vmatprep.subr.mxu0 0.0
        %1841 = vmatpush1.msra.mxu0 %v1815
        %1842 = vmatprep.subr.mxu0 0.0
        %1843 = vmatpush1.msra.mxu0 %v1814
        %1844 = vmatprep.subr.mxu0 0.0
        %1845 = vmatpush1.msra.mxu0 %v1813
        %1846 = vmatprep.subr.mxu0 0.0
        %1847 = vmatpush1.msra.mxu0 %v1812
        %1848 = vmatprep.subr.mxu0 0.0
        %1849 = vmatpush1.msra.mxu0 %v1811
        %1850 = vmatprep.subr.mxu0 0.0
        %1851 = vmatpush1.msra.mxu0 %v1810
        %1852 = vmatprep.subr.mxu0 0.0
        %1853 = vmatpush1.msra.mxu0 %v1809
        %1854 = vmatprep.subr.mxu0 0.0
        %1855 = vmatpush1.msra.mxu0 %v1808
        %1856 = vmatprep.subr.mxu0 0.0
        %1857 = vmatpush2.msra.mxu0 0.0
        %1858 = vmatprep.subr.mxu0 0.0
        %1859 = vmatpush2.msra.mxu0 0.0
        %1860 = vmatprep.subr.mxu0 0.0
        %1861 = vmatpush2.msra.mxu0 0.0
        %1862 = vmatprep.subr.mxu0 0.0
        %1863 = vmatpush2.msra.mxu0 0.0
        %1864 = vmatprep.subr.mxu0 0.0
        %1865 = vmatpush2.msra.mxu0 0.0
        %1866 = vmatprep.subr.mxu0 0.0
        %1867 = vmatpush2.msra.mxu0 0.0
        %1868 = vmatprep.subr.mxu0 0.0
        %1869 = vmatpush2.msra.mxu0 0.0
        %1870 = vmatprep.subr.mxu0 0.0
        %1871 = vmatpush2.msra.mxu0 0.0
        %1872 = vmatprep.subr.mxu0 0.0
        %1873 = vmatpush2.msra.mxu0 0.0
        %1874 = vmatprep.subr.mxu0 0.0
        %1875 = vmatpush2.msra.mxu0 0.0
        %1876 = vmatprep.subr.mxu0 0.0
        %1877 = vmatpush2.msra.mxu0 0.0
        %1878 = vmatprep.subr.mxu0 0.0
        %1879 = vmatpush2.msra.mxu0 0.0
        %1880 = vmatprep.subr.mxu0 0.0
        %1881 = vmatpush2.msra.mxu0 0.0
        %1882 = vmatprep.subr.mxu0 0.0
        %1883 = vmatpush2.msra.mxu0 0.0
        %1884 = vmatprep.subr.mxu0 0.0
        %1885 = vmatpush2.msra.mxu0 0.0
        %1886 = vmatprep.subr.mxu0 0.0
        %1887 = vmatpush2.msra.mxu0 0.0
        %1888 = vmatprep.mubr.f32.mxu0 0.0
        %1889 = vmatmul.mubr.f32.gmra.mxu0 %v1806
        %v1890 = vpop.f32.mrf.mxu0
        %v1891 = vadd.f32 0.0, %v1890
        %v1892 = vpop.f32.mrf.mxu0
        %1893 = vdwg.mxu0
        %v1894 = vadd.f32 %v1805, %v1891
        %1895 = vst [vmem:[#allocation4] sm:$0x3] %v1894
        %v1896 = vld [vmem:[#allocation4] sm:$0xf]
        %v1897 = vld [vmem:[%s7] sm:$0x1]
        %v1899 = vlaneseq
        %v1900 = vshrl.u32 %v1899, 7
        %v1901 = vsub.s32 0, %v1900
        %v1902 = vrot.slane %v1897, %v1901
        %v1904 = vadd.f32 %v1896, %v1902
        %s1905 = sld [smem:[#allocation6 + $0x2]]
        %vm1906 = vcmp.ge.f32.partialorder %v1904, 0.0
        %v1907 = vstv %s1905
        %v1908 = vmul.f32 %v1907, %v1904
        %v1909 = vsel %vm1906, %v1904, %v1908
        %1910 = vst [vmem:[#allocation3] sm:$0xf] %v1909
        %1911 = vst [vmem:[#allocation4] sm:$0xf] 0.0
        %v1912 = vld [vmem:[#allocation4 + $0x2] sm:$0x3]
        %v1913 = vld [vmem:[#allocation3] sm:$0x3]
        %v1914 = vld [vmem:[%s8] sm:$0xff]
        %v1915 = vld [vmem:[%s8 + $0x8] sm:$0xff]
        %v1916 = vld [vmem:[%s8 + $0x10] sm:$0xff]
        %v1917 = vld [vmem:[%s8 + $0x18] sm:$0xff]
        %v1918 = vld [vmem:[%s8 + $0x20] sm:$0xff]
        %v1919 = vld [vmem:[%s8 + $0x28] sm:$0xff]
        %v1920 = vld [vmem:[%s8 + $0x30] sm:$0xff]
        %v1921 = vld [vmem:[%s8 + $0x38] sm:$0xff]
        %v1922 = vld [vmem:[%s8 + $0x40] sm:$0xff]
        %v1923 = vld [vmem:[%s8 + $0x48] sm:$0xff]
        %v1924 = vld [vmem:[%s8 + $0x50] sm:$0xff]
        %v1925 = vld [vmem:[%s8 + $0x58] sm:$0xff]
        %v1926 = vld [vmem:[%s8 + $0x60] sm:$0xff]
        %v1927 = vld [vmem:[%s8 + $0x68] sm:$0xff]
        %v1928 = vld [vmem:[%s8 + $0x70] sm:$0xff]
        %v1929 = vld [vmem:[%s8 + $0x78] sm:$0xff]
        %1930 = vmatprep.subr.mxu0 0.0
        %1931 = vmatpush1.msra.mxu0 %v1929
        %1932 = vmatprep.subr.mxu0 0.0
        %1933 = vmatpush1.msra.mxu0 %v1928
        %1934 = vmatprep.subr.mxu0 0.0
        %1935 = vmatpush1.msra.mxu0 %v1927
        %1936 = vmatprep.subr.mxu0 0.0
        %1937 = vmatpush1.msra.mxu0 %v1926
        %1938 = vmatprep.subr.mxu0 0.0
        %1939 = vmatpush1.msra.mxu0 %v1925
        %1940 = vmatprep.subr.mxu0 0.0
        %1941 = vmatpush1.msra.mxu0 %v1924
        %1942 = vmatprep.subr.mxu0 0.0
        %1943 = vmatpush1.msra.mxu0 %v1923
        %1944 = vmatprep.subr.mxu0 0.0
        %1945 = vmatpush1.msra.mxu0 %v1922
        %1946 = vmatprep.subr.mxu0 0.0
        %1947 = vmatpush1.msra.mxu0 %v1921
        %1948 = vmatprep.subr.mxu0 0.0
        %1949 = vmatpush1.msra.mxu0 %v1920
        %1950 = vmatprep.subr.mxu0 0.0
        %1951 = vmatpush1.msra.mxu0 %v1919
        %1952 = vmatprep.subr.mxu0 0.0
        %1953 = vmatpush1.msra.mxu0 %v1918
        %1954 = vmatprep.subr.mxu0 0.0
        %1955 = vmatpush1.msra.mxu0 %v1917
        %1956 = vmatprep.subr.mxu0 0.0
        %1957 = vmatpush1.msra.mxu0 %v1916
        %1958 = vmatprep.subr.mxu0 0.0
        %1959 = vmatpush1.msra.mxu0 %v1915
        %1960 = vmatprep.subr.mxu0 0.0
        %1961 = vmatpush1.msra.mxu0 %v1914
        %1962 = vmatprep.subr.mxu0 0.0
        %1963 = vmatpush2.msra.mxu0 0.0
        %1964 = vmatprep.subr.mxu0 0.0
        %1965 = vmatpush2.msra.mxu0 0.0
        %1966 = vmatprep.subr.mxu0 0.0
        %1967 = vmatpush2.msra.mxu0 0.0
        %1968 = vmatprep.subr.mxu0 0.0
        %1969 = vmatpush2.msra.mxu0 0.0
        %1970 = vmatprep.subr.mxu0 0.0
        %1971 = vmatpush2.msra.mxu0 0.0
        %1972 = vmatprep.subr.mxu0 0.0
        %1973 = vmatpush2.msra.mxu0 0.0
        %1974 = vmatprep.subr.mxu0 0.0
        %1975 = vmatpush2.msra.mxu0 0.0
        %1976 = vmatprep.subr.mxu0 0.0
        %1977 = vmatpush2.msra.mxu0 0.0
        %1978 = vmatprep.subr.mxu0 0.0
        %1979 = vmatpush2.msra.mxu0 0.0
        %1980 = vmatprep.subr.mxu0 0.0
        %1981 = vmatpush2.msra.mxu0 0.0
        %1982 = vmatprep.subr.mxu0 0.0
        %1983 = vmatpush2.msra.mxu0 0.0
        %1984 = vmatprep.subr.mxu0 0.0
        %1985 = vmatpush2.msra.mxu0 0.0
        %1986 = vmatprep.subr.mxu0 0.0
        %1987 = vmatpush2.msra.mxu0 0.0
        %1988 = vmatprep.subr.mxu0 0.0
        %1989 = vmatpush2.msra.mxu0 0.0
        %1990 = vmatprep.subr.mxu0 0.0
        %1991 = vmatpush2.msra.mxu0 0.0
        %1992 = vmatprep.subr.mxu0 0.0
        %1993 = vmatpush2.msra.mxu0 0.0
        %1994 = vmatprep.mubr.f32.mxu0 0.0
        %1995 = vmatmul.mubr.f32.gmra.mxu0 %v1913
        %v1996 = vpop.f32.mrf.mxu0
        %v1997 = vadd.f32 0.0, %v1996
        %v1998 = vpop.f32.mrf.mxu0
        %1999 = vdwg.mxu0
        %v2000 = vadd.f32 %v1912, %v1997
        %2001 = vst [vmem:[#allocation4 + $0x2] sm:$0x3] %v2000
        %v2002 = vld [vmem:[#allocation4 + $0x1] sm:$0x7]
        %v2003 = vld [vmem:[#allocation3] sm:$0x7]
        %s2004 = scalar_lea.vmem %s8, 128
        %v2005 = vld [vmem:[%s2004] sm:$0xff]
        %v2006 = vld [vmem:[%s2004 + $0x8] sm:$0xff]
        %v2007 = vld [vmem:[%s2004 + $0x10] sm:$0xff]
        %v2008 = vld [vmem:[%s2004 + $0x18] sm:$0xff]
        %v2009 = vld [vmem:[%s2004 + $0x20] sm:$0xff]
        %v2010 = vld [vmem:[%s2004 + $0x28] sm:$0xff]
        %v2011 = vld [vmem:[%s2004 + $0x30] sm:$0xff]
        %v2012 = vld [vmem:[%s2004 + $0x38] sm:$0xff]
        %v2013 = vld [vmem:[%s2004 + $0x40] sm:$0xff]
        %v2014 = vld [vmem:[%s2004 + $0x48] sm:$0xff]
        %v2015 = vld [vmem:[%s2004 + $0x50] sm:$0xff]
        %v2016 = vld [vmem:[%s2004 + $0x58] sm:$0xff]
        %v2017 = vld [vmem:[%s2004 + $0x60] sm:$0xff]
        %v2018 = vld [vmem:[%s2004 + $0x68] sm:$0xff]
        %v2019 = vld [vmem:[%s2004 + $0x70] sm:$0xff]
        %v2020 = vld [vmem:[%s2004 + $0x78] sm:$0xff]
        %2021 = vmatprep.subr.mxu0 0.0
        %2022 = vmatpush1.msra.mxu0 %v2020
        %2023 = vmatprep.subr.mxu0 0.0
        %2024 = vmatpush1.msra.mxu0 %v2019
        %2025 = vmatprep.subr.mxu0 0.0
        %2026 = vmatpush1.msra.mxu0 %v2018
        %2027 = vmatprep.subr.mxu0 0.0
        %2028 = vmatpush1.msra.mxu0 %v2017
        %2029 = vmatprep.subr.mxu0 0.0
        %2030 = vmatpush1.msra.mxu0 %v2016
        %2031 = vmatprep.subr.mxu0 0.0
        %2032 = vmatpush1.msra.mxu0 %v2015
        %2033 = vmatprep.subr.mxu0 0.0
        %2034 = vmatpush1.msra.mxu0 %v2014
        %2035 = vmatprep.subr.mxu0 0.0
        %2036 = vmatpush1.msra.mxu0 %v2013
        %2037 = vmatprep.subr.mxu0 0.0
        %2038 = vmatpush1.msra.mxu0 %v2012
        %2039 = vmatprep.subr.mxu0 0.0
        %2040 = vmatpush1.msra.mxu0 %v2011
        %2041 = vmatprep.subr.mxu0 0.0
        %2042 = vmatpush1.msra.mxu0 %v2010
        %2043 = vmatprep.subr.mxu0 0.0
        %2044 = vmatpush1.msra.mxu0 %v2009
        %2045 = vmatprep.subr.mxu0 0.0
        %2046 = vmatpush1.msra.mxu0 %v2008
        %2047 = vmatprep.subr.mxu0 0.0
        %2048 = vmatpush1.msra.mxu0 %v2007
        %2049 = vmatprep.subr.mxu0 0.0
        %2050 = vmatpush1.msra.mxu0 %v2006
        %2051 = vmatprep.subr.mxu0 0.0
        %2052 = vmatpush1.msra.mxu0 %v2005
        %2053 = vmatprep.subr.mxu0 0.0
        %2054 = vmatpush2.msra.mxu0 0.0
        %2055 = vmatprep.subr.mxu0 0.0
        %2056 = vmatpush2.msra.mxu0 0.0
        %2057 = vmatprep.subr.mxu0 0.0
        %2058 = vmatpush2.msra.mxu0 0.0
        %2059 = vmatprep.subr.mxu0 0.0
        %2060 = vmatpush2.msra.mxu0 0.0
        %2061 = vmatprep.subr.mxu0 0.0
        %2062 = vmatpush2.msra.mxu0 0.0
        %2063 = vmatprep.subr.mxu0 0.0
        %2064 = vmatpush2.msra.mxu0 0.0
        %2065 = vmatprep.subr.mxu0 0.0
        %2066 = vmatpush2.msra.mxu0 0.0
        %2067 = vmatprep.subr.mxu0 0.0
        %2068 = vmatpush2.msra.mxu0 0.0
        %2069 = vmatprep.subr.mxu0 0.0
        %2070 = vmatpush2.msra.mxu0 0.0
        %2071 = vmatprep.subr.mxu0 0.0
        %2072 = vmatpush2.msra.mxu0 0.0
        %2073 = vmatprep.subr.mxu0 0.0
        %2074 = vmatpush2.msra.mxu0 0.0
        %2075 = vmatprep.subr.mxu0 0.0
        %2076 = vmatpush2.msra.mxu0 0.0
        %2077 = vmatprep.subr.mxu0 0.0
        %2078 = vmatpush2.msra.mxu0 0.0
        %2079 = vmatprep.subr.mxu0 0.0
        %2080 = vmatpush2.msra.mxu0 0.0
        %2081 = vmatprep.subr.mxu0 0.0
        %2082 = vmatpush2.msra.mxu0 0.0
        %2083 = vmatprep.subr.mxu0 0.0
        %2084 = vmatpush2.msra.mxu0 0.0
        %2085 = vmatprep.mubr.f32.mxu0 0.0
        %2086 = vmatmul.mubr.f32.gmra.mxu0 %v2003
        %v2087 = vpop.f32.mrf.mxu0
        %v2088 = vadd.f32 0.0, %v2087
        %v2089 = vpop.f32.mrf.mxu0
        %2090 = vdwg.mxu0
        %v2091 = vadd.f32 %v2002, %v2088
        %2092 = vst [vmem:[#allocation4 + $0x1] sm:$0x7] %v2091
        %v2093 = vld [vmem:[#allocation4] sm:$0xf]
        %v2094 = vld [vmem:[#allocation3] sm:$0xf]
        %s2095 = scalar_lea.vmem %s8, 256
        %v2096 = vld [vmem:[%s2095] sm:$0xff]
        %v2097 = vld [vmem:[%s2095 + $0x8] sm:$0xff]
        %v2098 = vld [vmem:[%s2095 + $0x10] sm:$0xff]
        %v2099 = vld [vmem:[%s2095 + $0x18] sm:$0xff]
        %v2100 = vld [vmem:[%s2095 + $0x20] sm:$0xff]
        %v2101 = vld [vmem:[%s2095 + $0x28] sm:$0xff]
        %v2102 = vld [vmem:[%s2095 + $0x30] sm:$0xff]
        %v2103 = vld [vmem:[%s2095 + $0x38] sm:$0xff]
        %v2104 = vld [vmem:[%s2095 + $0x40] sm:$0xff]
        %v2105 = vld [vmem:[%s2095 + $0x48] sm:$0xff]
        %v2106 = vld [vmem:[%s2095 + $0x50] sm:$0xff]
        %v2107 = vld [vmem:[%s2095 + $0x58] sm:$0xff]
        %v2108 = vld [vmem:[%s2095 + $0x60] sm:$0xff]
        %v2109 = vld [vmem:[%s2095 + $0x68] sm:$0xff]
        %v2110 = vld [vmem:[%s2095 + $0x70] sm:$0xff]
        %v2111 = vld [vmem:[%s2095 + $0x78] sm:$0xff]
        %2112 = vmatprep.subr.mxu0 0.0
        %2113 = vmatpush1.msra.mxu0 %v2111
        %2114 = vmatprep.subr.mxu0 0.0
        %2115 = vmatpush1.msra.mxu0 %v2110
        %2116 = vmatprep.subr.mxu0 0.0
        %2117 = vmatpush1.msra.mxu0 %v2109
        %2118 = vmatprep.subr.mxu0 0.0
        %2119 = vmatpush1.msra.mxu0 %v2108
        %2120 = vmatprep.subr.mxu0 0.0
        %2121 = vmatpush1.msra.mxu0 %v2107
        %2122 = vmatprep.subr.mxu0 0.0
        %2123 = vmatpush1.msra.mxu0 %v2106
        %2124 = vmatprep.subr.mxu0 0.0
        %2125 = vmatpush1.msra.mxu0 %v2105
        %2126 = vmatprep.subr.mxu0 0.0
        %2127 = vmatpush1.msra.mxu0 %v2104
        %2128 = vmatprep.subr.mxu0 0.0
        %2129 = vmatpush1.msra.mxu0 %v2103
        %2130 = vmatprep.subr.mxu0 0.0
        %2131 = vmatpush1.msra.mxu0 %v2102
        %2132 = vmatprep.subr.mxu0 0.0
        %2133 = vmatpush1.msra.mxu0 %v2101
        %2134 = vmatprep.subr.mxu0 0.0
        %2135 = vmatpush1.msra.mxu0 %v2100
        %2136 = vmatprep.subr.mxu0 0.0
        %2137 = vmatpush1.msra.mxu0 %v2099
        %2138 = vmatprep.subr.mxu0 0.0
        %2139 = vmatpush1.msra.mxu0 %v2098
        %2140 = vmatprep.subr.mxu0 0.0
        %2141 = vmatpush1.msra.mxu0 %v2097
        %2142 = vmatprep.subr.mxu0 0.0
        %2143 = vmatpush1.msra.mxu0 %v2096
        %2144 = vmatprep.subr.mxu0 0.0
        %2145 = vmatpush2.msra.mxu0 0.0
        %2146 = vmatprep.subr.mxu0 0.0
        %2147 = vmatpush2.msra.mxu0 0.0
        %2148 = vmatprep.subr.mxu0 0.0
        %2149 = vmatpush2.msra.mxu0 0.0
        %2150 = vmatprep.subr.mxu0 0.0
        %2151 = vmatpush2.msra.mxu0 0.0
        %2152 = vmatprep.subr.mxu0 0.0
        %2153 = vmatpush2.msra.mxu0 0.0
        %2154 = vmatprep.subr.mxu0 0.0
        %2155 = vmatpush2.msra.mxu0 0.0
        %2156 = vmatprep.subr.mxu0 0.0
        %2157 = vmatpush2.msra.mxu0 0.0
        %2158 = vmatprep.subr.mxu0 0.0
        %2159 = vmatpush2.msra.mxu0 0.0
        %2160 = vmatprep.subr.mxu0 0.0
        %2161 = vmatpush2.msra.mxu0 0.0
        %2162 = vmatprep.subr.mxu0 0.0
        %2163 = vmatpush2.msra.mxu0 0.0
        %2164 = vmatprep.subr.mxu0 0.0
        %2165 = vmatpush2.msra.mxu0 0.0
        %2166 = vmatprep.subr.mxu0 0.0
        %2167 = vmatpush2.msra.mxu0 0.0
        %2168 = vmatprep.subr.mxu0 0.0
        %2169 = vmatpush2.msra.mxu0 0.0
        %2170 = vmatprep.subr.mxu0 0.0
        %2171 = vmatpush2.msra.mxu0 0.0
        %2172 = vmatprep.subr.mxu0 0.0
        %2173 = vmatpush2.msra.mxu0 0.0
        %2174 = vmatprep.subr.mxu0 0.0
        %2175 = vmatpush2.msra.mxu0 0.0
        %2176 = vmatprep.mubr.f32.mxu0 0.0
        %2177 = vmatmul.mubr.f32.gmra.mxu0 %v2094
        %v2178 = vpop.f32.mrf.mxu0
        %v2179 = vadd.f32 0.0, %v2178
        %v2180 = vpop.f32.mrf.mxu0
        %2181 = vdwg.mxu0
        %v2182 = vadd.f32 %v2093, %v2179
        %2183 = vst [vmem:[#allocation4] sm:$0xf] %v2182
        %v2184 = vld [vmem:[#allocation4] sm:$0x7]
        %v2185 = vld [vmem:[#allocation3 + $0x1] sm:$0x7]
        %s2186 = scalar_lea.vmem %s8, 384
        %v2187 = vld [vmem:[%s2186] sm:$0xff]
        %v2188 = vld [vmem:[%s2186 + $0x8] sm:$0xff]
        %v2189 = vld [vmem:[%s2186 + $0x10] sm:$0xff]
        %v2190 = vld [vmem:[%s2186 + $0x18] sm:$0xff]
        %v2191 = vld [vmem:[%s2186 + $0x20] sm:$0xff]
        %v2192 = vld [vmem:[%s2186 + $0x28] sm:$0xff]
        %v2193 = vld [vmem:[%s2186 + $0x30] sm:$0xff]
        %v2194 = vld [vmem:[%s2186 + $0x38] sm:$0xff]
        %v2195 = vld [vmem:[%s2186 + $0x40] sm:$0xff]
        %v2196 = vld [vmem:[%s2186 + $0x48] sm:$0xff]
        %v2197 = vld [vmem:[%s2186 + $0x50] sm:$0xff]
        %v2198 = vld [vmem:[%s2186 + $0x58] sm:$0xff]
        %v2199 = vld [vmem:[%s2186 + $0x60] sm:$0xff]
        %v2200 = vld [vmem:[%s2186 + $0x68] sm:$0xff]
        %v2201 = vld [vmem:[%s2186 + $0x70] sm:$0xff]
        %v2202 = vld [vmem:[%s2186 + $0x78] sm:$0xff]
        %2203 = vmatprep.subr.mxu0 0.0
        %2204 = vmatpush1.msra.mxu0 %v2202
        %2205 = vmatprep.subr.mxu0 0.0
        %2206 = vmatpush1.msra.mxu0 %v2201
        %2207 = vmatprep.subr.mxu0 0.0
        %2208 = vmatpush1.msra.mxu0 %v2200
        %2209 = vmatprep.subr.mxu0 0.0
        %2210 = vmatpush1.msra.mxu0 %v2199
        %2211 = vmatprep.subr.mxu0 0.0
        %2212 = vmatpush1.msra.mxu0 %v2198
        %2213 = vmatprep.subr.mxu0 0.0
        %2214 = vmatpush1.msra.mxu0 %v2197
        %2215 = vmatprep.subr.mxu0 0.0
        %2216 = vmatpush1.msra.mxu0 %v2196
        %2217 = vmatprep.subr.mxu0 0.0
        %2218 = vmatpush1.msra.mxu0 %v2195
        %2219 = vmatprep.subr.mxu0 0.0
        %2220 = vmatpush1.msra.mxu0 %v2194
        %2221 = vmatprep.subr.mxu0 0.0
        %2222 = vmatpush1.msra.mxu0 %v2193
        %2223 = vmatprep.subr.mxu0 0.0
        %2224 = vmatpush1.msra.mxu0 %v2192
        %2225 = vmatprep.subr.mxu0 0.0
        %2226 = vmatpush1.msra.mxu0 %v2191
        %2227 = vmatprep.subr.mxu0 0.0
        %2228 = vmatpush1.msra.mxu0 %v2190
        %2229 = vmatprep.subr.mxu0 0.0
        %2230 = vmatpush1.msra.mxu0 %v2189
        %2231 = vmatprep.subr.mxu0 0.0
        %2232 = vmatpush1.msra.mxu0 %v2188
        %2233 = vmatprep.subr.mxu0 0.0
        %2234 = vmatpush1.msra.mxu0 %v2187
        %2235 = vmatprep.subr.mxu0 0.0
        %2236 = vmatpush2.msra.mxu0 0.0
        %2237 = vmatprep.subr.mxu0 0.0
        %2238 = vmatpush2.msra.mxu0 0.0
        %2239 = vmatprep.subr.mxu0 0.0
        %2240 = vmatpush2.msra.mxu0 0.0
        %2241 = vmatprep.subr.mxu0 0.0
        %2242 = vmatpush2.msra.mxu0 0.0
        %2243 = vmatprep.subr.mxu0 0.0
        %2244 = vmatpush2.msra.mxu0 0.0
        %2245 = vmatprep.subr.mxu0 0.0
        %2246 = vmatpush2.msra.mxu0 0.0
        %2247 = vmatprep.subr.mxu0 0.0
        %2248 = vmatpush2.msra.mxu0 0.0
        %2249 = vmatprep.subr.mxu0 0.0
        %2250 = vmatpush2.msra.mxu0 0.0
        %2251 = vmatprep.subr.mxu0 0.0
        %2252 = vmatpush2.msra.mxu0 0.0
        %2253 = vmatprep.subr.mxu0 0.0
        %2254 = vmatpush2.msra.mxu0 0.0
        %2255 = vmatprep.subr.mxu0 0.0
        %2256 = vmatpush2.msra.mxu0 0.0
        %2257 = vmatprep.subr.mxu0 0.0
        %2258 = vmatpush2.msra.mxu0 0.0
        %2259 = vmatprep.subr.mxu0 0.0
        %2260 = vmatpush2.msra.mxu0 0.0
        %2261 = vmatprep.subr.mxu0 0.0
        %2262 = vmatpush2.msra.mxu0 0.0
        %2263 = vmatprep.subr.mxu0 0.0
        %2264 = vmatpush2.msra.mxu0 0.0
        %2265 = vmatprep.subr.mxu0 0.0
        %2266 = vmatpush2.msra.mxu0 0.0
        %2267 = vmatprep.mubr.f32.mxu0 0.0
        %2268 = vmatmul.mubr.f32.gmra.mxu0 %v2185
        %v2269 = vpop.f32.mrf.mxu0
        %v2270 = vadd.f32 0.0, %v2269
        %v2271 = vpop.f32.mrf.mxu0
        %2272 = vdwg.mxu0
        %v2273 = vadd.f32 %v2184, %v2270
        %2274 = vst [vmem:[#allocation4] sm:$0x7] %v2273
        %v2275 = vld [vmem:[#allocation4] sm:$0x3]
        %v2276 = vld [vmem:[#allocation3 + $0x2] sm:$0x3]
        %s2277 = scalar_lea.vmem %s8, 512
        %v2278 = vld [vmem:[%s2277] sm:$0xff]
        %v2279 = vld [vmem:[%s2277 + $0x8] sm:$0xff]
        %v2280 = vld [vmem:[%s2277 + $0x10] sm:$0xff]
        %v2281 = vld [vmem:[%s2277 + $0x18] sm:$0xff]
        %v2282 = vld [vmem:[%s2277 + $0x20] sm:$0xff]
        %v2283 = vld [vmem:[%s2277 + $0x28] sm:$0xff]
        %v2284 = vld [vmem:[%s2277 + $0x30] sm:$0xff]
        %v2285 = vld [vmem:[%s2277 + $0x38] sm:$0xff]
        %v2286 = vld [vmem:[%s2277 + $0x40] sm:$0xff]
        %v2287 = vld [vmem:[%s2277 + $0x48] sm:$0xff]
        %v2288 = vld [vmem:[%s2277 + $0x50] sm:$0xff]
        %v2289 = vld [vmem:[%s2277 + $0x58] sm:$0xff]
        %v2290 = vld [vmem:[%s2277 + $0x60] sm:$0xff]
        %v2291 = vld [vmem:[%s2277 + $0x68] sm:$0xff]
        %v2292 = vld [vmem:[%s2277 + $0x70] sm:$0xff]
        %v2293 = vld [vmem:[%s2277 + $0x78] sm:$0xff]
        %2294 = vmatprep.subr.mxu0 0.0
        %2295 = vmatpush1.msra.mxu0 %v2293
        %2296 = vmatprep.subr.mxu0 0.0
        %2297 = vmatpush1.msra.mxu0 %v2292
        %2298 = vmatprep.subr.mxu0 0.0
        %2299 = vmatpush1.msra.mxu0 %v2291
        %2300 = vmatprep.subr.mxu0 0.0
        %2301 = vmatpush1.msra.mxu0 %v2290
        %2302 = vmatprep.subr.mxu0 0.0
        %2303 = vmatpush1.msra.mxu0 %v2289
        %2304 = vmatprep.subr.mxu0 0.0
        %2305 = vmatpush1.msra.mxu0 %v2288
        %2306 = vmatprep.subr.mxu0 0.0
        %2307 = vmatpush1.msra.mxu0 %v2287
        %2308 = vmatprep.subr.mxu0 0.0
        %2309 = vmatpush1.msra.mxu0 %v2286
        %2310 = vmatprep.subr.mxu0 0.0
        %2311 = vmatpush1.msra.mxu0 %v2285
        %2312 = vmatprep.subr.mxu0 0.0
        %2313 = vmatpush1.msra.mxu0 %v2284
        %2314 = vmatprep.subr.mxu0 0.0
        %2315 = vmatpush1.msra.mxu0 %v2283
        %2316 = vmatprep.subr.mxu0 0.0
        %2317 = vmatpush1.msra.mxu0 %v2282
        %2318 = vmatprep.subr.mxu0 0.0
        %2319 = vmatpush1.msra.mxu0 %v2281
        %2320 = vmatprep.subr.mxu0 0.0
        %2321 = vmatpush1.msra.mxu0 %v2280
        %2322 = vmatprep.subr.mxu0 0.0
        %2323 = vmatpush1.msra.mxu0 %v2279
        %2324 = vmatprep.subr.mxu0 0.0
        %2325 = vmatpush1.msra.mxu0 %v2278
        %2326 = vmatprep.subr.mxu0 0.0
        %2327 = vmatpush2.msra.mxu0 0.0
        %2328 = vmatprep.subr.mxu0 0.0
        %2329 = vmatpush2.msra.mxu0 0.0
        %2330 = vmatprep.subr.mxu0 0.0
        %2331 = vmatpush2.msra.mxu0 0.0
        %2332 = vmatprep.subr.mxu0 0.0
        %2333 = vmatpush2.msra.mxu0 0.0
        %2334 = vmatprep.subr.mxu0 0.0
        %2335 = vmatpush2.msra.mxu0 0.0
        %2336 = vmatprep.subr.mxu0 0.0
        %2337 = vmatpush2.msra.mxu0 0.0
        %2338 = vmatprep.subr.mxu0 0.0
        %2339 = vmatpush2.msra.mxu0 0.0
        %2340 = vmatprep.subr.mxu0 0.0
        %2341 = vmatpush2.msra.mxu0 0.0
        %2342 = vmatprep.subr.mxu0 0.0
        %2343 = vmatpush2.msra.mxu0 0.0
        %2344 = vmatprep.subr.mxu0 0.0
        %2345 = vmatpush2.msra.mxu0 0.0
        %2346 = vmatprep.subr.mxu0 0.0
        %2347 = vmatpush2.msra.mxu0 0.0
        %2348 = vmatprep.subr.mxu0 0.0
        %2349 = vmatpush2.msra.mxu0 0.0
        %2350 = vmatprep.subr.mxu0 0.0
        %2351 = vmatpush2.msra.mxu0 0.0
        %2352 = vmatprep.subr.mxu0 0.0
        %2353 = vmatpush2.msra.mxu0 0.0
        %2354 = vmatprep.subr.mxu0 0.0
        %2355 = vmatpush2.msra.mxu0 0.0
        %2356 = vmatprep.subr.mxu0 0.0
        %2357 = vmatpush2.msra.mxu0 0.0
        %2358 = vmatprep.mubr.f32.mxu0 0.0
        %2359 = vmatmul.mubr.f32.gmra.mxu0 %v2276
        %v2360 = vpop.f32.mrf.mxu0
        %v2361 = vadd.f32 0.0, %v2360
        %v2362 = vpop.f32.mrf.mxu0
        %2363 = vdwg.mxu0
        %v2364 = vadd.f32 %v2275, %v2361
        %2365 = vst [vmem:[#allocation4] sm:$0x3] %v2364
        %v2366 = vld [vmem:[#allocation4] sm:$0xf]
        %v2367 = vld [vmem:[%s9] sm:$0x1]
        %v2369 = vlaneseq
        %v2370 = vshrl.u32 %v2369, 7
        %v2371 = vsub.s32 0, %v2370
        %v2372 = vrot.slane %v2367, %v2371
        %v2374 = vadd.f32 %v2366, %v2372
        %s2375 = sld [smem:[#allocation6 + $0x3]]
        %vm2376 = vcmp.ge.f32.partialorder %v2374, 0.0
        %v2377 = vstv %s2375
        %v2378 = vmul.f32 %v2377, %v2374
        %v2379 = vsel %vm2376, %v2374, %v2378
        %2380 = vst [vmem:[#allocation3] sm:$0xf] %v2379
        %vm2381 = vcmask 125952
        %2382 = vst.msk [vmem:[#allocation5] sm:$0xf] %vm2381, 0.0
        %v2383 = vld [vmem:[#allocation5 + $0x2] sm:$0x3]
        %v2384 = vld [vmem:[#allocation3] sm:$0x3]
        %v2385 = vld [vmem:[%s10] sm:$0xff]
        %v2386 = vld [vmem:[%s10 + $0x8] sm:$0xff]
        %v2387 = vld [vmem:[%s10 + $0x10] sm:$0xff]
        %v2388 = vld [vmem:[%s10 + $0x18] sm:$0xff]
        %v2389 = vld [vmem:[%s10 + $0x20] sm:$0xff]
        %v2390 = vld [vmem:[%s10 + $0x28] sm:$0xff]
        %v2391 = vld [vmem:[%s10 + $0x30] sm:$0xff]
        %v2392 = vld [vmem:[%s10 + $0x38] sm:$0xff]
        %v2393 = vld [vmem:[%s10 + $0x40] sm:$0xff]
        %v2394 = vld [vmem:[%s10 + $0x48] sm:$0xff]
        %v2395 = vld [vmem:[%s10 + $0x50] sm:$0xff]
        %v2396 = vld [vmem:[%s10 + $0x58] sm:$0xff]
        %v2397 = vld [vmem:[%s10 + $0x60] sm:$0xff]
        %v2398 = vld [vmem:[%s10 + $0x68] sm:$0xff]
        %v2399 = vld [vmem:[%s10 + $0x70] sm:$0xff]
        %v2400 = vld [vmem:[%s10 + $0x78] sm:$0xff]
        %2401 = vmatprep.subr.mxu0 0.0
        %2402 = vmatpush1.msra.mxu0 %v2400
        %2403 = vmatprep.subr.mxu0 0.0
        %2404 = vmatpush1.msra.mxu0 %v2399
        %2405 = vmatprep.subr.mxu0 0.0
        %2406 = vmatpush1.msra.mxu0 %v2398
        %2407 = vmatprep.subr.mxu0 0.0
        %2408 = vmatpush1.msra.mxu0 %v2397
        %2409 = vmatprep.subr.mxu0 0.0
        %2410 = vmatpush1.msra.mxu0 %v2396
        %2411 = vmatprep.subr.mxu0 0.0
        %2412 = vmatpush1.msra.mxu0 %v2395
        %2413 = vmatprep.subr.mxu0 0.0
        %2414 = vmatpush1.msra.mxu0 %v2394
        %2415 = vmatprep.subr.mxu0 0.0
        %2416 = vmatpush1.msra.mxu0 %v2393
        %2417 = vmatprep.subr.mxu0 0.0
        %2418 = vmatpush1.msra.mxu0 %v2392
        %2419 = vmatprep.subr.mxu0 0.0
        %2420 = vmatpush1.msra.mxu0 %v2391
        %2421 = vmatprep.subr.mxu0 0.0
        %2422 = vmatpush1.msra.mxu0 %v2390
        %2423 = vmatprep.subr.mxu0 0.0
        %2424 = vmatpush1.msra.mxu0 %v2389
        %2425 = vmatprep.subr.mxu0 0.0
        %2426 = vmatpush1.msra.mxu0 %v2388
        %2427 = vmatprep.subr.mxu0 0.0
        %2428 = vmatpush1.msra.mxu0 %v2387
        %2429 = vmatprep.subr.mxu0 0.0
        %2430 = vmatpush1.msra.mxu0 %v2386
        %2431 = vmatprep.subr.mxu0 0.0
        %2432 = vmatpush1.msra.mxu0 %v2385
        %2433 = vmatprep.subr.mxu0 0.0
        %2434 = vmatpush2.msra.mxu0 0.0
        %2435 = vmatprep.subr.mxu0 0.0
        %2436 = vmatpush2.msra.mxu0 0.0
        %2437 = vmatprep.subr.mxu0 0.0
        %2438 = vmatpush2.msra.mxu0 0.0
        %2439 = vmatprep.subr.mxu0 0.0
        %2440 = vmatpush2.msra.mxu0 0.0
        %2441 = vmatprep.subr.mxu0 0.0
        %2442 = vmatpush2.msra.mxu0 0.0
        %2443 = vmatprep.subr.mxu0 0.0
        %2444 = vmatpush2.msra.mxu0 0.0
        %2445 = vmatprep.subr.mxu0 0.0
        %2446 = vmatpush2.msra.mxu0 0.0
        %2447 = vmatprep.subr.mxu0 0.0
        %2448 = vmatpush2.msra.mxu0 0.0
        %2449 = vmatprep.subr.mxu0 0.0
        %2450 = vmatpush2.msra.mxu0 0.0
        %2451 = vmatprep.subr.mxu0 0.0
        %2452 = vmatpush2.msra.mxu0 0.0
        %2453 = vmatprep.subr.mxu0 0.0
        %2454 = vmatpush2.msra.mxu0 0.0
        %2455 = vmatprep.subr.mxu0 0.0
        %2456 = vmatpush2.msra.mxu0 0.0
        %2457 = vmatprep.subr.mxu0 0.0
        %2458 = vmatpush2.msra.mxu0 0.0
        %2459 = vmatprep.subr.mxu0 0.0
        %2460 = vmatpush2.msra.mxu0 0.0
        %2461 = vmatprep.subr.mxu0 0.0
        %2462 = vmatpush2.msra.mxu0 0.0
        %2463 = vmatprep.subr.mxu0 0.0
        %2464 = vmatpush2.msra.mxu0 0.0
        %2465 = vmatprep.mubr.f32.mxu0 0.0
        %2466 = vmatmul.mubr.f32.gmra.mxu0 %v2384
        %v2467 = vpop.f32.mrf.mxu0
        %v2468 = vadd.f32 0.0, %v2467
        %v2469 = vpop.f32.mrf.mxu0
        %2470 = vdwg.mxu0
        %v2471 = vadd.f32 %v2383, %v2468
        %vm2472 = vcmask 123904
        %2473 = vst.msk [vmem:[#allocation5 + $0x2] sm:$0x3] %vm2472, %v2471
        %v2474 = vld [vmem:[#allocation5 + $0x1] sm:$0x7]
        %v2475 = vld [vmem:[#allocation3] sm:$0x7]
        %s2476 = scalar_lea.vmem %s10, 128
        %v2477 = vld [vmem:[%s2476] sm:$0xff]
        %v2478 = vld [vmem:[%s2476 + $0x8] sm:$0xff]
        %v2479 = vld [vmem:[%s2476 + $0x10] sm:$0xff]
        %v2480 = vld [vmem:[%s2476 + $0x18] sm:$0xff]
        %v2481 = vld [vmem:[%s2476 + $0x20] sm:$0xff]
        %v2482 = vld [vmem:[%s2476 + $0x28] sm:$0xff]
        %v2483 = vld [vmem:[%s2476 + $0x30] sm:$0xff]
        %v2484 = vld [vmem:[%s2476 + $0x38] sm:$0xff]
        %v2485 = vld [vmem:[%s2476 + $0x40] sm:$0xff]
        %v2486 = vld [vmem:[%s2476 + $0x48] sm:$0xff]
        %v2487 = vld [vmem:[%s2476 + $0x50] sm:$0xff]
        %v2488 = vld [vmem:[%s2476 + $0x58] sm:$0xff]
        %v2489 = vld [vmem:[%s2476 + $0x60] sm:$0xff]
        %v2490 = vld [vmem:[%s2476 + $0x68] sm:$0xff]
        %v2491 = vld [vmem:[%s2476 + $0x70] sm:$0xff]
        %v2492 = vld [vmem:[%s2476 + $0x78] sm:$0xff]
        %2493 = vmatprep.subr.mxu0 0.0
        %2494 = vmatpush1.msra.mxu0 %v2492
        %2495 = vmatprep.subr.mxu0 0.0
        %2496 = vmatpush1.msra.mxu0 %v2491
        %2497 = vmatprep.subr.mxu0 0.0
        %2498 = vmatpush1.msra.mxu0 %v2490
        %2499 = vmatprep.subr.mxu0 0.0
        %2500 = vmatpush1.msra.mxu0 %v2489
        %2501 = vmatprep.subr.mxu0 0.0
        %2502 = vmatpush1.msra.mxu0 %v2488
        %2503 = vmatprep.subr.mxu0 0.0
        %2504 = vmatpush1.msra.mxu0 %v2487
        %2505 = vmatprep.subr.mxu0 0.0
        %2506 = vmatpush1.msra.mxu0 %v2486
        %2507 = vmatprep.subr.mxu0 0.0
        %2508 = vmatpush1.msra.mxu0 %v2485
        %2509 = vmatprep.subr.mxu0 0.0
        %2510 = vmatpush1.msra.mxu0 %v2484
        %2511 = vmatprep.subr.mxu0 0.0
        %2512 = vmatpush1.msra.mxu0 %v2483
        %2513 = vmatprep.subr.mxu0 0.0
        %2514 = vmatpush1.msra.mxu0 %v2482
        %2515 = vmatprep.subr.mxu0 0.0
        %2516 = vmatpush1.msra.mxu0 %v2481
        %2517 = vmatprep.subr.mxu0 0.0
        %2518 = vmatpush1.msra.mxu0 %v2480
        %2519 = vmatprep.subr.mxu0 0.0
        %2520 = vmatpush1.msra.mxu0 %v2479
        %2521 = vmatprep.subr.mxu0 0.0
        %2522 = vmatpush1.msra.mxu0 %v2478
        %2523 = vmatprep.subr.mxu0 0.0
        %2524 = vmatpush1.msra.mxu0 %v2477
        %2525 = vmatprep.subr.mxu0 0.0
        %2526 = vmatpush2.msra.mxu0 0.0
        %2527 = vmatprep.subr.mxu0 0.0
        %2528 = vmatpush2.msra.mxu0 0.0
        %2529 = vmatprep.subr.mxu0 0.0
        %2530 = vmatpush2.msra.mxu0 0.0
        %2531 = vmatprep.subr.mxu0 0.0
        %2532 = vmatpush2.msra.mxu0 0.0
        %2533 = vmatprep.subr.mxu0 0.0
        %2534 = vmatpush2.msra.mxu0 0.0
        %2535 = vmatprep.subr.mxu0 0.0
        %2536 = vmatpush2.msra.mxu0 0.0
        %2537 = vmatprep.subr.mxu0 0.0
        %2538 = vmatpush2.msra.mxu0 0.0
        %2539 = vmatprep.subr.mxu0 0.0
        %2540 = vmatpush2.msra.mxu0 0.0
        %2541 = vmatprep.subr.mxu0 0.0
        %2542 = vmatpush2.msra.mxu0 0.0
        %2543 = vmatprep.subr.mxu0 0.0
        %2544 = vmatpush2.msra.mxu0 0.0
        %2545 = vmatprep.subr.mxu0 0.0
        %2546 = vmatpush2.msra.mxu0 0.0
        %2547 = vmatprep.subr.mxu0 0.0
        %2548 = vmatpush2.msra.mxu0 0.0
        %2549 = vmatprep.subr.mxu0 0.0
        %2550 = vmatpush2.msra.mxu0 0.0
        %2551 = vmatprep.subr.mxu0 0.0
        %2552 = vmatpush2.msra.mxu0 0.0
        %2553 = vmatprep.subr.mxu0 0.0
        %2554 = vmatpush2.msra.mxu0 0.0
        %2555 = vmatprep.subr.mxu0 0.0
        %2556 = vmatpush2.msra.mxu0 0.0
        %2557 = vmatprep.mubr.f32.mxu0 0.0
        %2558 = vmatmul.mubr.f32.gmra.mxu0 %v2475
        %v2559 = vpop.f32.mrf.mxu0
        %v2560 = vadd.f32 0.0, %v2559
        %v2561 = vpop.f32.mrf.mxu0
        %2562 = vdwg.mxu0
        %v2563 = vadd.f32 %v2474, %v2560
        %vm2564 = vcmask 124928
        %2565 = vst.msk [vmem:[#allocation5 + $0x1] sm:$0x7] %vm2564, %v2563
        %v2566 = vld [vmem:[#allocation5] sm:$0xf]
        %v2567 = vld [vmem:[#allocation3] sm:$0xf]
        %s2568 = scalar_lea.vmem %s10, 256
        %v2569 = vld [vmem:[%s2568] sm:$0xff]
        %v2570 = vld [vmem:[%s2568 + $0x8] sm:$0xff]
        %v2571 = vld [vmem:[%s2568 + $0x10] sm:$0xff]
        %v2572 = vld [vmem:[%s2568 + $0x18] sm:$0xff]
        %v2573 = vld [vmem:[%s2568 + $0x20] sm:$0xff]
        %v2574 = vld [vmem:[%s2568 + $0x28] sm:$0xff]
        %v2575 = vld [vmem:[%s2568 + $0x30] sm:$0xff]
        %v2576 = vld [vmem:[%s2568 + $0x38] sm:$0xff]
        %v2577 = vld [vmem:[%s2568 + $0x40] sm:$0xff]
        %v2578 = vld [vmem:[%s2568 + $0x48] sm:$0xff]
        %v2579 = vld [vmem:[%s2568 + $0x50] sm:$0xff]
        %v2580 = vld [vmem:[%s2568 + $0x58] sm:$0xff]
        %v2581 = vld [vmem:[%s2568 + $0x60] sm:$0xff]
        %v2582 = vld [vmem:[%s2568 + $0x68] sm:$0xff]
        %v2583 = vld [vmem:[%s2568 + $0x70] sm:$0xff]
        %v2584 = vld [vmem:[%s2568 + $0x78] sm:$0xff]
        %2585 = vmatprep.subr.mxu0 0.0
        %2586 = vmatpush1.msra.mxu0 %v2584
        %2587 = vmatprep.subr.mxu0 0.0
        %2588 = vmatpush1.msra.mxu0 %v2583
        %2589 = vmatprep.subr.mxu0 0.0
        %2590 = vmatpush1.msra.mxu0 %v2582
        %2591 = vmatprep.subr.mxu0 0.0
        %2592 = vmatpush1.msra.mxu0 %v2581
        %2593 = vmatprep.subr.mxu0 0.0
        %2594 = vmatpush1.msra.mxu0 %v2580
        %2595 = vmatprep.subr.mxu0 0.0
        %2596 = vmatpush1.msra.mxu0 %v2579
        %2597 = vmatprep.subr.mxu0 0.0
        %2598 = vmatpush1.msra.mxu0 %v2578
        %2599 = vmatprep.subr.mxu0 0.0
        %2600 = vmatpush1.msra.mxu0 %v2577
        %2601 = vmatprep.subr.mxu0 0.0
        %2602 = vmatpush1.msra.mxu0 %v2576
        %2603 = vmatprep.subr.mxu0 0.0
        %2604 = vmatpush1.msra.mxu0 %v2575
        %2605 = vmatprep.subr.mxu0 0.0
        %2606 = vmatpush1.msra.mxu0 %v2574
        %2607 = vmatprep.subr.mxu0 0.0
        %2608 = vmatpush1.msra.mxu0 %v2573
        %2609 = vmatprep.subr.mxu0 0.0
        %2610 = vmatpush1.msra.mxu0 %v2572
        %2611 = vmatprep.subr.mxu0 0.0
        %2612 = vmatpush1.msra.mxu0 %v2571
        %2613 = vmatprep.subr.mxu0 0.0
        %2614 = vmatpush1.msra.mxu0 %v2570
        %2615 = vmatprep.subr.mxu0 0.0
        %2616 = vmatpush1.msra.mxu0 %v2569
        %2617 = vmatprep.subr.mxu0 0.0
        %2618 = vmatpush2.msra.mxu0 0.0
        %2619 = vmatprep.subr.mxu0 0.0
        %2620 = vmatpush2.msra.mxu0 0.0
        %2621 = vmatprep.subr.mxu0 0.0
        %2622 = vmatpush2.msra.mxu0 0.0
        %2623 = vmatprep.subr.mxu0 0.0
        %2624 = vmatpush2.msra.mxu0 0.0
        %2625 = vmatprep.subr.mxu0 0.0
        %2626 = vmatpush2.msra.mxu0 0.0
        %2627 = vmatprep.subr.mxu0 0.0
        %2628 = vmatpush2.msra.mxu0 0.0
        %2629 = vmatprep.subr.mxu0 0.0
        %2630 = vmatpush2.msra.mxu0 0.0
        %2631 = vmatprep.subr.mxu0 0.0
        %2632 = vmatpush2.msra.mxu0 0.0
        %2633 = vmatprep.subr.mxu0 0.0
        %2634 = vmatpush2.msra.mxu0 0.0
        %2635 = vmatprep.subr.mxu0 0.0
        %2636 = vmatpush2.msra.mxu0 0.0
        %2637 = vmatprep.subr.mxu0 0.0
        %2638 = vmatpush2.msra.mxu0 0.0
        %2639 = vmatprep.subr.mxu0 0.0
        %2640 = vmatpush2.msra.mxu0 0.0
        %2641 = vmatprep.subr.mxu0 0.0
        %2642 = vmatpush2.msra.mxu0 0.0
        %2643 = vmatprep.subr.mxu0 0.0
        %2644 = vmatpush2.msra.mxu0 0.0
        %2645 = vmatprep.subr.mxu0 0.0
        %2646 = vmatpush2.msra.mxu0 0.0
        %2647 = vmatprep.subr.mxu0 0.0
        %2648 = vmatpush2.msra.mxu0 0.0
        %2649 = vmatprep.mubr.f32.mxu0 0.0
        %2650 = vmatmul.mubr.f32.gmra.mxu0 %v2567
        %v2651 = vpop.f32.mrf.mxu0
        %v2652 = vadd.f32 0.0, %v2651
        %v2653 = vpop.f32.mrf.mxu0
        %2654 = vdwg.mxu0
        %v2655 = vadd.f32 %v2566, %v2652
        %2656 = vst.msk [vmem:[#allocation5] sm:$0xf] %vm2381, %v2655
        %v2657 = vld [vmem:[#allocation5] sm:$0x7]
        %v2658 = vld [vmem:[#allocation3 + $0x1] sm:$0x7]
        %s2659 = scalar_lea.vmem %s10, 384
        %v2660 = vld [vmem:[%s2659] sm:$0xff]
        %v2661 = vld [vmem:[%s2659 + $0x8] sm:$0xff]
        %v2662 = vld [vmem:[%s2659 + $0x10] sm:$0xff]
        %v2663 = vld [vmem:[%s2659 + $0x18] sm:$0xff]
        %v2664 = vld [vmem:[%s2659 + $0x20] sm:$0xff]
        %v2665 = vld [vmem:[%s2659 + $0x28] sm:$0xff]
        %v2666 = vld [vmem:[%s2659 + $0x30] sm:$0xff]
        %v2667 = vld [vmem:[%s2659 + $0x38] sm:$0xff]
        %v2668 = vld [vmem:[%s2659 + $0x40] sm:$0xff]
        %v2669 = vld [vmem:[%s2659 + $0x48] sm:$0xff]
        %v2670 = vld [vmem:[%s2659 + $0x50] sm:$0xff]
        %v2671 = vld [vmem:[%s2659 + $0x58] sm:$0xff]
        %v2672 = vld [vmem:[%s2659 + $0x60] sm:$0xff]
        %v2673 = vld [vmem:[%s2659 + $0x68] sm:$0xff]
        %v2674 = vld [vmem:[%s2659 + $0x70] sm:$0xff]
        %v2675 = vld [vmem:[%s2659 + $0x78] sm:$0xff]
        %2676 = vmatprep.subr.mxu0 0.0
        %2677 = vmatpush1.msra.mxu0 %v2675
        %2678 = vmatprep.subr.mxu0 0.0
        %2679 = vmatpush1.msra.mxu0 %v2674
        %2680 = vmatprep.subr.mxu0 0.0
        %2681 = vmatpush1.msra.mxu0 %v2673
        %2682 = vmatprep.subr.mxu0 0.0
        %2683 = vmatpush1.msra.mxu0 %v2672
        %2684 = vmatprep.subr.mxu0 0.0
        %2685 = vmatpush1.msra.mxu0 %v2671
        %2686 = vmatprep.subr.mxu0 0.0
        %2687 = vmatpush1.msra.mxu0 %v2670
        %2688 = vmatprep.subr.mxu0 0.0
        %2689 = vmatpush1.msra.mxu0 %v2669
        %2690 = vmatprep.subr.mxu0 0.0
        %2691 = vmatpush1.msra.mxu0 %v2668
        %2692 = vmatprep.subr.mxu0 0.0
        %2693 = vmatpush1.msra.mxu0 %v2667
        %2694 = vmatprep.subr.mxu0 0.0
        %2695 = vmatpush1.msra.mxu0 %v2666
        %2696 = vmatprep.subr.mxu0 0.0
        %2697 = vmatpush1.msra.mxu0 %v2665
        %2698 = vmatprep.subr.mxu0 0.0
        %2699 = vmatpush1.msra.mxu0 %v2664
        %2700 = vmatprep.subr.mxu0 0.0
        %2701 = vmatpush1.msra.mxu0 %v2663
        %2702 = vmatprep.subr.mxu0 0.0
        %2703 = vmatpush1.msra.mxu0 %v2662
        %2704 = vmatprep.subr.mxu0 0.0
        %2705 = vmatpush1.msra.mxu0 %v2661
        %2706 = vmatprep.subr.mxu0 0.0
        %2707 = vmatpush1.msra.mxu0 %v2660
        %2708 = vmatprep.subr.mxu0 0.0
        %2709 = vmatpush2.msra.mxu0 0.0
        %2710 = vmatprep.subr.mxu0 0.0
        %2711 = vmatpush2.msra.mxu0 0.0
        %2712 = vmatprep.subr.mxu0 0.0
        %2713 = vmatpush2.msra.mxu0 0.0
        %2714 = vmatprep.subr.mxu0 0.0
        %2715 = vmatpush2.msra.mxu0 0.0
        %2716 = vmatprep.subr.mxu0 0.0
        %2717 = vmatpush2.msra.mxu0 0.0
        %2718 = vmatprep.subr.mxu0 0.0
        %2719 = vmatpush2.msra.mxu0 0.0
        %2720 = vmatprep.subr.mxu0 0.0
        %2721 = vmatpush2.msra.mxu0 0.0
        %2722 = vmatprep.subr.mxu0 0.0
        %2723 = vmatpush2.msra.mxu0 0.0
        %2724 = vmatprep.subr.mxu0 0.0
        %2725 = vmatpush2.msra.mxu0 0.0
        %2726 = vmatprep.subr.mxu0 0.0
        %2727 = vmatpush2.msra.mxu0 0.0
        %2728 = vmatprep.subr.mxu0 0.0
        %2729 = vmatpush2.msra.mxu0 0.0
        %2730 = vmatprep.subr.mxu0 0.0
        %2731 = vmatpush2.msra.mxu0 0.0
        %2732 = vmatprep.subr.mxu0 0.0
        %2733 = vmatpush2.msra.mxu0 0.0
        %2734 = vmatprep.subr.mxu0 0.0
        %2735 = vmatpush2.msra.mxu0 0.0
        %2736 = vmatprep.subr.mxu0 0.0
        %2737 = vmatpush2.msra.mxu0 0.0
        %2738 = vmatprep.subr.mxu0 0.0
        %2739 = vmatpush2.msra.mxu0 0.0
        %2740 = vmatprep.mubr.f32.mxu0 0.0
        %2741 = vmatmul.mubr.f32.gmra.mxu0 %v2658
        %v2742 = vpop.f32.mrf.mxu0
        %v2743 = vadd.f32 0.0, %v2742
        %v2744 = vpop.f32.mrf.mxu0
        %2745 = vdwg.mxu0
        %v2746 = vadd.f32 %v2657, %v2743
        %2747 = vst.msk [vmem:[#allocation5] sm:$0x7] %vm2564, %v2746
        %v2748 = vld [vmem:[#allocation5] sm:$0x3]
        %v2749 = vld [vmem:[#allocation3 + $0x2] sm:$0x3]
        %s2750 = scalar_lea.vmem %s10, 512
        %v2751 = vld [vmem:[%s2750] sm:$0xff]
        %v2752 = vld [vmem:[%s2750 + $0x8] sm:$0xff]
        %v2753 = vld [vmem:[%s2750 + $0x10] sm:$0xff]
        %v2754 = vld [vmem:[%s2750 + $0x18] sm:$0xff]
        %v2755 = vld [vmem:[%s2750 + $0x20] sm:$0xff]
        %v2756 = vld [vmem:[%s2750 + $0x28] sm:$0xff]
        %v2757 = vld [vmem:[%s2750 + $0x30] sm:$0xff]
        %v2758 = vld [vmem:[%s2750 + $0x38] sm:$0xff]
        %v2759 = vld [vmem:[%s2750 + $0x40] sm:$0xff]
        %v2760 = vld [vmem:[%s2750 + $0x48] sm:$0xff]
        %v2761 = vld [vmem:[%s2750 + $0x50] sm:$0xff]
        %v2762 = vld [vmem:[%s2750 + $0x58] sm:$0xff]
        %v2763 = vld [vmem:[%s2750 + $0x60] sm:$0xff]
        %v2764 = vld [vmem:[%s2750 + $0x68] sm:$0xff]
        %v2765 = vld [vmem:[%s2750 + $0x70] sm:$0xff]
        %v2766 = vld [vmem:[%s2750 + $0x78] sm:$0xff]
        %2767 = vmatprep.subr.mxu0 0.0
        %2768 = vmatpush1.msra.mxu0 %v2766
        %2769 = vmatprep.subr.mxu0 0.0
        %2770 = vmatpush1.msra.mxu0 %v2765
        %2771 = vmatprep.subr.mxu0 0.0
        %2772 = vmatpush1.msra.mxu0 %v2764
        %2773 = vmatprep.subr.mxu0 0.0
        %2774 = vmatpush1.msra.mxu0 %v2763
        %2775 = vmatprep.subr.mxu0 0.0
        %2776 = vmatpush1.msra.mxu0 %v2762
        %2777 = vmatprep.subr.mxu0 0.0
        %2778 = vmatpush1.msra.mxu0 %v2761
        %2779 = vmatprep.subr.mxu0 0.0
        %2780 = vmatpush1.msra.mxu0 %v2760
        %2781 = vmatprep.subr.mxu0 0.0
        %2782 = vmatpush1.msra.mxu0 %v2759
        %2783 = vmatprep.subr.mxu0 0.0
        %2784 = vmatpush1.msra.mxu0 %v2758
        %2785 = vmatprep.subr.mxu0 0.0
        %2786 = vmatpush1.msra.mxu0 %v2757
        %2787 = vmatprep.subr.mxu0 0.0
        %2788 = vmatpush1.msra.mxu0 %v2756
        %2789 = vmatprep.subr.mxu0 0.0
        %2790 = vmatpush1.msra.mxu0 %v2755
        %2791 = vmatprep.subr.mxu0 0.0
        %2792 = vmatpush1.msra.mxu0 %v2754
        %2793 = vmatprep.subr.mxu0 0.0
        %2794 = vmatpush1.msra.mxu0 %v2753
        %2795 = vmatprep.subr.mxu0 0.0
        %2796 = vmatpush1.msra.mxu0 %v2752
        %2797 = vmatprep.subr.mxu0 0.0
        %2798 = vmatpush1.msra.mxu0 %v2751
        %2799 = vmatprep.subr.mxu0 0.0
        %2800 = vmatpush2.msra.mxu0 0.0
        %2801 = vmatprep.subr.mxu0 0.0
        %2802 = vmatpush2.msra.mxu0 0.0
        %2803 = vmatprep.subr.mxu0 0.0
        %2804 = vmatpush2.msra.mxu0 0.0
        %2805 = vmatprep.subr.mxu0 0.0
        %2806 = vmatpush2.msra.mxu0 0.0
        %2807 = vmatprep.subr.mxu0 0.0
        %2808 = vmatpush2.msra.mxu0 0.0
        %2809 = vmatprep.subr.mxu0 0.0
        %2810 = vmatpush2.msra.mxu0 0.0
        %2811 = vmatprep.subr.mxu0 0.0
        %2812 = vmatpush2.msra.mxu0 0.0
        %2813 = vmatprep.subr.mxu0 0.0
        %2814 = vmatpush2.msra.mxu0 0.0
        %2815 = vmatprep.subr.mxu0 0.0
        %2816 = vmatpush2.msra.mxu0 0.0
        %2817 = vmatprep.subr.mxu0 0.0
        %2818 = vmatpush2.msra.mxu0 0.0
        %2819 = vmatprep.subr.mxu0 0.0
        %2820 = vmatpush2.msra.mxu0 0.0
        %2821 = vmatprep.subr.mxu0 0.0
        %2822 = vmatpush2.msra.mxu0 0.0
        %2823 = vmatprep.subr.mxu0 0.0
        %2824 = vmatpush2.msra.mxu0 0.0
        %2825 = vmatprep.subr.mxu0 0.0
        %2826 = vmatpush2.msra.mxu0 0.0
        %2827 = vmatprep.subr.mxu0 0.0
        %2828 = vmatpush2.msra.mxu0 0.0
        %2829 = vmatprep.subr.mxu0 0.0
        %2830 = vmatpush2.msra.mxu0 0.0
        %2831 = vmatprep.mubr.f32.mxu0 0.0
        %2832 = vmatmul.mubr.f32.gmra.mxu0 %v2749
        %v2833 = vpop.f32.mrf.mxu0
        %v2834 = vadd.f32 0.0, %v2833
        %v2835 = vpop.f32.mrf.mxu0
        %2836 = vdwg.mxu0
        %v2837 = vadd.f32 %v2748, %v2834
        %2838 = vst.msk [vmem:[#allocation5] sm:$0x3] %vm2472, %v2837
        %v2839 = vld [vmem:[#allocation5] sm:$0xf]
        %v2840 = vld [vmem:[%s11] sm:$0x1]
        %v2842 = vlaneseq
        %v2843 = vshrl.u32 %v2842, 7
        %v2844 = vsub.s32 0, %v2843
        %v2845 = vrot.slane %v2840, %v2844
        %v2847 = vadd.f32 %v2839, %v2845
        %v2848 = vld [vmem:[%s532] sm:$0xf]
        %v2849 = vmul.f32 %v2847, 0.5
        %v2850 = vmul.f32 %v2849, 1.442695
        %v2851 = vpow.pop %v2850
        %2853 = vrot.lane.b32.xlu0 %v2851, 120
        %v2854 = vpop.permute.xlu0 %2853
        %v2856 = vmul.f32 %v2848, %v2854
        %v2857 = vadd.f32 %v2847, %v2856
        %vm2858 = vcmask 60416
        %2859 = vst.msk [vmem:[%s536] sm:$0xf] %vm2858, %v2857
        %2860 = vst.msk [vmem:[%s540] sm:$0xf] %vm2858, %v2847
        %2862 = vrot.lane.b32.xlu0 %v2847, 120
        %v2863 = vpop.permute.xlu0 %2862
        %2865 = vst.msk [vmem:[%s544] sm:$0xf] %vm2858, %v2863
        %p2866 = scmp.lt.s32.totalorder %s28, 1
        %s2867 = scalar_select %p2866, %s28, 1
        %s2868 = smul.addr %s2867, 4
        %s2869 = scalar_lea.vmem %s13, %s2868
        %p2870 = scmp.lt.s32.totalorder %s28, 1
        %s2871 = scalar_select %p2870, %s28, 1
        %s2872 = smul.addr %s2871, 4
        %s2873 = scalar_lea.vmem %s14, %s2872
        %p2874 = scmp.lt.s32.totalorder %s28, 1
        %s2875 = scalar_select %p2874, %s28, 1
        %s2876 = smul.addr %s2875, 4
        %s2877 = scalar_lea.vmem %s15, %s2876
        // Predicated region
        $region77: #{encoder_forward.1} parent=71 // pred_check
          %p2878 = pneg %p329
        $region78: #{encoder_forward.1} parent=71 // pred_check_branch
          %2880 = sbr.rel (%p2878) target = $region80
        $region79: #{encoder_forward.1} parent=71 // pred_region
          _
        $region80: #{encoder_forward.1} parent=71 // pred_fallthru
          _
        // Predicated region
        $region81: #{encoder_forward.1} parent=71 // pred_check
          %p2881 = pneg %p355
        $region82: #{encoder_forward.1} parent=71 // pred_check_branch
          %2883 = sbr.rel (%p2881) target = $region84
        $region83: #{encoder_forward.1} parent=71 // pred_region
          _
        $region84: #{encoder_forward.1} parent=71 // pred_fallthru
          _
        // Predicated region
        $region85: #{encoder_forward.1} parent=71 // pred_check
          %p2884 = pneg %p381
        $region86: #{encoder_forward.1} parent=71 // pred_check_branch
          %2886 = sbr.rel (%p2884) target = $region88
        $region87: #{encoder_forward.1} parent=71 // pred_region
          _
        $region88: #{encoder_forward.1} parent=71 // pred_fallthru
          _
      $region72: #{encoder_forward.1} parent=5 // pred_fallthru
        _
      %p2887 = scmp.le.s32.totalorder 2, %s23
      // Predicated region
      $region89: #{encoder_forward.1} parent=5 // pred_check
        %p2888 = pneg %p2887
      $region90: #{encoder_forward.1} parent=5 // pred_check_branch
        %2890 = sbr.rel (%p2888) target = $region92
      $region91: #{encoder_forward.1} parent=5 // pred_region
        %s2891 = ssub.s32 %s23, 2
        // Predicated region
        $region93: #{encoder_forward.1} parent=91 // pred_check
          %p2892 = pneg %p335
        $region94: #{encoder_forward.1} parent=91 // pred_check_branch
          %2894 = sbr.rel (%p2892) target = $region96
        $region95: #{encoder_forward.1} parent=91 // pred_region
          %p2895 = scmp.lt.s32.totalorder %s29, 1
          %s2896 = scalar_select %p2895, %s29, 1
          %s2897 = smul.addr %s2896, 4
          %s2898 = scalar_lea.vmem %s13, %s2897
        $region96: #{encoder_forward.1} parent=91 // pred_fallthru
          _
        // Predicated region
        $region97: #{encoder_forward.1} parent=91 // pred_check
          %p2899 = pneg %p361
        $region98: #{encoder_forward.1} parent=91 // pred_check_branch
          %2901 = sbr.rel (%p2899) target = $region100
        $region99: #{encoder_forward.1} parent=91 // pred_region
          %p2902 = scmp.lt.s32.totalorder %s29, 1
          %s2903 = scalar_select %p2902, %s29, 1
          %s2904 = smul.addr %s2903, 4
          %s2905 = scalar_lea.vmem %s14, %s2904
        $region100: #{encoder_forward.1} parent=91 // pred_fallthru
          _
        // Predicated region
        $region101: #{encoder_forward.1} parent=91 // pred_check
          %p2906 = pneg %p387
        $region102: #{encoder_forward.1} parent=91 // pred_check_branch
          %2908 = sbr.rel (%p2906) target = $region104
        $region103: #{encoder_forward.1} parent=91 // pred_region
          %p2909 = scmp.lt.s32.totalorder %s29, 1
          %s2910 = scalar_select %p2909, %s29, 1
          %s2911 = smul.addr %s2910, 4
          %s2912 = scalar_lea.vmem %s15, %s2911
        $region104: #{encoder_forward.1} parent=91 // pred_fallthru
          _
      $region92: #{encoder_forward.1} parent=5 // pred_fallthru
        _
    $region6: #{encoder_forward.1} parent=1 // loop_footer
      %s27 = sadd.s32 1, %s23
    $region7: #{encoder_forward.1} parent=1 // loop_footer_branch
      %22 = sbr.rel target = $region3
    $region8: #{encoder_forward.1} parent=1 // loop_exit
      _
    %2913 = vsyncpa [#allocation7], 1
    %s2914 = scalar_lea.sflag [#allocation7], 1
    %2915 = vsyncpa %s2914, 1

</llo_original>
